<compile_context>
chip_gen: v7x
topology: tpu7x:2x2x1
jax: 0.10.0
libtpu: 0.0.40
codegen_flags: <defaults>
</compile_context>

<pallas_src>
import functools

import jax
import jax.numpy as jnp
import numpy as np
from jax.experimental import pallas as pl
from jax.experimental.pallas import tpu as pltpu

STRIDE = 2
K = 3          # kernel size
PAD = K - 1    # padding of the dilated input for the equivalent correlation


def _convt_relu_t_kernel(x_ref, w_ref, b_ref, o_ref, *, cin, cout, h, w, hout, wout):
    # x_ref: VMEM (1, Cin, H, W)         raw input, one batch element
    # w_ref: SMEM (Cin*Cout*K*K,)        raw ConvTranspose2d weights, row-major (ci,co,kh,kw)
    # b_ref: SMEM (Cout,)                bias
    # o_ref: VMEM (1, Hout, Cout*Wout)   transposed (H<->C) output, lane-dense slab
    hp = (h - 1) * STRIDE + 1 + 2 * PAD
    wp = (w - 1) * STRIDE + 1 + 2 * PAD

    # In-kernel zero-dilation + padding:  xp = D_h @ x @ D_wT
    #   D_h[r, i]  = 1  iff r == 2*i + PAD      (Hp, H)
    #   D_wT[j, c] = 1  iff c == 2*j + PAD      (W, Wp)
    r = jax.lax.broadcasted_iota(jnp.int32, (hp, h), 0)
    i = jax.lax.broadcasted_iota(jnp.int32, (hp, h), 1)
    d_h = (r == 2 * i + PAD).astype(jnp.float32)
    j = jax.lax.broadcasted_iota(jnp.int32, (w, wp), 0)
    c = jax.lax.broadcasted_iota(jnp.int32, (w, wp), 1)
    d_wt = (c == 2 * j + PAD).astype(jnp.float32)

    xv = x_ref[0]  # (Cin, H, W)

    # Per-output-channel accumulators start at their bias.
    accs = [jnp.full((hout, wout), b_ref[co], jnp.float32) for co in range(cout)]

    # Fully-unrolled direct convolution (scalar SMEM weight * (Hout, Wout) tile).
    for ci in range(cin):
        x_ci = xv[ci].astype(jnp.float32)                                   # (H, W)
        xp = jnp.dot(d_h,
                     jnp.dot(x_ci, d_wt, preferred_element_type=jnp.float32),
                     preferred_element_type=jnp.float32)                    # (Hp, Wp)
        for kh in range(K):
            for kw in range(K):
                patch = xp[kh:kh + hout, kw:kw + wout]                      # (Hout, Wout)
                for co in range(cout):
                    # flipped-kernel correlation == conv-transpose (flip folded
                    # into the static index -> no wrapper weight preprocessing)
                    widx = ((ci * cout + co) * K + (K - 1 - kh)) * K + (K - 1 - kw)
                    accs[co] = accs[co] + w_ref[widx] * patch

    # ReLU + fused transpose(2,1): lay channels out along lanes so the store is
    # a single dense (Hout, Cout*Wout) slab (reshapes to (Hout, Cout, Wout)).
    out = jnp.concatenate([jnp.maximum(a, 0.0) for a in accs], axis=-1)
    o_ref[0] = out.astype(o_ref.dtype)


def model_forward(x, w, b):
    """x: (N, Cin, H, W); w: (Cin, Cout, K, K) [PyTorch ConvTranspose2d layout]; b: (Cout,)."""
    N, Cin, H, W = x.shape
    Cout = w.shape[1]
    Hout = (H - 1) * STRIDE + K
    Wout = (W - 1) * STRIDE + K

    # Contiguous row-major flatten -> free bitcast, no data movement / extra kernel.
    w_flat = w.reshape(-1)

    kernel = functools.partial(
        _convt_relu_t_kernel, cin=Cin, cout=Cout, h=H, w=W, hout=Hout, wout=Wout
    )

    out3 = pl.pallas_call(
        kernel,
        out_shape=jax.ShapeDtypeStruct((N, Hout, Cout * Wout), x.dtype),
        grid=(N,),
        in_specs=[
            pl.BlockSpec((1, Cin, H, W), lambda n: (n, 0, 0, 0)),
            pl.BlockSpec((Cin * Cout * K * K,), lambda n: (0,),
                         memory_space=pltpu.MemorySpace.SMEM),
            pl.BlockSpec((Cout,), lambda n: (0,),
                         memory_space=pltpu.MemorySpace.SMEM),
        ],
        out_specs=pl.BlockSpec((1, Hout, Cout * Wout), lambda n: (n, 0, 0)),
        # batch axis parallel: 2 TCs on v7x split the batch; no-op on v5e/v6e.
        compiler_params=pltpu.CompilerParams(dimension_semantics=("parallel",)),
    )(x, w_flat, b)

    # (N, Hout, Cout*Wout) -> (N, Hout, Cout, Wout): contiguous split, metadata-only.
    # Second ReLU of the module is idempotent after the in-kernel ReLU -> dropped.
    return out3.reshape(N, Hout, Cout, Wout)


if __name__ == "__main__":
    key = jax.random.PRNGKey(0)
    kx, kw, kb = jax.random.split(key, 3)

    # Small shapes consistent with the forward pass: in_channels must be 5.
    N, Cin, H, W = 2, 5, 8, 8
    Cout = 3

    x = jax.random.normal(kx, (N, Cin, H, W), dtype=jnp.float32)
    bound = 1.0 / np.sqrt(Cin * K * K)
    # PyTorch ConvTranspose2d weight shape: (in_channels, out_channels, kH, kW)
    w = jax.random.uniform(kw, (Cin, Cout, K, K), jnp.float32, -bound, bound)
    b = jax.random.uniform(kb, (Cout,), jnp.float32, -bound, bound)

    out = model_forward(x, w, b)
    out = jax.block_until_ready(out)

    # Reference: conv-transpose via lhs-dilated conv with flipped kernel (XLA).
    w_oihw = jnp.transpose(jnp.flip(w, (2, 3)), (1, 0, 2, 3))  # (Cout, Cin, K, K)
    ref = jax.lax.conv_general_dilated(
        x, w_oihw, window_strides=(1, 1),
        padding=((K - 1, K - 1), (K - 1, K - 1)),
        lhs_dilation=(STRIDE, STRIDE),
        dimension_numbers=("NCHW", "OIHW", "NCHW"),
    ) + b[None, :, None, None]
    ref = jnp.maximum(ref, 0.0)                  # first ReLU
    ref = jnp.swapaxes(ref, 2, 1)                # transpose(2,1); 2nd ReLU redundant

    Hout = (H - 1) * STRIDE + K
    Wout = (W - 1) * STRIDE + K
    assert out.shape == (N, Hout, Cout, Wout), out.shape
    np.testing.assert_allclose(np.asarray(out), np.asarray(ref), rtol=1e-5, atol=1e-5)
    print("KERNEL_OK")
</pallas_src>

<mosaic_0001>
module attributes {stable_mosaic.version = 11 : i64} {
  func.func @_convt_relu_t_kernel(%arg0: i32, %arg1: memref<1x5x8x8xf32, #tpu.memory_space<vmem>>, %arg2: memref<135xf32, #tpu.memory_space<smem>>, %arg3: memref<3xf32, #tpu.memory_space<smem>>, %arg4: memref<1x17x51xf32, #tpu.memory_space<vmem>>) attributes {dimension_semantics = [#tpu.dimension_semantics<parallel>], iteration_bounds = array<i64: 2>, scalar_prefetch = 0 : i64, scratch_operands = 0 : i64, tpu.core_type = #tpu.core_type<tc>, window_params = [{transform_indices = @transform_0, window_bounds = array<i64: 1, 5, 8, 8>}, {transform_indices = @transform_1, window_bounds = array<i64: 135>}, {transform_indices = @transform_2, window_bounds = array<i64: 3>}, {transform_indices = @transform_3, window_bounds = array<i64: 1, 17, 51>}]} {
    %0 = tpu.iota {dimensions = array<i32: 0>} : vector<19x8xi32>
    %1 = tpu.iota {dimensions = array<i32: 1>} : vector<19x8xi32>
    %c2_i32 = arith.constant 2 : i32
    %2 = vector.broadcast %c2_i32 : i32 to vector<19x8xi32>
    %3 = arith.muli %2, %1 : vector<19x8xi32>
    %c2_i32_0 = arith.constant 2 : i32
    %4 = vector.broadcast %c2_i32_0 : i32 to vector<19x8xi32>
    %5 = arith.addi %3, %4 : vector<19x8xi32>
    %6 = arith.cmpi eq, %0, %5 : vector<19x8xi32>
    %7 = arith.extui %6 : vector<19x8xi1> to vector<19x8xi32>
    %8 = arith.sitofp %7 : vector<19x8xi32> to vector<19x8xf32>
    %9 = tpu.iota {dimensions = array<i32: 0>} : vector<8x19xi32>
    %10 = tpu.iota {dimensions = array<i32: 1>} : vector<8x19xi32>
    %c2_i32_1 = arith.constant 2 : i32
    %11 = vector.broadcast %c2_i32_1 : i32 to vector<8x19xi32>
    %12 = arith.muli %11, %9 : vector<8x19xi32>
    %c2_i32_2 = arith.constant 2 : i32
    %13 = vector.broadcast %c2_i32_2 : i32 to vector<8x19xi32>
    %14 = arith.addi %12, %13 : vector<8x19xi32>
    %15 = arith.cmpi eq, %10, %14 : vector<8x19xi32>
    %16 = arith.extui %15 : vector<8x19xi1> to vector<8x19xi32>
    %17 = arith.sitofp %16 : vector<8x19xi32> to vector<8x19xf32>
    %c0 = arith.constant 0 : index
    %c0_3 = arith.constant 0 : index
    %c0_4 = arith.constant 0 : index
    %c0_5 = arith.constant 0 : index
    %18 = vector.load %arg1[%c0, %c0_3, %c0_4, %c0_5] : memref<1x5x8x8xf32, #tpu.memory_space<vmem>>, vector<1x5x8x8xf32>
    %19 = vector.shape_cast %18 : vector<1x5x8x8xf32> to vector<5x8x8xf32>
    %c0_6 = arith.constant 0 : index
    %20 = memref.load %arg3[%c0_6] : memref<3xf32, #tpu.memory_space<smem>>
    %21 = vector.broadcast %20 : f32 to vector<17x17xf32>
    %c1 = arith.constant 1 : index
    %22 = memref.load %arg3[%c1] : memref<3xf32, #tpu.memory_space<smem>>
    %23 = vector.broadcast %22 : f32 to vector<17x17xf32>
    %c2 = arith.constant 2 : index
    %24 = memref.load %arg3[%c2] : memref<3xf32, #tpu.memory_space<smem>>
    %25 = vector.broadcast %24 : f32 to vector<17x17xf32>
    %26 = vector.extract_strided_slice %19 {offsets = [0, 0, 0], sizes = [1, 8, 8], strides = [1, 1, 1]} : vector<5x8x8xf32> to vector<1x8x8xf32>
    %27 = vector.shape_cast %26 : vector<1x8x8xf32> to vector<8x8xf32>
    %cst = arith.constant dense<0.000000e+00> : vector<8x19xf32>
    %28 = tpu.matmul %27, %17, %cst {dimension_numbers = #tpu.dot_dimension_numbers<[1], [0], [0], [1], [0, 0, 1, 1], [], []>} : vector<8x8xf32>, vector<8x19xf32>, vector<8x19xf32> -> vector<8x19xf32>
    %cst_7 = arith.constant dense<0.000000e+00> : vector<19x19xf32>
    %29 = tpu.matmul %8, %28, %cst_7 {dimension_numbers = #tpu.dot_dimension_numbers<[1], [0], [0], [1], [0, 0, 1, 1], [], []>} : vector<19x8xf32>, vector<8x19xf32>, vector<19x19xf32> -> vector<19x19xf32>
    %30 = vector.extract_strided_slice %29 {offsets = [0, 0], sizes = [17, 17], strides = [1, 1]} : vector<19x19xf32> to vector<17x17xf32>
    %c8 = arith.constant 8 : index
    %31 = memref.load %arg2[%c8] : memref<135xf32, #tpu.memory_space<smem>>
    %32 = vector.broadcast %31 : f32 to vector<17x17xf32>
    %33 = arith.mulf %32, %30 : vector<17x17xf32>
    %34 = arith.addf %21, %33 : vector<17x17xf32>
    %c17 = arith.constant 17 : index
    %35 = memref.load %arg2[%c17] : memref<135xf32, #tpu.memory_space<smem>>
    %36 = vector.broadcast %35 : f32 to vector<17x17xf32>
    %37 = arith.mulf %36, %30 : vector<17x17xf32>
    %38 = arith.addf %23, %37 : vector<17x17xf32>
    %c26 = arith.constant 26 : index
    %39 = memref.load %arg2[%c26] : memref<135xf32, #tpu.memory_space<smem>>
    %40 = vector.broadcast %39 : f32 to vector<17x17xf32>
    %41 = arith.mulf %40, %30 : vector<17x17xf32>
    %42 = arith.addf %25, %41 : vector<17x17xf32>
    %43 = vector.extract_strided_slice %29 {offsets = [0, 1], sizes = [17, 17], strides = [1, 1]} : vector<19x19xf32> to vector<17x17xf32>
    %c7 = arith.constant 7 : index
    %44 = memref.load %arg2[%c7] : memref<135xf32, #tpu.memory_space<smem>>
    %45 = vector.broadcast %44 : f32 to vector<17x17xf32>
    %46 = arith.mulf %45, %43 : vector<17x17xf32>
    %47 = arith.addf %34, %46 : vector<17x17xf32>
    %c16 = arith.constant 16 : index
    %48 = memref.load %arg2[%c16] : memref<135xf32, #tpu.memory_space<smem>>
    %49 = vector.broadcast %48 : f32 to vector<17x17xf32>
    %50 = arith.mulf %49, %43 : vector<17x17xf32>
    %51 = arith.addf %38, %50 : vector<17x17xf32>
    %c25 = arith.constant 25 : index
    %52 = memref.load %arg2[%c25] : memref<135xf32, #tpu.memory_space<smem>>
    %53 = vector.broadcast %52 : f32 to vector<17x17xf32>
    %54 = arith.mulf %53, %43 : vector<17x17xf32>
    %55 = arith.addf %42, %54 : vector<17x17xf32>
    %56 = vector.extract_strided_slice %29 {offsets = [0, 2], sizes = [17, 17], strides = [1, 1]} : vector<19x19xf32> to vector<17x17xf32>
    %c6 = arith.constant 6 : index
    %57 = memref.load %arg2[%c6] : memref<135xf32, #tpu.memory_space<smem>>
    %58 = vector.broadcast %57 : f32 to vector<17x17xf32>
    %59 = arith.mulf %58, %56 : vector<17x17xf32>
    %60 = arith.addf %47, %59 : vector<17x17xf32>
    %c15 = arith.constant 15 : index
    %61 = memref.load %arg2[%c15] : memref<135xf32, #tpu.memory_space<smem>>
    %62 = vector.broadcast %61 : f32 to vector<17x17xf32>
    %63 = arith.mulf %62, %56 : vector<17x17xf32>
    %64 = arith.addf %51, %63 : vector<17x17xf32>
    %c24 = arith.constant 24 : index
    %65 = memref.load %arg2[%c24] : memref<135xf32, #tpu.memory_space<smem>>
    %66 = vector.broadcast %65 : f32 to vector<17x17xf32>
    %67 = arith.mulf %66, %56 : vector<17x17xf32>
    %68 = arith.addf %55, %67 : vector<17x17xf32>
    %69 = vector.extract_strided_slice %29 {offsets = [1, 0], sizes = [17, 17], strides = [1, 1]} : vector<19x19xf32> to vector<17x17xf32>
    %c5 = arith.constant 5 : index
    %70 = memref.load %arg2[%c5] : memref<135xf32, #tpu.memory_space<smem>>
    %71 = vector.broadcast %70 : f32 to vector<17x17xf32>
    %72 = arith.mulf %71, %69 : vector<17x17xf32>
    %73 = arith.addf %60, %72 : vector<17x17xf32>
    %c14 = arith.constant 14 : index
    %74 = memref.load %arg2[%c14] : memref<135xf32, #tpu.memory_space<smem>>
    %75 = vector.broadcast %74 : f32 to vector<17x17xf32>
    %76 = arith.mulf %75, %69 : vector<17x17xf32>
    %77 = arith.addf %64, %76 : vector<17x17xf32>
    %c23 = arith.constant 23 : index
    %78 = memref.load %arg2[%c23] : memref<135xf32, #tpu.memory_space<smem>>
    %79 = vector.broadcast %78 : f32 to vector<17x17xf32>
    %80 = arith.mulf %79, %69 : vector<17x17xf32>
    %81 = arith.addf %68, %80 : vector<17x17xf32>
    %82 = vector.extract_strided_slice %29 {offsets = [1, 1], sizes = [17, 17], strides = [1, 1]} : vector<19x19xf32> to vector<17x17xf32>
    %c4 = arith.constant 4 : index
    %83 = memref.load %arg2[%c4] : memref<135xf32, #tpu.memory_space<smem>>
    %84 = vector.broadcast %83 : f32 to vector<17x17xf32>
    %85 = arith.mulf %84, %82 : vector<17x17xf32>
    %86 = arith.addf %73, %85 : vector<17x17xf32>
    %c13 = arith.constant 13 : index
    %87 = memref.load %arg2[%c13] : memref<135xf32, #tpu.memory_space<smem>>
    %88 = vector.broadcast %87 : f32 to vector<17x17xf32>
    %89 = arith.mulf %88, %82 : vector<17x17xf32>
    %90 = arith.addf %77, %89 : vector<17x17xf32>
    %c22 = arith.constant 22 : index
    %91 = memref.load %arg2[%c22] : memref<135xf32, #tpu.memory_space<smem>>
    %92 = vector.broadcast %91 : f32 to vector<17x17xf32>
    %93 = arith.mulf %92, %82 : vector<17x17xf32>
    %94 = arith.addf %81, %93 : vector<17x17xf32>
    %95 = vector.extract_strided_slice %29 {offsets = [1, 2], sizes = [17, 17], strides = [1, 1]} : vector<19x19xf32> to vector<17x17xf32>
    %c3 = arith.constant 3 : index
    %96 = memref.load %arg2[%c3] : memref<135xf32, #tpu.memory_space<smem>>
    %97 = vector.broadcast %96 : f32 to vector<17x17xf32>
    %98 = arith.mulf %97, %95 : vector<17x17xf32>
    %99 = arith.addf %86, %98 : vector<17x17xf32>
    %c12 = arith.constant 12 : index
    %100 = memref.load %arg2[%c12] : memref<135xf32, #tpu.memory_space<smem>>
    %101 = vector.broadcast %100 : f32 to vector<17x17xf32>
    %102 = arith.mulf %101, %95 : vector<17x17xf32>
    %103 = arith.addf %90, %102 : vector<17x17xf32>
    %c21 = arith.constant 21 : index
    %104 = memref.load %arg2[%c21] : memref<135xf32, #tpu.memory_space<smem>>
    %105 = vector.broadcast %104 : f32 to vector<17x17xf32>
    %106 = arith.mulf %105, %95 : vector<17x17xf32>
    %107 = arith.addf %94, %106 : vector<17x17xf32>
    %108 = vector.extract_strided_slice %29 {offsets = [2, 0], sizes = [17, 17], strides = [1, 1]} : vector<19x19xf32> to vector<17x17xf32>
    %c2_8 = arith.constant 2 : index
    %109 = memref.load %arg2[%c2_8] : memref<135xf32, #tpu.memory_space<smem>>
    %110 = vector.broadcast %109 : f32 to vector<17x17xf32>
    %111 = arith.mulf %110, %108 : vector<17x17xf32>
    %112 = arith.addf %99, %111 : vector<17x17xf32>
    %c11 = arith.constant 11 : index
    %113 = memref.load %arg2[%c11] : memref<135xf32, #tpu.memory_space<smem>>
    %114 = vector.broadcast %113 : f32 to vector<17x17xf32>
    %115 = arith.mulf %114, %108 : vector<17x17xf32>
    %116 = arith.addf %103, %115 : vector<17x17xf32>
    %c20 = arith.constant 20 : index
    %117 = memref.load %arg2[%c20] : memref<135xf32, #tpu.memory_space<smem>>
    %118 = vector.broadcast %117 : f32 to vector<17x17xf32>
    %119 = arith.mulf %118, %108 : vector<17x17xf32>
    %120 = arith.addf %107, %119 : vector<17x17xf32>
    %121 = vector.extract_strided_slice %29 {offsets = [2, 1], sizes = [17, 17], strides = [1, 1]} : vector<19x19xf32> to vector<17x17xf32>
    %c1_9 = arith.constant 1 : index
    %122 = memref.load %arg2[%c1_9] : memref<135xf32, #tpu.memory_space<smem>>
    %123 = vector.broadcast %122 : f32 to vector<17x17xf32>
    %124 = arith.mulf %123, %121 : vector<17x17xf32>
    %125 = arith.addf %112, %124 : vector<17x17xf32>
    %c10 = arith.constant 10 : index
    %126 = memref.load %arg2[%c10] : memref<135xf32, #tpu.memory_space<smem>>
    %127 = vector.broadcast %126 : f32 to vector<17x17xf32>
    %128 = arith.mulf %127, %121 : vector<17x17xf32>
    %129 = arith.addf %116, %128 : vector<17x17xf32>
    %c19 = arith.constant 19 : index
    %130 = memref.load %arg2[%c19] : memref<135xf32, #tpu.memory_space<smem>>
    %131 = vector.broadcast %130 : f32 to vector<17x17xf32>
    %132 = arith.mulf %131, %121 : vector<17x17xf32>
    %133 = arith.addf %120, %132 : vector<17x17xf32>
    %134 = vector.extract_strided_slice %29 {offsets = [2, 2], sizes = [17, 17], strides = [1, 1]} : vector<19x19xf32> to vector<17x17xf32>
    %c0_10 = arith.constant 0 : index
    %135 = memref.load %arg2[%c0_10] : memref<135xf32, #tpu.memory_space<smem>>
    %136 = vector.broadcast %135 : f32 to vector<17x17xf32>
    %137 = arith.mulf %136, %134 : vector<17x17xf32>
    %138 = arith.addf %125, %137 : vector<17x17xf32>
    %c9 = arith.constant 9 : index
    %139 = memref.load %arg2[%c9] : memref<135xf32, #tpu.memory_space<smem>>
    %140 = vector.broadcast %139 : f32 to vector<17x17xf32>
    %141 = arith.mulf %140, %134 : vector<17x17xf32>
    %142 = arith.addf %129, %141 : vector<17x17xf32>
    %c18 = arith.constant 18 : index
    %143 = memref.load %arg2[%c18] : memref<135xf32, #tpu.memory_space<smem>>
    %144 = vector.broadcast %143 : f32 to vector<17x17xf32>
    %145 = arith.mulf %144, %134 : vector<17x17xf32>
    %146 = arith.addf %133, %145 : vector<17x17xf32>
    %147 = vector.extract_strided_slice %19 {offsets = [1, 0, 0], sizes = [1, 8, 8], strides = [1, 1, 1]} : vector<5x8x8xf32> to vector<1x8x8xf32>
    %148 = vector.shape_cast %147 : vector<1x8x8xf32> to vector<8x8xf32>
    %cst_11 = arith.constant dense<0.000000e+00> : vector<8x19xf32>
    %149 = tpu.matmul %148, %17, %cst_11 {dimension_numbers = #tpu.dot_dimension_numbers<[1], [0], [0], [1], [0, 0, 1, 1], [], []>} : vector<8x8xf32>, vector<8x19xf32>, vector<8x19xf32> -> vector<8x19xf32>
    %cst_12 = arith.constant dense<0.000000e+00> : vector<19x19xf32>
    %150 = tpu.matmul %8, %149, %cst_12 {dimension_numbers = #tpu.dot_dimension_numbers<[1], [0], [0], [1], [0, 0, 1, 1], [], []>} : vector<19x8xf32>, vector<8x19xf32>, vector<19x19xf32> -> vector<19x19xf32>
    %151 = vector.extract_strided_slice %150 {offsets = [0, 0], sizes = [17, 17], strides = [1, 1]} : vector<19x19xf32> to vector<17x17xf32>
    %c35 = arith.constant 35 : index
    %152 = memref.load %arg2[%c35] : memref<135xf32, #tpu.memory_space<smem>>
    %153 = vector.broadcast %152 : f32 to vector<17x17xf32>
    %154 = arith.mulf %153, %151 : vector<17x17xf32>
    %155 = arith.addf %138, %154 : vector<17x17xf32>
    %c44 = arith.constant 44 : index
    %156 = memref.load %arg2[%c44] : memref<135xf32, #tpu.memory_space<smem>>
    %157 = vector.broadcast %156 : f32 to vector<17x17xf32>
    %158 = arith.mulf %157, %151 : vector<17x17xf32>
    %159 = arith.addf %142, %158 : vector<17x17xf32>
    %c53 = arith.constant 53 : index
    %160 = memref.load %arg2[%c53] : memref<135xf32, #tpu.memory_space<smem>>
    %161 = vector.broadcast %160 : f32 to vector<17x17xf32>
    %162 = arith.mulf %161, %151 : vector<17x17xf32>
    %163 = arith.addf %146, %162 : vector<17x17xf32>
    %164 = vector.extract_strided_slice %150 {offsets = [0, 1], sizes = [17, 17], strides = [1, 1]} : vector<19x19xf32> to vector<17x17xf32>
    %c34 = arith.constant 34 : index
    %165 = memref.load %arg2[%c34] : memref<135xf32, #tpu.memory_space<smem>>
    %166 = vector.broadcast %165 : f32 to vector<17x17xf32>
    %167 = arith.mulf %166, %164 : vector<17x17xf32>
    %168 = arith.addf %155, %167 : vector<17x17xf32>
    %c43 = arith.constant 43 : index
    %169 = memref.load %arg2[%c43] : memref<135xf32, #tpu.memory_space<smem>>
    %170 = vector.broadcast %169 : f32 to vector<17x17xf32>
    %171 = arith.mulf %170, %164 : vector<17x17xf32>
    %172 = arith.addf %159, %171 : vector<17x17xf32>
    %c52 = arith.constant 52 : index
    %173 = memref.load %arg2[%c52] : memref<135xf32, #tpu.memory_space<smem>>
    %174 = vector.broadcast %173 : f32 to vector<17x17xf32>
    %175 = arith.mulf %174, %164 : vector<17x17xf32>
    %176 = arith.addf %163, %175 : vector<17x17xf32>
    %177 = vector.extract_strided_slice %150 {offsets = [0, 2], sizes = [17, 17], strides = [1, 1]} : vector<19x19xf32> to vector<17x17xf32>
    %c33 = arith.constant 33 : index
    %178 = memref.load %arg2[%c33] : memref<135xf32, #tpu.memory_space<smem>>
    %179 = vector.broadcast %178 : f32 to vector<17x17xf32>
    %180 = arith.mulf %179, %177 : vector<17x17xf32>
    %181 = arith.addf %168, %180 : vector<17x17xf32>
    %c42 = arith.constant 42 : index
    %182 = memref.load %arg2[%c42] : memref<135xf32, #tpu.memory_space<smem>>
    %183 = vector.broadcast %182 : f32 to vector<17x17xf32>
    %184 = arith.mulf %183, %177 : vector<17x17xf32>
    %185 = arith.addf %172, %184 : vector<17x17xf32>
    %c51 = arith.constant 51 : index
    %186 = memref.load %arg2[%c51] : memref<135xf32, #tpu.memory_space<smem>>
    %187 = vector.broadcast %186 : f32 to vector<17x17xf32>
    %188 = arith.mulf %187, %177 : vector<17x17xf32>
    %189 = arith.addf %176, %188 : vector<17x17xf32>
    %190 = vector.extract_strided_slice %150 {offsets = [1, 0], sizes = [17, 17], strides = [1, 1]} : vector<19x19xf32> to vector<17x17xf32>
    %c32 = arith.constant 32 : index
    %191 = memref.load %arg2[%c32] : memref<135xf32, #tpu.memory_space<smem>>
    %192 = vector.broadcast %191 : f32 to vector<17x17xf32>
    %193 = arith.mulf %192, %190 : vector<17x17xf32>
    %194 = arith.addf %181, %193 : vector<17x17xf32>
    %c41 = arith.constant 41 : index
    %195 = memref.load %arg2[%c41] : memref<135xf32, #tpu.memory_space<smem>>
    %196 = vector.broadcast %195 : f32 to vector<17x17xf32>
    %197 = arith.mulf %196, %190 : vector<17x17xf32>
    %198 = arith.addf %185, %197 : vector<17x17xf32>
    %c50 = arith.constant 50 : index
    %199 = memref.load %arg2[%c50] : memref<135xf32, #tpu.memory_space<smem>>
    %200 = vector.broadcast %199 : f32 to vector<17x17xf32>
    %201 = arith.mulf %200, %190 : vector<17x17xf32>
    %202 = arith.addf %189, %201 : vector<17x17xf32>
    %203 = vector.extract_strided_slice %150 {offsets = [1, 1], sizes = [17, 17], strides = [1, 1]} : vector<19x19xf32> to vector<17x17xf32>
    %c31 = arith.constant 31 : index
    %204 = memref.load %arg2[%c31] : memref<135xf32, #tpu.memory_space<smem>>
    %205 = vector.broadcast %204 : f32 to vector<17x17xf32>
    %206 = arith.mulf %205, %203 : vector<17x17xf32>
    %207 = arith.addf %194, %206 : vector<17x17xf32>
    %c40 = arith.constant 40 : index
    %208 = memref.load %arg2[%c40] : memref<135xf32, #tpu.memory_space<smem>>
    %209 = vector.broadcast %208 : f32 to vector<17x17xf32>
    %210 = arith.mulf %209, %203 : vector<17x17xf32>
    %211 = arith.addf %198, %210 : vector<17x17xf32>
    %c49 = arith.constant 49 : index
    %212 = memref.load %arg2[%c49] : memref<135xf32, #tpu.memory_space<smem>>
    %213 = vector.broadcast %212 : f32 to vector<17x17xf32>
    %214 = arith.mulf %213, %203 : vector<17x17xf32>
    %215 = arith.addf %202, %214 : vector<17x17xf32>
    %216 = vector.extract_strided_slice %150 {offsets = [1, 2], sizes = [17, 17], strides = [1, 1]} : vector<19x19xf32> to vector<17x17xf32>
    %c30 = arith.constant 30 : index
    %217 = memref.load %arg2[%c30] : memref<135xf32, #tpu.memory_space<smem>>
    %218 = vector.broadcast %217 : f32 to vector<17x17xf32>
    %219 = arith.mulf %218, %216 : vector<17x17xf32>
    %220 = arith.addf %207, %219 : vector<17x17xf32>
    %c39 = arith.constant 39 : index
    %221 = memref.load %arg2[%c39] : memref<135xf32, #tpu.memory_space<smem>>
    %222 = vector.broadcast %221 : f32 to vector<17x17xf32>
    %223 = arith.mulf %222, %216 : vector<17x17xf32>
    %224 = arith.addf %211, %223 : vector<17x17xf32>
    %c48 = arith.constant 48 : index
    %225 = memref.load %arg2[%c48] : memref<135xf32, #tpu.memory_space<smem>>
    %226 = vector.broadcast %225 : f32 to vector<17x17xf32>
    %227 = arith.mulf %226, %216 : vector<17x17xf32>
    %228 = arith.addf %215, %227 : vector<17x17xf32>
    %229 = vector.extract_strided_slice %150 {offsets = [2, 0], sizes = [17, 17], strides = [1, 1]} : vector<19x19xf32> to vector<17x17xf32>
    %c29 = arith.constant 29 : index
    %230 = memref.load %arg2[%c29] : memref<135xf32, #tpu.memory_space<smem>>
    %231 = vector.broadcast %230 : f32 to vector<17x17xf32>
    %232 = arith.mulf %231, %229 : vector<17x17xf32>
    %233 = arith.addf %220, %232 : vector<17x17xf32>
    %c38 = arith.constant 38 : index
    %234 = memref.load %arg2[%c38] : memref<135xf32, #tpu.memory_space<smem>>
    %235 = vector.broadcast %234 : f32 to vector<17x17xf32>
    %236 = arith.mulf %235, %229 : vector<17x17xf32>
    %237 = arith.addf %224, %236 : vector<17x17xf32>
    %c47 = arith.constant 47 : index
    %238 = memref.load %arg2[%c47] : memref<135xf32, #tpu.memory_space<smem>>
    %239 = vector.broadcast %238 : f32 to vector<17x17xf32>
    %240 = arith.mulf %239, %229 : vector<17x17xf32>
    %241 = arith.addf %228, %240 : vector<17x17xf32>
    %242 = vector.extract_strided_slice %150 {offsets = [2, 1], sizes = [17, 17], strides = [1, 1]} : vector<19x19xf32> to vector<17x17xf32>
    %c28 = arith.constant 28 : index
    %243 = memref.load %arg2[%c28] : memref<135xf32, #tpu.memory_space<smem>>
    %244 = vector.broadcast %243 : f32 to vector<17x17xf32>
    %245 = arith.mulf %244, %242 : vector<17x17xf32>
    %246 = arith.addf %233, %245 : vector<17x17xf32>
    %c37 = arith.constant 37 : index
    %247 = memref.load %arg2[%c37] : memref<135xf32, #tpu.memory_space<smem>>
    %248 = vector.broadcast %247 : f32 to vector<17x17xf32>
    %249 = arith.mulf %248, %242 : vector<17x17xf32>
    %250 = arith.addf %237, %249 : vector<17x17xf32>
    %c46 = arith.constant 46 : index
    %251 = memref.load %arg2[%c46] : memref<135xf32, #tpu.memory_space<smem>>
    %252 = vector.broadcast %251 : f32 to vector<17x17xf32>
    %253 = arith.mulf %252, %242 : vector<17x17xf32>
    %254 = arith.addf %241, %253 : vector<17x17xf32>
    %255 = vector.extract_strided_slice %150 {offsets = [2, 2], sizes = [17, 17], strides = [1, 1]} : vector<19x19xf32> to vector<17x17xf32>
    %c27 = arith.constant 27 : index
    %256 = memref.load %arg2[%c27] : memref<135xf32, #tpu.memory_space<smem>>
    %257 = vector.broadcast %256 : f32 to vector<17x17xf32>
    %258 = arith.mulf %257, %255 : vector<17x17xf32>
    %259 = arith.addf %246, %258 : vector<17x17xf32>
    %c36 = arith.constant 36 : index
    %260 = memref.load %arg2[%c36] : memref<135xf32, #tpu.memory_space<smem>>
    %261 = vector.broadcast %260 : f32 to vector<17x17xf32>
    %262 = arith.mulf %261, %255 : vector<17x17xf32>
    %263 = arith.addf %250, %262 : vector<17x17xf32>
    %c45 = arith.constant 45 : index
    %264 = memref.load %arg2[%c45] : memref<135xf32, #tpu.memory_space<smem>>
    %265 = vector.broadcast %264 : f32 to vector<17x17xf32>
    %266 = arith.mulf %265, %255 : vector<17x17xf32>
    %267 = arith.addf %254, %266 : vector<17x17xf32>
    %268 = vector.extract_strided_slice %19 {offsets = [2, 0, 0], sizes = [1, 8, 8], strides = [1, 1, 1]} : vector<5x8x8xf32> to vector<1x8x8xf32>
    %269 = vector.shape_cast %268 : vector<1x8x8xf32> to vector<8x8xf32>
    %cst_13 = arith.constant dense<0.000000e+00> : vector<8x19xf32>
    %270 = tpu.matmul %269, %17, %cst_13 {dimension_numbers = #tpu.dot_dimension_numbers<[1], [0], [0], [1], [0, 0, 1, 1], [], []>} : vector<8x8xf32>, vector<8x19xf32>, vector<8x19xf32> -> vector<8x19xf32>
    %cst_14 = arith.constant dense<0.000000e+00> : vector<19x19xf32>
    %271 = tpu.matmul %8, %270, %cst_14 {dimension_numbers = #tpu.dot_dimension_numbers<[1], [0], [0], [1], [0, 0, 1, 1], [], []>} : vector<19x8xf32>, vector<8x19xf32>, vector<19x19xf32> -> vector<19x19xf32>
    %272 = vector.extract_strided_slice %271 {offsets = [0, 0], sizes = [17, 17], strides = [1, 1]} : vector<19x19xf32> to vector<17x17xf32>
    %c62 = arith.constant 62 : index
    %273 = memref.load %arg2[%c62] : memref<135xf32, #tpu.memory_space<smem>>
    %274 = vector.broadcast %273 : f32 to vector<17x17xf32>
    %275 = arith.mulf %274, %272 : vector<17x17xf32>
    %276 = arith.addf %259, %275 : vector<17x17xf32>
    %c71 = arith.constant 71 : index
    %277 = memref.load %arg2[%c71] : memref<135xf32, #tpu.memory_space<smem>>
    %278 = vector.broadcast %277 : f32 to vector<17x17xf32>
    %279 = arith.mulf %278, %272 : vector<17x17xf32>
    %280 = arith.addf %263, %279 : vector<17x17xf32>
    %c80 = arith.constant 80 : index
    %281 = memref.load %arg2[%c80] : memref<135xf32, #tpu.memory_space<smem>>
    %282 = vector.broadcast %281 : f32 to vector<17x17xf32>
    %283 = arith.mulf %282, %272 : vector<17x17xf32>
    %284 = arith.addf %267, %283 : vector<17x17xf32>
    %285 = vector.extract_strided_slice %271 {offsets = [0, 1], sizes = [17, 17], strides = [1, 1]} : vector<19x19xf32> to vector<17x17xf32>
    %c61 = arith.constant 61 : index
    %286 = memref.load %arg2[%c61] : memref<135xf32, #tpu.memory_space<smem>>
    %287 = vector.broadcast %286 : f32 to vector<17x17xf32>
    %288 = arith.mulf %287, %285 : vector<17x17xf32>
    %289 = arith.addf %276, %288 : vector<17x17xf32>
    %c70 = arith.constant 70 : index
    %290 = memref.load %arg2[%c70] : memref<135xf32, #tpu.memory_space<smem>>
    %291 = vector.broadcast %290 : f32 to vector<17x17xf32>
    %292 = arith.mulf %291, %285 : vector<17x17xf32>
    %293 = arith.addf %280, %292 : vector<17x17xf32>
    %c79 = arith.constant 79 : index
    %294 = memref.load %arg2[%c79] : memref<135xf32, #tpu.memory_space<smem>>
    %295 = vector.broadcast %294 : f32 to vector<17x17xf32>
    %296 = arith.mulf %295, %285 : vector<17x17xf32>
    %297 = arith.addf %284, %296 : vector<17x17xf32>
    %298 = vector.extract_strided_slice %271 {offsets = [0, 2], sizes = [17, 17], strides = [1, 1]} : vector<19x19xf32> to vector<17x17xf32>
    %c60 = arith.constant 60 : index
    %299 = memref.load %arg2[%c60] : memref<135xf32, #tpu.memory_space<smem>>
    %300 = vector.broadcast %299 : f32 to vector<17x17xf32>
    %301 = arith.mulf %300, %298 : vector<17x17xf32>
    %302 = arith.addf %289, %301 : vector<17x17xf32>
    %c69 = arith.constant 69 : index
    %303 = memref.load %arg2[%c69] : memref<135xf32, #tpu.memory_space<smem>>
    %304 = vector.broadcast %303 : f32 to vector<17x17xf32>
    %305 = arith.mulf %304, %298 : vector<17x17xf32>
    %306 = arith.addf %293, %305 : vector<17x17xf32>
    %c78 = arith.constant 78 : index
    %307 = memref.load %arg2[%c78] : memref<135xf32, #tpu.memory_space<smem>>
    %308 = vector.broadcast %307 : f32 to vector<17x17xf32>
    %309 = arith.mulf %308, %298 : vector<17x17xf32>
    %310 = arith.addf %297, %309 : vector<17x17xf32>
    %311 = vector.extract_strided_slice %271 {offsets = [1, 0], sizes = [17, 17], strides = [1, 1]} : vector<19x19xf32> to vector<17x17xf32>
    %c59 = arith.constant 59 : index
    %312 = memref.load %arg2[%c59] : memref<135xf32, #tpu.memory_space<smem>>
    %313 = vector.broadcast %312 : f32 to vector<17x17xf32>
    %314 = arith.mulf %313, %311 : vector<17x17xf32>
    %315 = arith.addf %302, %314 : vector<17x17xf32>
    %c68 = arith.constant 68 : index
    %316 = memref.load %arg2[%c68] : memref<135xf32, #tpu.memory_space<smem>>
    %317 = vector.broadcast %316 : f32 to vector<17x17xf32>
    %318 = arith.mulf %317, %311 : vector<17x17xf32>
    %319 = arith.addf %306, %318 : vector<17x17xf32>
    %c77 = arith.constant 77 : index
    %320 = memref.load %arg2[%c77] : memref<135xf32, #tpu.memory_space<smem>>
    %321 = vector.broadcast %320 : f32 to vector<17x17xf32>
    %322 = arith.mulf %321, %311 : vector<17x17xf32>
    %323 = arith.addf %310, %322 : vector<17x17xf32>
    %324 = vector.extract_strided_slice %271 {offsets = [1, 1], sizes = [17, 17], strides = [1, 1]} : vector<19x19xf32> to vector<17x17xf32>
    %c58 = arith.constant 58 : index
    %325 = memref.load %arg2[%c58] : memref<135xf32, #tpu.memory_space<smem>>
    %326 = vector.broadcast %325 : f32 to vector<17x17xf32>
    %327 = arith.mulf %326, %324 : vector<17x17xf32>
    %328 = arith.addf %315, %327 : vector<17x17xf32>
    %c67 = arith.constant 67 : index
    %329 = memref.load %arg2[%c67] : memref<135xf32, #tpu.memory_space<smem>>
    %330 = vector.broadcast %329 : f32 to vector<17x17xf32>
    %331 = arith.mulf %330, %324 : vector<17x17xf32>
    %332 = arith.addf %319, %331 : vector<17x17xf32>
    %c76 = arith.constant 76 : index
    %333 = memref.load %arg2[%c76] : memref<135xf32, #tpu.memory_space<smem>>
    %334 = vector.broadcast %333 : f32 to vector<17x17xf32>
    %335 = arith.mulf %334, %324 : vector<17x17xf32>
    %336 = arith.addf %323, %335 : vector<17x17xf32>
    %337 = vector.extract_strided_slice %271 {offsets = [1, 2], sizes = [17, 17], strides = [1, 1]} : vector<19x19xf32> to vector<17x17xf32>
    %c57 = arith.constant 57 : index
    %338 = memref.load %arg2[%c57] : memref<135xf32, #tpu.memory_space<smem>>
    %339 = vector.broadcast %338 : f32 to vector<17x17xf32>
    %340 = arith.mulf %339, %337 : vector<17x17xf32>
    %341 = arith.addf %328, %340 : vector<17x17xf32>
    %c66 = arith.constant 66 : index
    %342 = memref.load %arg2[%c66] : memref<135xf32, #tpu.memory_space<smem>>
    %343 = vector.broadcast %342 : f32 to vector<17x17xf32>
    %344 = arith.mulf %343, %337 : vector<17x17xf32>
    %345 = arith.addf %332, %344 : vector<17x17xf32>
    %c75 = arith.constant 75 : index
    %346 = memref.load %arg2[%c75] : memref<135xf32, #tpu.memory_space<smem>>
    %347 = vector.broadcast %346 : f32 to vector<17x17xf32>
    %348 = arith.mulf %347, %337 : vector<17x17xf32>
    %349 = arith.addf %336, %348 : vector<17x17xf32>
    %350 = vector.extract_strided_slice %271 {offsets = [2, 0], sizes = [17, 17], strides = [1, 1]} : vector<19x19xf32> to vector<17x17xf32>
    %c56 = arith.constant 56 : index
    %351 = memref.load %arg2[%c56] : memref<135xf32, #tpu.memory_space<smem>>
    %352 = vector.broadcast %351 : f32 to vector<17x17xf32>
    %353 = arith.mulf %352, %350 : vector<17x17xf32>
    %354 = arith.addf %341, %353 : vector<17x17xf32>
    %c65 = arith.constant 65 : index
    %355 = memref.load %arg2[%c65] : memref<135xf32, #tpu.memory_space<smem>>
    %356 = vector.broadcast %355 : f32 to vector<17x17xf32>
    %357 = arith.mulf %356, %350 : vector<17x17xf32>
    %358 = arith.addf %345, %357 : vector<17x17xf32>
    %c74 = arith.constant 74 : index
    %359 = memref.load %arg2[%c74] : memref<135xf32, #tpu.memory_space<smem>>
    %360 = vector.broadcast %359 : f32 to vector<17x17xf32>
    %361 = arith.mulf %360, %350 : vector<17x17xf32>
    %362 = arith.addf %349, %361 : vector<17x17xf32>
    %363 = vector.extract_strided_slice %271 {offsets = [2, 1], sizes = [17, 17], strides = [1, 1]} : vector<19x19xf32> to vector<17x17xf32>
    %c55 = arith.constant 55 : index
    %364 = memref.load %arg2[%c55] : memref<135xf32, #tpu.memory_space<smem>>
    %365 = vector.broadcast %364 : f32 to vector<17x17xf32>
    %366 = arith.mulf %365, %363 : vector<17x17xf32>
    %367 = arith.addf %354, %366 : vector<17x17xf32>
    %c64 = arith.constant 64 : index
    %368 = memref.load %arg2[%c64] : memref<135xf32, #tpu.memory_space<smem>>
    %369 = vector.broadcast %368 : f32 to vector<17x17xf32>
    %370 = arith.mulf %369, %363 : vector<17x17xf32>
    %371 = arith.addf %358, %370 : vector<17x17xf32>
    %c73 = arith.constant 73 : index
    %372 = memref.load %arg2[%c73] : memref<135xf32, #tpu.memory_space<smem>>
    %373 = vector.broadcast %372 : f32 to vector<17x17xf32>
    %374 = arith.mulf %373, %363 : vector<17x17xf32>
    %375 = arith.addf %362, %374 : vector<17x17xf32>
    %376 = vector.extract_strided_slice %271 {offsets = [2, 2], sizes = [17, 17], strides = [1, 1]} : vector<19x19xf32> to vector<17x17xf32>
    %c54 = arith.constant 54 : index
    %377 = memref.load %arg2[%c54] : memref<135xf32, #tpu.memory_space<smem>>
    %378 = vector.broadcast %377 : f32 to vector<17x17xf32>
    %379 = arith.mulf %378, %376 : vector<17x17xf32>
    %380 = arith.addf %367, %379 : vector<17x17xf32>
    %c63 = arith.constant 63 : index
    %381 = memref.load %arg2[%c63] : memref<135xf32, #tpu.memory_space<smem>>
    %382 = vector.broadcast %381 : f32 to vector<17x17xf32>
    %383 = arith.mulf %382, %376 : vector<17x17xf32>
    %384 = arith.addf %371, %383 : vector<17x17xf32>
    %c72 = arith.constant 72 : index
    %385 = memref.load %arg2[%c72] : memref<135xf32, #tpu.memory_space<smem>>
    %386 = vector.broadcast %385 : f32 to vector<17x17xf32>
    %387 = arith.mulf %386, %376 : vector<17x17xf32>
    %388 = arith.addf %375, %387 : vector<17x17xf32>
    %389 = vector.extract_strided_slice %19 {offsets = [3, 0, 0], sizes = [1, 8, 8], strides = [1, 1, 1]} : vector<5x8x8xf32> to vector<1x8x8xf32>
    %390 = vector.shape_cast %389 : vector<1x8x8xf32> to vector<8x8xf32>
    %cst_15 = arith.constant dense<0.000000e+00> : vector<8x19xf32>
    %391 = tpu.matmul %390, %17, %cst_15 {dimension_numbers = #tpu.dot_dimension_numbers<[1], [0], [0], [1], [0, 0, 1, 1], [], []>} : vector<8x8xf32>, vector<8x19xf32>, vector<8x19xf32> -> vector<8x19xf32>
    %cst_16 = arith.constant dense<0.000000e+00> : vector<19x19xf32>
    %392 = tpu.matmul %8, %391, %cst_16 {dimension_numbers = #tpu.dot_dimension_numbers<[1], [0], [0], [1], [0, 0, 1, 1], [], []>} : vector<19x8xf32>, vector<8x19xf32>, vector<19x19xf32> -> vector<19x19xf32>
    %393 = vector.extract_strided_slice %392 {offsets = [0, 0], sizes = [17, 17], strides = [1, 1]} : vector<19x19xf32> to vector<17x17xf32>
    %c89 = arith.constant 89 : index
    %394 = memref.load %arg2[%c89] : memref<135xf32, #tpu.memory_space<smem>>
    %395 = vector.broadcast %394 : f32 to vector<17x17xf32>
    %396 = arith.mulf %395, %393 : vector<17x17xf32>
    %397 = arith.addf %380, %396 : vector<17x17xf32>
    %c98 = arith.constant 98 : index
    %398 = memref.load %arg2[%c98] : memref<135xf32, #tpu.memory_space<smem>>
    %399 = vector.broadcast %398 : f32 to vector<17x17xf32>
    %400 = arith.mulf %399, %393 : vector<17x17xf32>
    %401 = arith.addf %384, %400 : vector<17x17xf32>
    %c107 = arith.constant 107 : index
    %402 = memref.load %arg2[%c107] : memref<135xf32, #tpu.memory_space<smem>>
    %403 = vector.broadcast %402 : f32 to vector<17x17xf32>
    %404 = arith.mulf %403, %393 : vector<17x17xf32>
    %405 = arith.addf %388, %404 : vector<17x17xf32>
    %406 = vector.extract_strided_slice %392 {offsets = [0, 1], sizes = [17, 17], strides = [1, 1]} : vector<19x19xf32> to vector<17x17xf32>
    %c88 = arith.constant 88 : index
    %407 = memref.load %arg2[%c88] : memref<135xf32, #tpu.memory_space<smem>>
    %408 = vector.broadcast %407 : f32 to vector<17x17xf32>
    %409 = arith.mulf %408, %406 : vector<17x17xf32>
    %410 = arith.addf %397, %409 : vector<17x17xf32>
    %c97 = arith.constant 97 : index
    %411 = memref.load %arg2[%c97] : memref<135xf32, #tpu.memory_space<smem>>
    %412 = vector.broadcast %411 : f32 to vector<17x17xf32>
    %413 = arith.mulf %412, %406 : vector<17x17xf32>
    %414 = arith.addf %401, %413 : vector<17x17xf32>
    %c106 = arith.constant 106 : index
    %415 = memref.load %arg2[%c106] : memref<135xf32, #tpu.memory_space<smem>>
    %416 = vector.broadcast %415 : f32 to vector<17x17xf32>
    %417 = arith.mulf %416, %406 : vector<17x17xf32>
    %418 = arith.addf %405, %417 : vector<17x17xf32>
    %419 = vector.extract_strided_slice %392 {offsets = [0, 2], sizes = [17, 17], strides = [1, 1]} : vector<19x19xf32> to vector<17x17xf32>
    %c87 = arith.constant 87 : index
    %420 = memref.load %arg2[%c87] : memref<135xf32, #tpu.memory_space<smem>>
    %421 = vector.broadcast %420 : f32 to vector<17x17xf32>
    %422 = arith.mulf %421, %419 : vector<17x17xf32>
    %423 = arith.addf %410, %422 : vector<17x17xf32>
    %c96 = arith.constant 96 : index
    %424 = memref.load %arg2[%c96] : memref<135xf32, #tpu.memory_space<smem>>
    %425 = vector.broadcast %424 : f32 to vector<17x17xf32>
    %426 = arith.mulf %425, %419 : vector<17x17xf32>
    %427 = arith.addf %414, %426 : vector<17x17xf32>
    %c105 = arith.constant 105 : index
    %428 = memref.load %arg2[%c105] : memref<135xf32, #tpu.memory_space<smem>>
    %429 = vector.broadcast %428 : f32 to vector<17x17xf32>
    %430 = arith.mulf %429, %419 : vector<17x17xf32>
    %431 = arith.addf %418, %430 : vector<17x17xf32>
    %432 = vector.extract_strided_slice %392 {offsets = [1, 0], sizes = [17, 17], strides = [1, 1]} : vector<19x19xf32> to vector<17x17xf32>
    %c86 = arith.constant 86 : index
    %433 = memref.load %arg2[%c86] : memref<135xf32, #tpu.memory_space<smem>>
    %434 = vector.broadcast %433 : f32 to vector<17x17xf32>
    %435 = arith.mulf %434, %432 : vector<17x17xf32>
    %436 = arith.addf %423, %435 : vector<17x17xf32>
    %c95 = arith.constant 95 : index
    %437 = memref.load %arg2[%c95] : memref<135xf32, #tpu.memory_space<smem>>
    %438 = vector.broadcast %437 : f32 to vector<17x17xf32>
    %439 = arith.mulf %438, %432 : vector<17x17xf32>
    %440 = arith.addf %427, %439 : vector<17x17xf32>
    %c104 = arith.constant 104 : index
    %441 = memref.load %arg2[%c104] : memref<135xf32, #tpu.memory_space<smem>>
    %442 = vector.broadcast %441 : f32 to vector<17x17xf32>
    %443 = arith.mulf %442, %432 : vector<17x17xf32>
    %444 = arith.addf %431, %443 : vector<17x17xf32>
    %445 = vector.extract_strided_slice %392 {offsets = [1, 1], sizes = [17, 17], strides = [1, 1]} : vector<19x19xf32> to vector<17x17xf32>
    %c85 = arith.constant 85 : index
    %446 = memref.load %arg2[%c85] : memref<135xf32, #tpu.memory_space<smem>>
    %447 = vector.broadcast %446 : f32 to vector<17x17xf32>
    %448 = arith.mulf %447, %445 : vector<17x17xf32>
    %449 = arith.addf %436, %448 : vector<17x17xf32>
    %c94 = arith.constant 94 : index
    %450 = memref.load %arg2[%c94] : memref<135xf32, #tpu.memory_space<smem>>
    %451 = vector.broadcast %450 : f32 to vector<17x17xf32>
    %452 = arith.mulf %451, %445 : vector<17x17xf32>
    %453 = arith.addf %440, %452 : vector<17x17xf32>
    %c103 = arith.constant 103 : index
    %454 = memref.load %arg2[%c103] : memref<135xf32, #tpu.memory_space<smem>>
    %455 = vector.broadcast %454 : f32 to vector<17x17xf32>
    %456 = arith.mulf %455, %445 : vector<17x17xf32>
    %457 = arith.addf %444, %456 : vector<17x17xf32>
    %458 = vector.extract_strided_slice %392 {offsets = [1, 2], sizes = [17, 17], strides = [1, 1]} : vector<19x19xf32> to vector<17x17xf32>
    %c84 = arith.constant 84 : index
    %459 = memref.load %arg2[%c84] : memref<135xf32, #tpu.memory_space<smem>>
    %460 = vector.broadcast %459 : f32 to vector<17x17xf32>
    %461 = arith.mulf %460, %458 : vector<17x17xf32>
    %462 = arith.addf %449, %461 : vector<17x17xf32>
    %c93 = arith.constant 93 : index
    %463 = memref.load %arg2[%c93] : memref<135xf32, #tpu.memory_space<smem>>
    %464 = vector.broadcast %463 : f32 to vector<17x17xf32>
    %465 = arith.mulf %464, %458 : vector<17x17xf32>
    %466 = arith.addf %453, %465 : vector<17x17xf32>
    %c102 = arith.constant 102 : index
    %467 = memref.load %arg2[%c102] : memref<135xf32, #tpu.memory_space<smem>>
    %468 = vector.broadcast %467 : f32 to vector<17x17xf32>
    %469 = arith.mulf %468, %458 : vector<17x17xf32>
    %470 = arith.addf %457, %469 : vector<17x17xf32>
    %471 = vector.extract_strided_slice %392 {offsets = [2, 0], sizes = [17, 17], strides = [1, 1]} : vector<19x19xf32> to vector<17x17xf32>
    %c83 = arith.constant 83 : index
    %472 = memref.load %arg2[%c83] : memref<135xf32, #tpu.memory_space<smem>>
    %473 = vector.broadcast %472 : f32 to vector<17x17xf32>
    %474 = arith.mulf %473, %471 : vector<17x17xf32>
    %475 = arith.addf %462, %474 : vector<17x17xf32>
    %c92 = arith.constant 92 : index
    %476 = memref.load %arg2[%c92] : memref<135xf32, #tpu.memory_space<smem>>
    %477 = vector.broadcast %476 : f32 to vector<17x17xf32>
    %478 = arith.mulf %477, %471 : vector<17x17xf32>
    %479 = arith.addf %466, %478 : vector<17x17xf32>
    %c101 = arith.constant 101 : index
    %480 = memref.load %arg2[%c101] : memref<135xf32, #tpu.memory_space<smem>>
    %481 = vector.broadcast %480 : f32 to vector<17x17xf32>
    %482 = arith.mulf %481, %471 : vector<17x17xf32>
    %483 = arith.addf %470, %482 : vector<17x17xf32>
    %484 = vector.extract_strided_slice %392 {offsets = [2, 1], sizes = [17, 17], strides = [1, 1]} : vector<19x19xf32> to vector<17x17xf32>
    %c82 = arith.constant 82 : index
    %485 = memref.load %arg2[%c82] : memref<135xf32, #tpu.memory_space<smem>>
    %486 = vector.broadcast %485 : f32 to vector<17x17xf32>
    %487 = arith.mulf %486, %484 : vector<17x17xf32>
    %488 = arith.addf %475, %487 : vector<17x17xf32>
    %c91 = arith.constant 91 : index
    %489 = memref.load %arg2[%c91] : memref<135xf32, #tpu.memory_space<smem>>
    %490 = vector.broadcast %489 : f32 to vector<17x17xf32>
    %491 = arith.mulf %490, %484 : vector<17x17xf32>
    %492 = arith.addf %479, %491 : vector<17x17xf32>
    %c100 = arith.constant 100 : index
    %493 = memref.load %arg2[%c100] : memref<135xf32, #tpu.memory_space<smem>>
    %494 = vector.broadcast %493 : f32 to vector<17x17xf32>
    %495 = arith.mulf %494, %484 : vector<17x17xf32>
    %496 = arith.addf %483, %495 : vector<17x17xf32>
    %497 = vector.extract_strided_slice %392 {offsets = [2, 2], sizes = [17, 17], strides = [1, 1]} : vector<19x19xf32> to vector<17x17xf32>
    %c81 = arith.constant 81 : index
    %498 = memref.load %arg2[%c81] : memref<135xf32, #tpu.memory_space<smem>>
    %499 = vector.broadcast %498 : f32 to vector<17x17xf32>
    %500 = arith.mulf %499, %497 : vector<17x17xf32>
    %501 = arith.addf %488, %500 : vector<17x17xf32>
    %c90 = arith.constant 90 : index
    %502 = memref.load %arg2[%c90] : memref<135xf32, #tpu.memory_space<smem>>
    %503 = vector.broadcast %502 : f32 to vector<17x17xf32>
    %504 = arith.mulf %503, %497 : vector<17x17xf32>
    %505 = arith.addf %492, %504 : vector<17x17xf32>
    %c99 = arith.constant 99 : index
    %506 = memref.load %arg2[%c99] : memref<135xf32, #tpu.memory_space<smem>>
    %507 = vector.broadcast %506 : f32 to vector<17x17xf32>
    %508 = arith.mulf %507, %497 : vector<17x17xf32>
    %509 = arith.addf %496, %508 : vector<17x17xf32>
    %510 = vector.extract_strided_slice %19 {offsets = [4, 0, 0], sizes = [1, 8, 8], strides = [1, 1, 1]} : vector<5x8x8xf32> to vector<1x8x8xf32>
    %511 = vector.shape_cast %510 : vector<1x8x8xf32> to vector<8x8xf32>
    %cst_17 = arith.constant dense<0.000000e+00> : vector<8x19xf32>
    %512 = tpu.matmul %511, %17, %cst_17 {dimension_numbers = #tpu.dot_dimension_numbers<[1], [0], [0], [1], [0, 0, 1, 1], [], []>} : vector<8x8xf32>, vector<8x19xf32>, vector<8x19xf32> -> vector<8x19xf32>
    %cst_18 = arith.constant dense<0.000000e+00> : vector<19x19xf32>
    %513 = tpu.matmul %8, %512, %cst_18 {dimension_numbers = #tpu.dot_dimension_numbers<[1], [0], [0], [1], [0, 0, 1, 1], [], []>} : vector<19x8xf32>, vector<8x19xf32>, vector<19x19xf32> -> vector<19x19xf32>
    %514 = vector.extract_strided_slice %513 {offsets = [0, 0], sizes = [17, 17], strides = [1, 1]} : vector<19x19xf32> to vector<17x17xf32>
    %c116 = arith.constant 116 : index
    %515 = memref.load %arg2[%c116] : memref<135xf32, #tpu.memory_space<smem>>
    %516 = vector.broadcast %515 : f32 to vector<17x17xf32>
    %517 = arith.mulf %516, %514 : vector<17x17xf32>
    %518 = arith.addf %501, %517 : vector<17x17xf32>
    %c125 = arith.constant 125 : index
    %519 = memref.load %arg2[%c125] : memref<135xf32, #tpu.memory_space<smem>>
    %520 = vector.broadcast %519 : f32 to vector<17x17xf32>
    %521 = arith.mulf %520, %514 : vector<17x17xf32>
    %522 = arith.addf %505, %521 : vector<17x17xf32>
    %c134 = arith.constant 134 : index
    %523 = memref.load %arg2[%c134] : memref<135xf32, #tpu.memory_space<smem>>
    %524 = vector.broadcast %523 : f32 to vector<17x17xf32>
    %525 = arith.mulf %524, %514 : vector<17x17xf32>
    %526 = arith.addf %509, %525 : vector<17x17xf32>
    %527 = vector.extract_strided_slice %513 {offsets = [0, 1], sizes = [17, 17], strides = [1, 1]} : vector<19x19xf32> to vector<17x17xf32>
    %c115 = arith.constant 115 : index
    %528 = memref.load %arg2[%c115] : memref<135xf32, #tpu.memory_space<smem>>
    %529 = vector.broadcast %528 : f32 to vector<17x17xf32>
    %530 = arith.mulf %529, %527 : vector<17x17xf32>
    %531 = arith.addf %518, %530 : vector<17x17xf32>
    %c124 = arith.constant 124 : index
    %532 = memref.load %arg2[%c124] : memref<135xf32, #tpu.memory_space<smem>>
    %533 = vector.broadcast %532 : f32 to vector<17x17xf32>
    %534 = arith.mulf %533, %527 : vector<17x17xf32>
    %535 = arith.addf %522, %534 : vector<17x17xf32>
    %c133 = arith.constant 133 : index
    %536 = memref.load %arg2[%c133] : memref<135xf32, #tpu.memory_space<smem>>
    %537 = vector.broadcast %536 : f32 to vector<17x17xf32>
    %538 = arith.mulf %537, %527 : vector<17x17xf32>
    %539 = arith.addf %526, %538 : vector<17x17xf32>
    %540 = vector.extract_strided_slice %513 {offsets = [0, 2], sizes = [17, 17], strides = [1, 1]} : vector<19x19xf32> to vector<17x17xf32>
    %c114 = arith.constant 114 : index
    %541 = memref.load %arg2[%c114] : memref<135xf32, #tpu.memory_space<smem>>
    %542 = vector.broadcast %541 : f32 to vector<17x17xf32>
    %543 = arith.mulf %542, %540 : vector<17x17xf32>
    %544 = arith.addf %531, %543 : vector<17x17xf32>
    %c123 = arith.constant 123 : index
    %545 = memref.load %arg2[%c123] : memref<135xf32, #tpu.memory_space<smem>>
    %546 = vector.broadcast %545 : f32 to vector<17x17xf32>
    %547 = arith.mulf %546, %540 : vector<17x17xf32>
    %548 = arith.addf %535, %547 : vector<17x17xf32>
    %c132 = arith.constant 132 : index
    %549 = memref.load %arg2[%c132] : memref<135xf32, #tpu.memory_space<smem>>
    %550 = vector.broadcast %549 : f32 to vector<17x17xf32>
    %551 = arith.mulf %550, %540 : vector<17x17xf32>
    %552 = arith.addf %539, %551 : vector<17x17xf32>
    %553 = vector.extract_strided_slice %513 {offsets = [1, 0], sizes = [17, 17], strides = [1, 1]} : vector<19x19xf32> to vector<17x17xf32>
    %c113 = arith.constant 113 : index
    %554 = memref.load %arg2[%c113] : memref<135xf32, #tpu.memory_space<smem>>
    %555 = vector.broadcast %554 : f32 to vector<17x17xf32>
    %556 = arith.mulf %555, %553 : vector<17x17xf32>
    %557 = arith.addf %544, %556 : vector<17x17xf32>
    %c122 = arith.constant 122 : index
    %558 = memref.load %arg2[%c122] : memref<135xf32, #tpu.memory_space<smem>>
    %559 = vector.broadcast %558 : f32 to vector<17x17xf32>
    %560 = arith.mulf %559, %553 : vector<17x17xf32>
    %561 = arith.addf %548, %560 : vector<17x17xf32>
    %c131 = arith.constant 131 : index
    %562 = memref.load %arg2[%c131] : memref<135xf32, #tpu.memory_space<smem>>
    %563 = vector.broadcast %562 : f32 to vector<17x17xf32>
    %564 = arith.mulf %563, %553 : vector<17x17xf32>
    %565 = arith.addf %552, %564 : vector<17x17xf32>
    %566 = vector.extract_strided_slice %513 {offsets = [1, 1], sizes = [17, 17], strides = [1, 1]} : vector<19x19xf32> to vector<17x17xf32>
    %c112 = arith.constant 112 : index
    %567 = memref.load %arg2[%c112] : memref<135xf32, #tpu.memory_space<smem>>
    %568 = vector.broadcast %567 : f32 to vector<17x17xf32>
    %569 = arith.mulf %568, %566 : vector<17x17xf32>
    %570 = arith.addf %557, %569 : vector<17x17xf32>
    %c121 = arith.constant 121 : index
    %571 = memref.load %arg2[%c121] : memref<135xf32, #tpu.memory_space<smem>>
    %572 = vector.broadcast %571 : f32 to vector<17x17xf32>
    %573 = arith.mulf %572, %566 : vector<17x17xf32>
    %574 = arith.addf %561, %573 : vector<17x17xf32>
    %c130 = arith.constant 130 : index
    %575 = memref.load %arg2[%c130] : memref<135xf32, #tpu.memory_space<smem>>
    %576 = vector.broadcast %575 : f32 to vector<17x17xf32>
    %577 = arith.mulf %576, %566 : vector<17x17xf32>
    %578 = arith.addf %565, %577 : vector<17x17xf32>
    %579 = vector.extract_strided_slice %513 {offsets = [1, 2], sizes = [17, 17], strides = [1, 1]} : vector<19x19xf32> to vector<17x17xf32>
    %c111 = arith.constant 111 : index
    %580 = memref.load %arg2[%c111] : memref<135xf32, #tpu.memory_space<smem>>
    %581 = vector.broadcast %580 : f32 to vector<17x17xf32>
    %582 = arith.mulf %581, %579 : vector<17x17xf32>
    %583 = arith.addf %570, %582 : vector<17x17xf32>
    %c120 = arith.constant 120 : index
    %584 = memref.load %arg2[%c120] : memref<135xf32, #tpu.memory_space<smem>>
    %585 = vector.broadcast %584 : f32 to vector<17x17xf32>
    %586 = arith.mulf %585, %579 : vector<17x17xf32>
    %587 = arith.addf %574, %586 : vector<17x17xf32>
    %c129 = arith.constant 129 : index
    %588 = memref.load %arg2[%c129] : memref<135xf32, #tpu.memory_space<smem>>
    %589 = vector.broadcast %588 : f32 to vector<17x17xf32>
    %590 = arith.mulf %589, %579 : vector<17x17xf32>
    %591 = arith.addf %578, %590 : vector<17x17xf32>
    %592 = vector.extract_strided_slice %513 {offsets = [2, 0], sizes = [17, 17], strides = [1, 1]} : vector<19x19xf32> to vector<17x17xf32>
    %c110 = arith.constant 110 : index
    %593 = memref.load %arg2[%c110] : memref<135xf32, #tpu.memory_space<smem>>
    %594 = vector.broadcast %593 : f32 to vector<17x17xf32>
    %595 = arith.mulf %594, %592 : vector<17x17xf32>
    %596 = arith.addf %583, %595 : vector<17x17xf32>
    %c119 = arith.constant 119 : index
    %597 = memref.load %arg2[%c119] : memref<135xf32, #tpu.memory_space<smem>>
    %598 = vector.broadcast %597 : f32 to vector<17x17xf32>
    %599 = arith.mulf %598, %592 : vector<17x17xf32>
    %600 = arith.addf %587, %599 : vector<17x17xf32>
    %c128 = arith.constant 128 : index
    %601 = memref.load %arg2[%c128] : memref<135xf32, #tpu.memory_space<smem>>
    %602 = vector.broadcast %601 : f32 to vector<17x17xf32>
    %603 = arith.mulf %602, %592 : vector<17x17xf32>
    %604 = arith.addf %591, %603 : vector<17x17xf32>
    %605 = vector.extract_strided_slice %513 {offsets = [2, 1], sizes = [17, 17], strides = [1, 1]} : vector<19x19xf32> to vector<17x17xf32>
    %c109 = arith.constant 109 : index
    %606 = memref.load %arg2[%c109] : memref<135xf32, #tpu.memory_space<smem>>
    %607 = vector.broadcast %606 : f32 to vector<17x17xf32>
    %608 = arith.mulf %607, %605 : vector<17x17xf32>
    %609 = arith.addf %596, %608 : vector<17x17xf32>
    %c118 = arith.constant 118 : index
    %610 = memref.load %arg2[%c118] : memref<135xf32, #tpu.memory_space<smem>>
    %611 = vector.broadcast %610 : f32 to vector<17x17xf32>
    %612 = arith.mulf %611, %605 : vector<17x17xf32>
    %613 = arith.addf %600, %612 : vector<17x17xf32>
    %c127 = arith.constant 127 : index
    %614 = memref.load %arg2[%c127] : memref<135xf32, #tpu.memory_space<smem>>
    %615 = vector.broadcast %614 : f32 to vector<17x17xf32>
    %616 = arith.mulf %615, %605 : vector<17x17xf32>
    %617 = arith.addf %604, %616 : vector<17x17xf32>
    %618 = vector.extract_strided_slice %513 {offsets = [2, 2], sizes = [17, 17], strides = [1, 1]} : vector<19x19xf32> to vector<17x17xf32>
    %c108 = arith.constant 108 : index
    %619 = memref.load %arg2[%c108] : memref<135xf32, #tpu.memory_space<smem>>
    %620 = vector.broadcast %619 : f32 to vector<17x17xf32>
    %621 = arith.mulf %620, %618 : vector<17x17xf32>
    %622 = arith.addf %609, %621 : vector<17x17xf32>
    %c117 = arith.constant 117 : index
    %623 = memref.load %arg2[%c117] : memref<135xf32, #tpu.memory_space<smem>>
    %624 = vector.broadcast %623 : f32 to vector<17x17xf32>
    %625 = arith.mulf %624, %618 : vector<17x17xf32>
    %626 = arith.addf %613, %625 : vector<17x17xf32>
    %c126 = arith.constant 126 : index
    %627 = memref.load %arg2[%c126] : memref<135xf32, #tpu.memory_space<smem>>
    %628 = vector.broadcast %627 : f32 to vector<17x17xf32>
    %629 = arith.mulf %628, %618 : vector<17x17xf32>
    %630 = arith.addf %617, %629 : vector<17x17xf32>
    %cst_19 = arith.constant 0.000000e+00 : f32
    %631 = vector.broadcast %cst_19 : f32 to vector<17x17xf32>
    %632 = arith.maximumf %622, %631 : vector<17x17xf32>
    %cst_20 = arith.constant 0.000000e+00 : f32
    %633 = vector.broadcast %cst_20 : f32 to vector<17x17xf32>
    %634 = arith.maximumf %626, %633 : vector<17x17xf32>
    %cst_21 = arith.constant 0.000000e+00 : f32
    %635 = vector.broadcast %cst_21 : f32 to vector<17x17xf32>
    %636 = arith.maximumf %630, %635 : vector<17x17xf32>
    %637 = tpu.concatenate %632, %634, %636 in 1 : vector<17x17xf32>, vector<17x17xf32>, vector<17x17xf32> -> vector<17x51xf32>
    %c0_22 = arith.constant 0 : index
    %c0_23 = arith.constant 0 : index
    %c0_24 = arith.constant 0 : index
    %638 = vector.load %arg4[%c0_22, %c0_23, %c0_24] : memref<1x17x51xf32, #tpu.memory_space<vmem>>, vector<1x17x51xf32>
    %639 = vector.shape_cast %638 : vector<1x17x51xf32> to vector<17x51xf32>
    %640 = vector.shape_cast %637 : vector<17x51xf32> to vector<1x17x51xf32>
    tpu.vector_store %arg4[%c0_22, %c0_23, %c0_24], %640 {strides = array<i32>} : memref<1x17x51xf32, #tpu.memory_space<vmem>>, vector<1x17x51xf32>,
    return
  }
  func.func @transform_0(%arg0: i32) -> (i32, i32, i32, i32) {
    %c0_i32 = arith.constant 0 : i32
    %c0_i32_0 = arith.constant 0 : i32
    %c0_i32_1 = arith.constant 0 : i32
    %c0_i32_2 = arith.constant 0 : i32
    return %arg0, %c0_i32, %c0_i32_0, %c0_i32_1 : i32, i32, i32, i32
  }
  func.func @transform_1(%arg0: i32) -> i32 {
    %c0_i32 = arith.constant 0 : i32
    %c0_i32_0 = arith.constant 0 : i32
    return %c0_i32 : i32
  }
  func.func @transform_2(%arg0: i32) -> i32 {
    %c0_i32 = arith.constant 0 : i32
    %c0_i32_0 = arith.constant 0 : i32
    return %c0_i32 : i32
  }
  func.func @transform_3(%arg0: i32) -> (i32, i32, i32) {
    %c0_i32 = arith.constant 0 : i32
    %c0_i32_0 = arith.constant 0 : i32
    %c0_i32_1 = arith.constant 0 : i32
    return %arg0, %c0_i32, %c0_i32_0 : i32, i32, i32
  }
}

</mosaic_0001>

<llo_original>
// kernel: tpu_custom_call.1
$region0: #{tpu_custom_call.1}
  #allocation0 [shape = 'u32[]', space=smem, size = 0x4, offset = 0x4, fixed_abs, tag = 'smem constant byte address 0x4 - core index']
  #allocation1 [shape = 'u32[144,128]{1,0:T(1,128)}', space=vmem, size = 0x12000, scoped, tag = 'internal scratch']
  %s0 = inlined_call_operand.hbm [shape: f32[2,5,8,8], index: 0, kind: input, shape index: {}]
  %s1 = inlined_call_operand.vmem [shape: f32[135], index: 1, kind: input, shape index: {}]
  %s2 = inlined_call_operand.vmem [shape: f32[3], index: 2, kind: input, shape index: {}]
  %s3 = inlined_call_operand.vmem [shape: f32[2,17,51], index: 3, kind: output, shape index: {}]
  %s4 = sld [smem:[#allocation0]]
  $region57: #{tpu_custom_call.1} parent=0
    _
  %s6 = ssub.s32 1, %s4
  %s7 = scalar_select 0, %s6, %s4
  $region1: #{tpu_custom_call.1} parent=0
    #allocation2 [shape = 'u8[40960]{0}', space=vmem, size = 0xa000, scoped, tag = 'input window, operand 0']
    #allocation3 [shape = 's32[2]{0}', space=sflag, size = 0x8, scoped, tag = 'scoped memory for tpu_custom_call.1']
    #allocation4 [shape = 's32[2]{0}', space=sflag, size = 0x8, scoped, tag = 'scoped memory for tpu_custom_call.1']
    #allocation5 [shape = 'u8[1024]{0}', space=smem, size = 0x400, scoped, tag = 'input window, operand 1, single buffered']
    #allocation6 [shape = 'u8[512]{0}', space=smem, size = 0x200, scoped, tag = 'input window, operand 2, single buffered']
    #allocation7 [shape = 's32[1]{0}', space=sflag, size = 0x4, scoped, tag = 'scoped memory for tpu_custom_call.1']
    %8 = vsyncpa [#allocation3], 0
    %s9 = scalar_lea.sflag [#allocation3], 1
    %10 = vsyncpa %s9, 0
    %11 = vsyncpa [#allocation4], 0
    %12 = vsyncpa [#allocation7], 0
    loop: start=0, step=1, limit=4
    $region2: #{tpu_custom_call.1} parent=1 // loop_pre_header
      _
    $region3: #{tpu_custom_call.1} parent=1 // loop_header
      %s14 = sphi 0, %s18
      %p15 = scmp.ge.s32.totalorder %s14, 4
      %s24 = sphi 0, %s26
      %s27 = sphi 0, %s24
      %s28 = sphi 0, %s27
      %s44 = sphi 0, %s28
      %s48 = sphi 0, %s48
      %s50 = sphi 0, %s48
      %s51 = sphi 0, %s50
      %s65 = sphi 0, %s51
      %s69 = sphi 0, %s69
      %s71 = sphi 0, %s69
      %s72 = sphi 0, %s71
      %s86 = sphi 0, %s72
      %s92 = sphi 0, %s94
      %s95 = sphi 0, %s92
      %s96 = sphi 0, %s95
      %s112 = sphi 0, %s96
    $region4: #{tpu_custom_call.1} parent=1 // loop_header_branch
      %17 = sbr.rel (%p15) target = $region8
    $region5: #{tpu_custom_call.1} parent=1 // loop_body
      %s19 = ssub.s32 %s14, 1
      %s20 = ssub.s32 %s14, 2
      %s21 = sadd.s32 %s14, 1
      %s22 = ssub.s32 %s14, %s21
      %p23 = scmp.eq.s32.totalorder %s22, 0
      %s25 = sadd.s32 %s24, 1
      %s26 = scalar_select %p23, %s24, %s25
      %p29 = pneg %p23
      %p30 = scmp.eq.s32.totalorder %s14, 1
      %p31 = por %p29, %p30
      %p32 = scmp.ne.s32.totalorder %s24, %s27
      %p33 = scmp.eq.s32.totalorder %s14, 0
      %p34 = por %p32, %p33
      %p35 = scmp.ne.s32.totalorder %s24, %s27
      %p36 = scmp.eq.s32.totalorder %s19, 1
      %p37 = por %p35, %p36
      %p38 = scmp.ne.s32.totalorder %s27, %s28
      %p39 = scmp.eq.s32.totalorder %s19, 0
      %p40 = por %p38, %p39
      %p41 = scmp.ne.s32.totalorder %s27, %s28
      %p42 = scmp.eq.s32.totalorder %s20, 1
      %p43 = por %p41, %p42
      %p45 = scmp.ne.s32.totalorder %s28, %s44
      %p46 = scmp.eq.s32.totalorder %s20, 0
      %p47 = por %p45, %p46
      %s49 = sadd.s32 %s48, 1
      %p52 = scmp.eq.s32.totalorder %s14, 1
      %p53 = scmp.ne.s32.totalorder %s48, %s50
      %p54 = scmp.eq.s32.totalorder %s14, 0
      %p55 = por %p53, %p54
      %p56 = scmp.ne.s32.totalorder %s48, %s50
      %p57 = scmp.eq.s32.totalorder %s19, 1
      %p58 = por %p56, %p57
      %p59 = scmp.ne.s32.totalorder %s50, %s51
      %p60 = scmp.eq.s32.totalorder %s19, 0
      %p61 = por %p59, %p60
      %p62 = scmp.ne.s32.totalorder %s50, %s51
      %p63 = scmp.eq.s32.totalorder %s20, 1
      %p64 = por %p62, %p63
      %p66 = scmp.ne.s32.totalorder %s51, %s65
      %p67 = scmp.eq.s32.totalorder %s20, 0
      %p68 = por %p66, %p67
      %s70 = sadd.s32 %s69, 1
      %p73 = scmp.eq.s32.totalorder %s14, 1
      %p74 = scmp.ne.s32.totalorder %s69, %s71
      %p75 = scmp.eq.s32.totalorder %s14, 0
      %p76 = por %p74, %p75
      %p77 = scmp.ne.s32.totalorder %s69, %s71
      %p78 = scmp.eq.s32.totalorder %s19, 1
      %p79 = por %p77, %p78
      %p80 = scmp.ne.s32.totalorder %s71, %s72
      %p81 = scmp.eq.s32.totalorder %s19, 0
      %p82 = por %p80, %p81
      %p83 = scmp.ne.s32.totalorder %s71, %s72
      %p84 = scmp.eq.s32.totalorder %s20, 1
      %p85 = por %p83, %p84
      %p87 = scmp.ne.s32.totalorder %s72, %s86
      %p88 = scmp.eq.s32.totalorder %s20, 0
      %p89 = por %p87, %p88
      %s90 = ssub.s32 %s14, %s21
      %p91 = scmp.eq.s32.totalorder %s90, 0
      %s93 = sadd.s32 %s92, 1
      %s94 = scalar_select %p91, %s92, %s93
      %p97 = pneg %p91
      %p98 = scmp.eq.s32.totalorder %s14, 1
      %p99 = por %p97, %p98
      %p100 = scmp.ne.s32.totalorder %s92, %s95
      %p101 = scmp.eq.s32.totalorder %s14, 0
      %p102 = por %p100, %p101
      %p103 = scmp.ne.s32.totalorder %s92, %s95
      %p104 = scmp.eq.s32.totalorder %s19, 1
      %p105 = por %p103, %p104
      %p106 = scmp.ne.s32.totalorder %s95, %s96
      %p107 = scmp.eq.s32.totalorder %s19, 0
      %p108 = por %p106, %p107
      %p109 = scmp.ne.s32.totalorder %s95, %s96
      %p110 = scmp.eq.s32.totalorder %s20, 1
      %p111 = por %p109, %p110
      %p113 = scmp.ne.s32.totalorder %s96, %s112
      %p114 = scmp.eq.s32.totalorder %s20, 0
      %p115 = por %p113, %p114
      %p116 = scmp.le.s32.totalorder 1, %s14
      %p117 = scmp.lt.s32.totalorder %s14, 3
      %p118 = pnand %p116, %p117
      %p119 = pneg %p118
      // Predicated region
      $region9: #{tpu_custom_call.1} parent=5 // pred_check
        _
      $region10: #{tpu_custom_call.1} parent=5 // pred_check_branch
        %121 = sbr.rel (%p118) target = $region12
      $region11: #{tpu_custom_call.1} parent=5 // pred_region
        %s122 = ssub.s32 %s14, 1
        // Predicated region
        $region13: #{tpu_custom_call.1} parent=11 // pred_check
          %p123 = pneg %p61
        $region14: #{tpu_custom_call.1} parent=11 // pred_check_branch
          %125 = sbr.rel (%p123) target = $region16
        $region15: #{tpu_custom_call.1} parent=11 // pred_region
          %s127 = ssub.s32 32, 32
          %128 = vsyncadd [#allocation4], %s127
          %s130 = sshll.u32 %s1, 4
          %s131 = int_to_ptr.vmem [resolvable:$true] %s130
          %133 = dma.vmem_to_smem %s131, 32, [#allocation5], [#allocation4]
        $region16: #{tpu_custom_call.1} parent=11 // pred_fallthru
          _
        // Predicated region
        $region17: #{tpu_custom_call.1} parent=11 // pred_check
          %p134 = pneg %p82
        $region18: #{tpu_custom_call.1} parent=11 // pred_check_branch
          %136 = sbr.rel (%p134) target = $region20
        $region19: #{tpu_custom_call.1} parent=11 // pred_region
          %s138 = ssub.s32 16, 16
          %139 = vsyncadd [#allocation7], %s138
          %s141 = sshll.u32 %s2, 4
          %s142 = int_to_ptr.vmem [resolvable:$true] %s141
          %144 = dma.vmem_to_smem %s142, 16, [#allocation6], [#allocation7]
        $region20: #{tpu_custom_call.1} parent=11 // pred_fallthru
          _
      $region12: #{tpu_custom_call.1} parent=5 // pred_fallthru
        _
      %p145 = scmp.lt.s32.totalorder %s14, 2
      // Predicated region
      $region21: #{tpu_custom_call.1} parent=5 // pred_check
        %p146 = pneg %p145
      $region22: #{tpu_custom_call.1} parent=5 // pred_check_branch
        %148 = sbr.rel (%p146) target = $region24
      $region23: #{tpu_custom_call.1} parent=5 // pred_region
        // Predicated region
        $region25: #{tpu_custom_call.1} parent=23 // pred_check
          %p149 = pneg %p34
        $region26: #{tpu_custom_call.1} parent=23 // pred_check_branch
          %151 = sbr.rel (%p149) target = $region28
        $region27: #{tpu_custom_call.1} parent=23 // pred_region
          %s152 = sand.u32 %s24, 1
          %s153 = scalar_lea.sflag [#allocation3], %s152
          %s154 = sand.u32 %s24, 1
          %s155 = smul.addr %s154, 40
          %s156 = scalar_lea.vmem [#allocation2], %s155
          %s158 = ssub.s32 640, 640
          %159 = vsyncadd %s153, %s158
          %s160 = smul.addr %s14, 5
          %s161 = smul.addr %s160, 128
          %s162 = scalar_lea.hbm %s0, %s161
          %s163 = sshll.u32 %s156, 4
          %s164 = int_to_ptr.vmem [resolvable:$true] %s163
          %169 = dma.hbm_to_vmem [thread:$0]  %s162, 640, %s164, %s153, 128, 128, 8
        $region28: #{tpu_custom_call.1} parent=23 // pred_fallthru
          _
      $region24: #{tpu_custom_call.1} parent=5 // pred_fallthru
        _
      %p170 = scmp.le.s32.totalorder 1, %s14
      %p171 = scmp.lt.s32.totalorder %s14, 3
      %p172 = pnand %p170, %p171
      %p173 = pneg %p172
      // Predicated region
      $region29: #{tpu_custom_call.1} parent=5 // pred_check
        _
      $region30: #{tpu_custom_call.1} parent=5 // pred_check_branch
        %175 = sbr.rel (%p172) target = $region32
      $region31: #{tpu_custom_call.1} parent=5 // pred_region
        %s176 = ssub.s32 %s14, 1
        %s177 = sand.u32 %s27, 1
        %s178 = scalar_lea.sflag [#allocation3], %s177
        %s179 = sand.u32 %s27, 1
        %s180 = smul.addr %s179, 40
        %s181 = scalar_lea.vmem [#allocation2], %s180
        // Predicated region
        $region33: #{tpu_custom_call.1} parent=31 // pred_check
          %p182 = pneg %p40
        $region34: #{tpu_custom_call.1} parent=31 // pred_check_branch
          %184 = sbr.rel (%p182) target = $region36
        $region35: #{tpu_custom_call.1} parent=31 // pred_region
          %185 = dma.done %s178, 640
        $region36: #{tpu_custom_call.1} parent=31 // pred_fallthru
          _
        // Predicated region
        $region37: #{tpu_custom_call.1} parent=31 // pred_check
          %p186 = pneg %p61
        $region38: #{tpu_custom_call.1} parent=31 // pred_check_branch
          %188 = sbr.rel (%p186) target = $region40
        $region39: #{tpu_custom_call.1} parent=31 // pred_region
          %189 = dma.done [#allocation4], 32
        $region40: #{tpu_custom_call.1} parent=31 // pred_fallthru
          _
        // Predicated region
        $region41: #{tpu_custom_call.1} parent=31 // pred_check
          %p190 = pneg %p82
        $region42: #{tpu_custom_call.1} parent=31 // pred_check_branch
          %192 = sbr.rel (%p190) target = $region44
        $region43: #{tpu_custom_call.1} parent=31 // pred_region
          %193 = dma.done [#allocation7], 16
        $region44: #{tpu_custom_call.1} parent=31 // pred_fallthru
          _
        %194 = sfence
        %s195 = sand.u32 %s27, 1
        %s196 = scalar_lea.sflag [#allocation3], %s195
        %s197 = sand.u32 %s27, 1
        %s198 = smul.addr %s197, 40
        %s199 = scalar_lea.vmem [#allocation2], %s198
        %p200 = pneg %p40
        %p201 = pneg %p37
        %p202 = pneg %p61
        %p203 = pneg %p58
        %p204 = pneg %p82
        %p205 = pneg %p79
        %p206 = pneg %p108
        %p207 = pneg %p105
        %p208 = scmp.lt.s32.totalorder %s19, 1
        %s209 = scalar_select %p208, %s19, 1
        %s210 = smul.addr %s209, 3
        %s211 = smul.addr %s210, 8
        %s212 = scalar_lea.vmem %s3, %s211
        %p213 = scmp.lt.s32.totalorder %s19, 1
        %s214 = scalar_select %p213, %s19, 1
        %s215 = smul.addr %s214, 3
        %s216 = smul.addr %s215, 8
        %s217 = scalar_lea.vmem %s3, %s216
        %v218 = vlaneseq
        %v219 = vshrl.u32 %v218, 7
        %v220 = vadd.s32 %v219, 8
        %v221 = vadd.s32 %v219, 16
        %v222 = vlaneseq
        %v223 = vand.u32 %v222, 127
        %v224 = vmul.u32 %v223, 2
        %v225 = vadd.s32 %v224, 2
        %vm226 = vcmp.eq.s32.totalorder %v219, %v225
        %vm227 = vcmp.eq.s32.totalorder %v220, %v225
        %vm228 = vcmp.eq.s32.totalorder %v221, %v225
        %v229 = vsel %vm226, 1, 0
        %v230 = vsel %vm227, 1, 0
        %v231 = vsel %vm228, 1, 0
        %v232 = vcvt.s32.f32 %v229
        %v233 = vcvt.s32.f32 %v230
        %v234 = vcvt.s32.f32 %v231
        %v235 = vmul.u32 %v219, 2
        %v236 = vadd.s32 %v235, 2
        %vm237 = vcmp.eq.s32.totalorder %v223, %v236
        %v238 = vsel %vm237, 1, 0
        %v239 = vcvt.s32.f32 %v238
        %v240 = vld [vmem:[%s181] sm:$0xff]
        %v241 = vld [vmem:[%s181 + $0x8] sm:$0xff]
        %v242 = vld [vmem:[%s181 + $0x10] sm:$0xff]
        %v243 = vld [vmem:[%s181 + $0x18] sm:$0xff]
        %v244 = vld [vmem:[%s181 + $0x20] sm:$0xff]
        %s245 = sld [smem:[#allocation6]]
        %v246 = vstv %s245
        %s247 = sld [smem:[#allocation6 + $0x1]]
        %v248 = vstv %s247
        %s249 = sld [smem:[#allocation6 + $0x2]]
        %v250 = vstv %s249
        %vm251 = vcmask 64512
        %v253 = vsel %vm251, %v240, 0
        %255 = vmatprep.subr.mxu0 0.0
        %256 = vmatpush1.msra.mxu0 %v239
        %257 = vmatprep.subr.mxu0 0.0
        %258 = vmatpush1.msra.mxu0 0.0
        %259 = vmatprep.subr.mxu0 0.0
        %260 = vmatpush1.msra.mxu0 0.0
        %261 = vmatprep.subr.mxu0 0.0
        %262 = vmatpush1.msra.mxu0 0.0
        %263 = vmatprep.subr.mxu0 0.0
        %264 = vmatpush1.msra.mxu0 0.0
        %265 = vmatprep.subr.mxu0 0.0
        %266 = vmatpush1.msra.mxu0 0.0
        %267 = vmatprep.subr.mxu0 0.0
        %268 = vmatpush1.msra.mxu0 0.0
        %269 = vmatprep.subr.mxu0 0.0
        %270 = vmatpush1.msra.mxu0 0.0
        %271 = vmatprep.subr.mxu0 0.0
        %272 = vmatpush1.msra.mxu0 0.0
        %273 = vmatprep.subr.mxu0 0.0
        %274 = vmatpush1.msra.mxu0 0.0
        %275 = vmatprep.subr.mxu0 0.0
        %276 = vmatpush1.msra.mxu0 0.0
        %277 = vmatprep.subr.mxu0 0.0
        %278 = vmatpush1.msra.mxu0 0.0
        %279 = vmatprep.subr.mxu0 0.0
        %280 = vmatpush1.msra.mxu0 0.0
        %281 = vmatprep.subr.mxu0 0.0
        %282 = vmatpush1.msra.mxu0 0.0
        %283 = vmatprep.subr.mxu0 0.0
        %284 = vmatpush1.msra.mxu0 0.0
        %285 = vmatprep.subr.mxu0 0.0
        %286 = vmatpush1.msra.mxu0 0.0
        %287 = vmatprep.subr.mxu0 0.0
        %288 = vmatpush1.msra.mxu0 0.0
        %289 = vmatprep.subr.mxu0 0.0
        %290 = vmatpush1.msra.mxu0 0.0
        %291 = vmatprep.subr.mxu0 0.0
        %292 = vmatpush1.msra.mxu0 0.0
        %293 = vmatprep.subr.mxu0 0.0
        %294 = vmatpush1.msra.mxu0 0.0
        %295 = vmatprep.subr.mxu0 0.0
        %296 = vmatpush1.msra.mxu0 0.0
        %297 = vmatprep.subr.mxu0 0.0
        %298 = vmatpush1.msra.mxu0 0.0
        %299 = vmatprep.subr.mxu0 0.0
        %300 = vmatpush1.msra.mxu0 0.0
        %301 = vmatprep.subr.mxu0 0.0
        %302 = vmatpush1.msra.mxu0 0.0
        %303 = vmatprep.subr.mxu0 0.0
        %304 = vmatpush1.msra.mxu0 0.0
        %305 = vmatprep.subr.mxu0 0.0
        %306 = vmatpush1.msra.mxu0 0.0
        %307 = vmatprep.subr.mxu0 0.0
        %308 = vmatpush1.msra.mxu0 0.0
        %309 = vmatprep.subr.mxu0 0.0
        %310 = vmatpush1.msra.mxu0 0.0
        %311 = vmatprep.subr.mxu0 0.0
        %312 = vmatpush1.msra.mxu0 0.0
        %313 = vmatprep.subr.mxu0 0.0
        %314 = vmatpush1.msra.mxu0 0.0
        %315 = vmatprep.subr.mxu0 0.0
        %316 = vmatpush1.msra.mxu0 0.0
        %317 = vmatprep.subr.mxu0 0.0
        %318 = vmatpush1.msra.mxu0 0.0
        %319 = vmatprep.mubr.f32.mxu0 0.0
        %320 = vmatmul.mubr.f32.gmra.mrb[0].mxu0 %v253
        %v321 = vpop.f32.mrb[0].mxu0
        %v322 = vadd.f32 0.0, %v321
        %v323 = vpop.f32.mrb[0].mxu0
        %324 = vdwg.mxu0
        %v326 = vsel %vm251, %v232, 0
        %v329 = vsel %vm251, %v233, 0
        %v332 = vsel %vm251, %v234, 0
        %334 = vmatprep.subr.mxu0 0.0
        %335 = vmatpush1.msra.mxu0 %v322
        %336 = vmatprep.subr.mxu0 0.0
        %337 = vmatpush1.msra.mxu0 0.0
        %338 = vmatprep.subr.mxu0 0.0
        %339 = vmatpush1.msra.mxu0 0.0
        %340 = vmatprep.subr.mxu0 0.0
        %341 = vmatpush1.msra.mxu0 0.0
        %342 = vmatprep.subr.mxu0 0.0
        %343 = vmatpush1.msra.mxu0 0.0
        %344 = vmatprep.subr.mxu0 0.0
        %345 = vmatpush1.msra.mxu0 0.0
        %346 = vmatprep.subr.mxu0 0.0
        %347 = vmatpush1.msra.mxu0 0.0
        %348 = vmatprep.subr.mxu0 0.0
        %349 = vmatpush1.msra.mxu0 0.0
        %350 = vmatprep.subr.mxu0 0.0
        %351 = vmatpush1.msra.mxu0 0.0
        %352 = vmatprep.subr.mxu0 0.0
        %353 = vmatpush1.msra.mxu0 0.0
        %354 = vmatprep.subr.mxu0 0.0
        %355 = vmatpush1.msra.mxu0 0.0
        %356 = vmatprep.subr.mxu0 0.0
        %357 = vmatpush1.msra.mxu0 0.0
        %358 = vmatprep.subr.mxu0 0.0
        %359 = vmatpush1.msra.mxu0 0.0
        %360 = vmatprep.subr.mxu0 0.0
        %361 = vmatpush1.msra.mxu0 0.0
        %362 = vmatprep.subr.mxu0 0.0
        %363 = vmatpush1.msra.mxu0 0.0
        %364 = vmatprep.subr.mxu0 0.0
        %365 = vmatpush1.msra.mxu0 0.0
        %366 = vmatprep.subr.mxu0 0.0
        %367 = vmatpush1.msra.mxu0 0.0
        %368 = vmatprep.subr.mxu0 0.0
        %369 = vmatpush1.msra.mxu0 0.0
        %370 = vmatprep.subr.mxu0 0.0
        %371 = vmatpush1.msra.mxu0 0.0
        %372 = vmatprep.subr.mxu0 0.0
        %373 = vmatpush1.msra.mxu0 0.0
        %374 = vmatprep.subr.mxu0 0.0
        %375 = vmatpush1.msra.mxu0 0.0
        %376 = vmatprep.subr.mxu0 0.0
        %377 = vmatpush1.msra.mxu0 0.0
        %378 = vmatprep.subr.mxu0 0.0
        %379 = vmatpush1.msra.mxu0 0.0
        %380 = vmatprep.subr.mxu0 0.0
        %381 = vmatpush1.msra.mxu0 0.0
        %382 = vmatprep.subr.mxu0 0.0
        %383 = vmatpush1.msra.mxu0 0.0
        %384 = vmatprep.subr.mxu0 0.0
        %385 = vmatpush1.msra.mxu0 0.0
        %386 = vmatprep.subr.mxu0 0.0
        %387 = vmatpush1.msra.mxu0 0.0
        %388 = vmatprep.subr.mxu0 0.0
        %389 = vmatpush1.msra.mxu0 0.0
        %390 = vmatprep.subr.mxu0 0.0
        %391 = vmatpush1.msra.mxu0 0.0
        %392 = vmatprep.subr.mxu0 0.0
        %393 = vmatpush1.msra.mxu0 0.0
        %394 = vmatprep.subr.mxu0 0.0
        %395 = vmatpush1.msra.mxu0 0.0
        %396 = vmatprep.subr.mxu0 0.0
        %397 = vmatpush1.msra.mxu0 0.0
        %398 = vmatprep.mubr.f32.mxu0 0.0
        %399 = vmatmul.mubr.f32.gmra.mrb[0].mxu0 %v326
        %v400 = vpop.f32.mrb[0].mxu0
        %v401 = vadd.f32 0.0, %v400
        %v402 = vpop.f32.mrb[0].mxu0
        %403 = vmatprep.mubr.f32.mxu0 0.0
        %404 = vmatmul.mubr.f32.gmra.mrb[0].mxu0 %v329
        %v405 = vpop.f32.mrb[0].mxu0
        %v406 = vadd.f32 0.0, %v405
        %v407 = vpop.f32.mrb[0].mxu0
        %408 = vmatprep.mubr.f32.mxu0 0.0
        %409 = vmatmul.mubr.f32.gmra.mrb[0].mxu0 %v332
        %v410 = vpop.f32.mrb[0].mxu0
        %v411 = vadd.f32 0.0, %v410
        %v412 = vpop.f32.mrb[0].mxu0
        %413 = vdwg.mxu0
        %s414 = sld [smem:[#allocation5 + $0x8]]
        %v415 = vstv %s414
        %v416 = vmul.f32 %v415, %v401
        %v417 = vmul.f32 %v415, %v406
        %v418 = vmul.f32 %v415, %v411
        %v419 = vadd.f32 %v246, %v416
        %v420 = vadd.f32 %v246, %v417
        %v421 = vadd.f32 %v246, %v418
        %s422 = sld [smem:[#allocation5 + $0x11]]
        %v423 = vstv %s422
        %v424 = vmul.f32 %v423, %v401
        %v425 = vmul.f32 %v423, %v406
        %v426 = vmul.f32 %v423, %v411
        %v427 = vadd.f32 %v248, %v424
        %v428 = vadd.f32 %v248, %v425
        %v429 = vadd.f32 %v248, %v426
        %s430 = sld [smem:[#allocation5 + $0x1a]]
        %v431 = vstv %s430
        %v432 = vmul.f32 %v431, %v401
        %v433 = vmul.f32 %v431, %v406
        %v434 = vmul.f32 %v431, %v411
        %v435 = vadd.f32 %v250, %v432
        %v436 = vadd.f32 %v250, %v433
        %v437 = vadd.f32 %v250, %v434
        %s438 = sld [smem:[#allocation5 + $0x7]]
        %v439 = vstv %s438
        %v440 = vmul.f32 %v439, %v401
        %v441 = vmul.f32 %v439, %v406
        %v442 = vmul.f32 %v439, %v411
        %446 = vrot.lane.b32.xlu0 %v440, 127
        %v447 = vpop.permute.xlu0 %446
        %448 = vrot.lane.b32.xlu0 %v441, 127
        %v449 = vpop.permute.xlu0 %448
        %450 = vrot.lane.b32.xlu0 %v442, 127
        %v451 = vpop.permute.xlu0 %450
        %v455 = vadd.f32 %v419, %v447
        %v456 = vadd.f32 %v420, %v449
        %v457 = vadd.f32 %v421, %v451
        %s458 = sld [smem:[#allocation5 + $0x10]]
        %v459 = vstv %s458
        %v460 = vmul.f32 %v459, %v401
        %v461 = vmul.f32 %v459, %v406
        %v462 = vmul.f32 %v459, %v411
        %466 = vrot.lane.b32.xlu0 %v460, 127
        %v467 = vpop.permute.xlu0 %466
        %468 = vrot.lane.b32.xlu0 %v461, 127
        %v469 = vpop.permute.xlu0 %468
        %470 = vrot.lane.b32.xlu0 %v462, 127
        %v471 = vpop.permute.xlu0 %470
        %v475 = vadd.f32 %v427, %v467
        %v476 = vadd.f32 %v428, %v469
        %v477 = vadd.f32 %v429, %v471
        %s478 = sld [smem:[#allocation5 + $0x19]]
        %v479 = vstv %s478
        %v480 = vmul.f32 %v479, %v401
        %v481 = vmul.f32 %v479, %v406
        %v482 = vmul.f32 %v479, %v411
        %486 = vrot.lane.b32.xlu0 %v480, 127
        %v487 = vpop.permute.xlu0 %486
        %488 = vrot.lane.b32.xlu0 %v481, 127
        %v489 = vpop.permute.xlu0 %488
        %490 = vrot.lane.b32.xlu0 %v482, 127
        %v491 = vpop.permute.xlu0 %490
        %v495 = vadd.f32 %v435, %v487
        %v496 = vadd.f32 %v436, %v489
        %v497 = vadd.f32 %v437, %v491
        %s498 = sld [smem:[#allocation5 + $0x6]]
        %v499 = vstv %s498
        %v500 = vmul.f32 %v499, %v401
        %v501 = vmul.f32 %v499, %v406
        %v502 = vmul.f32 %v499, %v411
        %506 = vrot.lane.b32.xlu0 %v500, 126
        %v507 = vpop.permute.xlu0 %506
        %508 = vrot.lane.b32.xlu0 %v501, 126
        %v509 = vpop.permute.xlu0 %508
        %510 = vrot.lane.b32.xlu0 %v502, 126
        %v511 = vpop.permute.xlu0 %510
        %v515 = vadd.f32 %v455, %v507
        %v516 = vadd.f32 %v456, %v509
        %v517 = vadd.f32 %v457, %v511
        %s518 = sld [smem:[#allocation5 + $0xf]]
        %v519 = vstv %s518
        %v520 = vmul.f32 %v519, %v401
        %v521 = vmul.f32 %v519, %v406
        %v522 = vmul.f32 %v519, %v411
        %526 = vrot.lane.b32.xlu0 %v520, 126
        %v527 = vpop.permute.xlu0 %526
        %528 = vrot.lane.b32.xlu0 %v521, 126
        %v529 = vpop.permute.xlu0 %528
        %530 = vrot.lane.b32.xlu0 %v522, 126
        %v531 = vpop.permute.xlu0 %530
        %v535 = vadd.f32 %v475, %v527
        %v536 = vadd.f32 %v476, %v529
        %v537 = vadd.f32 %v477, %v531
        %s538 = sld [smem:[#allocation5 + $0x18]]
        %v539 = vstv %s538
        %v540 = vmul.f32 %v539, %v401
        %v541 = vmul.f32 %v539, %v406
        %v542 = vmul.f32 %v539, %v411
        %546 = vrot.lane.b32.xlu0 %v540, 126
        %v547 = vpop.permute.xlu0 %546
        %548 = vrot.lane.b32.xlu0 %v541, 126
        %v549 = vpop.permute.xlu0 %548
        %550 = vrot.lane.b32.xlu0 %v542, 126
        %v551 = vpop.permute.xlu0 %550
        %v555 = vadd.f32 %v495, %v547
        %v556 = vadd.f32 %v496, %v549
        %v557 = vadd.f32 %v497, %v551
        %s558 = sld [smem:[#allocation5 + $0x5]]
        %v559 = vstv %s558
        %v560 = vmul.f32 %v559, %v401
        %v561 = vmul.f32 %v559, %v406
        %v562 = vmul.f32 %v559, %v411
        %vm566 = vcmask 1046528
        %v567 = vrot.slane %v560, 1
        %v568 = vrot.slane %v561, 1
        %v569 = vsel %vm566, %v567, %v568
        %v570 = vrot.slane %v562, 1
        %v571 = vsel %vm566, %v568, %v570
        %v575 = vadd.f32 %v515, %v569
        %v576 = vadd.f32 %v516, %v571
        %v577 = vadd.f32 %v517, %v570
        %s578 = sld [smem:[#allocation5 + $0xe]]
        %v579 = vstv %s578
        %v580 = vmul.f32 %v579, %v401
        %v581 = vmul.f32 %v579, %v406
        %v582 = vmul.f32 %v579, %v411
        %v586 = vrot.slane %v580, 1
        %v587 = vrot.slane %v581, 1
        %v588 = vsel %vm566, %v586, %v587
        %v589 = vrot.slane %v582, 1
        %v590 = vsel %vm566, %v587, %v589
        %v594 = vadd.f32 %v535, %v588
        %v595 = vadd.f32 %v536, %v590
        %v596 = vadd.f32 %v537, %v589
        %s597 = sld [smem:[#allocation5 + $0x17]]
        %v598 = vstv %s597
        %v599 = vmul.f32 %v598, %v401
        %v600 = vmul.f32 %v598, %v406
        %v601 = vmul.f32 %v598, %v411
        %v605 = vrot.slane %v599, 1
        %v606 = vrot.slane %v600, 1
        %v607 = vsel %vm566, %v605, %v606
        %v608 = vrot.slane %v601, 1
        %v609 = vsel %vm566, %v606, %v608
        %v613 = vadd.f32 %v555, %v607
        %v614 = vadd.f32 %v556, %v609
        %v615 = vadd.f32 %v557, %v608
        %s616 = sld [smem:[#allocation5 + $0x4]]
        %v617 = vstv %s616
        %v618 = vmul.f32 %v617, %v401
        %v619 = vmul.f32 %v617, %v406
        %v620 = vmul.f32 %v617, %v411
        %v624 = vrot.slane %v618, 1
        %v625 = vrot.slane %v619, 1
        %v626 = vsel %vm566, %v624, %v625
        %v627 = vrot.slane %v620, 1
        %v628 = vsel %vm566, %v625, %v627
        %629 = vrot.lane.b32.xlu0 %v626, 127
        %v630 = vpop.permute.xlu0 %629
        %631 = vrot.lane.b32.xlu0 %v628, 127
        %v632 = vpop.permute.xlu0 %631
        %633 = vrot.lane.b32.xlu0 %v627, 127
        %v634 = vpop.permute.xlu0 %633
        %v638 = vadd.f32 %v575, %v630
        %v639 = vadd.f32 %v576, %v632
        %v640 = vadd.f32 %v577, %v634
        %s641 = sld [smem:[#allocation5 + $0xd]]
        %v642 = vstv %s641
        %v643 = vmul.f32 %v642, %v401
        %v644 = vmul.f32 %v642, %v406
        %v645 = vmul.f32 %v642, %v411
        %v649 = vrot.slane %v643, 1
        %v650 = vrot.slane %v644, 1
        %v651 = vsel %vm566, %v649, %v650
        %v652 = vrot.slane %v645, 1
        %v653 = vsel %vm566, %v650, %v652
        %654 = vrot.lane.b32.xlu0 %v651, 127
        %v655 = vpop.permute.xlu0 %654
        %656 = vrot.lane.b32.xlu0 %v653, 127
        %v657 = vpop.permute.xlu0 %656
        %658 = vrot.lane.b32.xlu0 %v652, 127
        %v659 = vpop.permute.xlu0 %658
        %v663 = vadd.f32 %v594, %v655
        %v664 = vadd.f32 %v595, %v657
        %v665 = vadd.f32 %v596, %v659
        %s666 = sld [smem:[#allocation5 + $0x16]]
        %v667 = vstv %s666
        %v668 = vmul.f32 %v667, %v401
        %v669 = vmul.f32 %v667, %v406
        %v670 = vmul.f32 %v667, %v411
        %v674 = vrot.slane %v668, 1
        %v675 = vrot.slane %v669, 1
        %v676 = vsel %vm566, %v674, %v675
        %v677 = vrot.slane %v670, 1
        %v678 = vsel %vm566, %v675, %v677
        %679 = vrot.lane.b32.xlu0 %v676, 127
        %v680 = vpop.permute.xlu0 %679
        %681 = vrot.lane.b32.xlu0 %v678, 127
        %v682 = vpop.permute.xlu0 %681
        %683 = vrot.lane.b32.xlu0 %v677, 127
        %v684 = vpop.permute.xlu0 %683
        %v688 = vadd.f32 %v613, %v680
        %v689 = vadd.f32 %v614, %v682
        %v690 = vadd.f32 %v615, %v684
        %s691 = sld [smem:[#allocation5 + $0x3]]
        %v692 = vstv %s691
        %v693 = vmul.f32 %v692, %v401
        %v694 = vmul.f32 %v692, %v406
        %v695 = vmul.f32 %v692, %v411
        %v699 = vrot.slane %v693, 1
        %v700 = vrot.slane %v694, 1
        %v701 = vsel %vm566, %v699, %v700
        %v702 = vrot.slane %v695, 1
        %v703 = vsel %vm566, %v700, %v702
        %704 = vrot.lane.b32.xlu0 %v701, 126
        %v705 = vpop.permute.xlu0 %704
        %706 = vrot.lane.b32.xlu0 %v703, 126
        %v707 = vpop.permute.xlu0 %706
        %708 = vrot.lane.b32.xlu0 %v702, 126
        %v709 = vpop.permute.xlu0 %708
        %v713 = vadd.f32 %v638, %v705
        %v714 = vadd.f32 %v639, %v707
        %v715 = vadd.f32 %v640, %v709
        %s716 = sld [smem:[#allocation5 + $0xc]]
        %v717 = vstv %s716
        %v718 = vmul.f32 %v717, %v401
        %v719 = vmul.f32 %v717, %v406
        %v720 = vmul.f32 %v717, %v411
        %v724 = vrot.slane %v718, 1
        %v725 = vrot.slane %v719, 1
        %v726 = vsel %vm566, %v724, %v725
        %v727 = vrot.slane %v720, 1
        %v728 = vsel %vm566, %v725, %v727
        %729 = vrot.lane.b32.xlu0 %v726, 126
        %v730 = vpop.permute.xlu0 %729
        %731 = vrot.lane.b32.xlu0 %v728, 126
        %v732 = vpop.permute.xlu0 %731
        %733 = vrot.lane.b32.xlu0 %v727, 126
        %v734 = vpop.permute.xlu0 %733
        %v738 = vadd.f32 %v663, %v730
        %v739 = vadd.f32 %v664, %v732
        %v740 = vadd.f32 %v665, %v734
        %s741 = sld [smem:[#allocation5 + $0x15]]
        %v742 = vstv %s741
        %v743 = vmul.f32 %v742, %v401
        %v744 = vmul.f32 %v742, %v406
        %v745 = vmul.f32 %v742, %v411
        %v749 = vrot.slane %v743, 1
        %v750 = vrot.slane %v744, 1
        %v751 = vsel %vm566, %v749, %v750
        %v752 = vrot.slane %v745, 1
        %v753 = vsel %vm566, %v750, %v752
        %754 = vrot.lane.b32.xlu0 %v751, 126
        %v755 = vpop.permute.xlu0 %754
        %756 = vrot.lane.b32.xlu0 %v753, 126
        %v757 = vpop.permute.xlu0 %756
        %758 = vrot.lane.b32.xlu0 %v752, 126
        %v759 = vpop.permute.xlu0 %758
        %v763 = vadd.f32 %v688, %v755
        %v764 = vadd.f32 %v689, %v757
        %v765 = vadd.f32 %v690, %v759
        %s766 = sld [smem:[#allocation5 + $0x2]]
        %v767 = vstv %s766
        %v768 = vmul.f32 %v767, %v401
        %v769 = vmul.f32 %v767, %v406
        %v770 = vmul.f32 %v767, %v411
        %vm774 = vcmask 1045504
        %v775 = vrot.slane %v768, 2
        %v776 = vrot.slane %v769, 2
        %v777 = vsel %vm774, %v775, %v776
        %v778 = vrot.slane %v770, 2
        %v779 = vsel %vm774, %v776, %v778
        %v783 = vadd.f32 %v713, %v777
        %v784 = vadd.f32 %v714, %v779
        %v785 = vadd.f32 %v715, %v778
        %s786 = sld [smem:[#allocation5 + $0xb]]
        %v787 = vstv %s786
        %v788 = vmul.f32 %v787, %v401
        %v789 = vmul.f32 %v787, %v406
        %v790 = vmul.f32 %v787, %v411
        %v794 = vrot.slane %v788, 2
        %v795 = vrot.slane %v789, 2
        %v796 = vsel %vm774, %v794, %v795
        %v797 = vrot.slane %v790, 2
        %v798 = vsel %vm774, %v795, %v797
        %v802 = vadd.f32 %v738, %v796
        %v803 = vadd.f32 %v739, %v798
        %v804 = vadd.f32 %v740, %v797
        %s805 = sld [smem:[#allocation5 + $0x14]]
        %v806 = vstv %s805
        %v807 = vmul.f32 %v806, %v401
        %v808 = vmul.f32 %v806, %v406
        %v809 = vmul.f32 %v806, %v411
        %v813 = vrot.slane %v807, 2
        %v814 = vrot.slane %v808, 2
        %v815 = vsel %vm774, %v813, %v814
        %v816 = vrot.slane %v809, 2
        %v817 = vsel %vm774, %v814, %v816
        %v821 = vadd.f32 %v763, %v815
        %v822 = vadd.f32 %v764, %v817
        %v823 = vadd.f32 %v765, %v816
        %s824 = sld [smem:[#allocation5 + $0x1]]
        %v825 = vstv %s824
        %v826 = vmul.f32 %v825, %v401
        %v827 = vmul.f32 %v825, %v406
        %v828 = vmul.f32 %v825, %v411
        %v832 = vrot.slane %v826, 2
        %v833 = vrot.slane %v827, 2
        %v834 = vsel %vm774, %v832, %v833
        %v835 = vrot.slane %v828, 2
        %v836 = vsel %vm774, %v833, %v835
        %837 = vrot.lane.b32.xlu0 %v834, 127
        %v838 = vpop.permute.xlu0 %837
        %839 = vrot.lane.b32.xlu0 %v836, 127
        %v840 = vpop.permute.xlu0 %839
        %841 = vrot.lane.b32.xlu0 %v835, 127
        %v842 = vpop.permute.xlu0 %841
        %v846 = vadd.f32 %v783, %v838
        %v847 = vadd.f32 %v784, %v840
        %v848 = vadd.f32 %v785, %v842
        %s849 = sld [smem:[#allocation5 + $0xa]]
        %v850 = vstv %s849
        %v851 = vmul.f32 %v850, %v401
        %v852 = vmul.f32 %v850, %v406
        %v853 = vmul.f32 %v850, %v411
        %v857 = vrot.slane %v851, 2
        %v858 = vrot.slane %v852, 2
        %v859 = vsel %vm774, %v857, %v858
        %v860 = vrot.slane %v853, 2
        %v861 = vsel %vm774, %v858, %v860
        %862 = vrot.lane.b32.xlu0 %v859, 127
        %v863 = vpop.permute.xlu0 %862
        %864 = vrot.lane.b32.xlu0 %v861, 127
        %v865 = vpop.permute.xlu0 %864
        %866 = vrot.lane.b32.xlu0 %v860, 127
        %v867 = vpop.permute.xlu0 %866
        %v871 = vadd.f32 %v802, %v863
        %v872 = vadd.f32 %v803, %v865
        %v873 = vadd.f32 %v804, %v867
        %s874 = sld [smem:[#allocation5 + $0x13]]
        %v875 = vstv %s874
        %v876 = vmul.f32 %v875, %v401
        %v877 = vmul.f32 %v875, %v406
        %v878 = vmul.f32 %v875, %v411
        %v882 = vrot.slane %v876, 2
        %v883 = vrot.slane %v877, 2
        %v884 = vsel %vm774, %v882, %v883
        %v885 = vrot.slane %v878, 2
        %v886 = vsel %vm774, %v883, %v885
        %887 = vrot.lane.b32.xlu0 %v884, 127
        %v888 = vpop.permute.xlu0 %887
        %889 = vrot.lane.b32.xlu0 %v886, 127
        %v890 = vpop.permute.xlu0 %889
        %891 = vrot.lane.b32.xlu0 %v885, 127
        %v892 = vpop.permute.xlu0 %891
        %v896 = vadd.f32 %v821, %v888
        %v897 = vadd.f32 %v822, %v890
        %v898 = vadd.f32 %v823, %v892
        %s899 = sld [smem:[#allocation5]]
        %v900 = vstv %s899
        %v901 = vmul.f32 %v900, %v401
        %v902 = vmul.f32 %v900, %v406
        %v903 = vmul.f32 %v900, %v411
        %v907 = vrot.slane %v901, 2
        %v908 = vrot.slane %v902, 2
        %v909 = vsel %vm774, %v907, %v908
        %v910 = vrot.slane %v903, 2
        %v911 = vsel %vm774, %v908, %v910
        %912 = vrot.lane.b32.xlu0 %v909, 126
        %v913 = vpop.permute.xlu0 %912
        %914 = vrot.lane.b32.xlu0 %v911, 126
        %v915 = vpop.permute.xlu0 %914
        %916 = vrot.lane.b32.xlu0 %v910, 126
        %v917 = vpop.permute.xlu0 %916
        %v921 = vadd.f32 %v846, %v913
        %v922 = vadd.f32 %v847, %v915
        %v923 = vadd.f32 %v848, %v917
        %s924 = sld [smem:[#allocation5 + $0x9]]
        %v925 = vstv %s924
        %v926 = vmul.f32 %v925, %v401
        %v927 = vmul.f32 %v925, %v406
        %v928 = vmul.f32 %v925, %v411
        %v932 = vrot.slane %v926, 2
        %v933 = vrot.slane %v927, 2
        %v934 = vsel %vm774, %v932, %v933
        %v935 = vrot.slane %v928, 2
        %v936 = vsel %vm774, %v933, %v935
        %937 = vrot.lane.b32.xlu0 %v934, 126
        %v938 = vpop.permute.xlu0 %937
        %939 = vrot.lane.b32.xlu0 %v936, 126
        %v940 = vpop.permute.xlu0 %939
        %941 = vrot.lane.b32.xlu0 %v935, 126
        %v942 = vpop.permute.xlu0 %941
        %v946 = vadd.f32 %v871, %v938
        %v947 = vadd.f32 %v872, %v940
        %v948 = vadd.f32 %v873, %v942
        %s949 = sld [smem:[#allocation5 + $0x12]]
        %v950 = vstv %s949
        %v951 = vmul.f32 %v950, %v401
        %v952 = vmul.f32 %v950, %v406
        %v953 = vmul.f32 %v950, %v411
        %v957 = vrot.slane %v951, 2
        %v958 = vrot.slane %v952, 2
        %v959 = vsel %vm774, %v957, %v958
        %v960 = vrot.slane %v953, 2
        %v961 = vsel %vm774, %v958, %v960
        %962 = vrot.lane.b32.xlu0 %v959, 126
        %v963 = vpop.permute.xlu0 %962
        %964 = vrot.lane.b32.xlu0 %v961, 126
        %v965 = vpop.permute.xlu0 %964
        %966 = vrot.lane.b32.xlu0 %v960, 126
        %v967 = vpop.permute.xlu0 %966
        %v971 = vadd.f32 %v896, %v963
        %v972 = vadd.f32 %v897, %v965
        %v973 = vadd.f32 %v898, %v967
        %v975 = vsel %vm251, %v241, 0
        %977 = vmatprep.subr.mxu0 0.0
        %978 = vmatpush1.msra.mxu0 %v239
        %979 = vmatprep.subr.mxu0 0.0
        %980 = vmatpush1.msra.mxu0 0.0
        %981 = vmatprep.subr.mxu0 0.0
        %982 = vmatpush1.msra.mxu0 0.0
        %983 = vmatprep.subr.mxu0 0.0
        %984 = vmatpush1.msra.mxu0 0.0
        %985 = vmatprep.subr.mxu0 0.0
        %986 = vmatpush1.msra.mxu0 0.0
        %987 = vmatprep.subr.mxu0 0.0
        %988 = vmatpush1.msra.mxu0 0.0
        %989 = vmatprep.subr.mxu0 0.0
        %990 = vmatpush1.msra.mxu0 0.0
        %991 = vmatprep.subr.mxu0 0.0
        %992 = vmatpush1.msra.mxu0 0.0
        %993 = vmatprep.subr.mxu0 0.0
        %994 = vmatpush1.msra.mxu0 0.0
        %995 = vmatprep.subr.mxu0 0.0
        %996 = vmatpush1.msra.mxu0 0.0
        %997 = vmatprep.subr.mxu0 0.0
        %998 = vmatpush1.msra.mxu0 0.0
        %999 = vmatprep.subr.mxu0 0.0
        %1000 = vmatpush1.msra.mxu0 0.0
        %1001 = vmatprep.subr.mxu0 0.0
        %1002 = vmatpush1.msra.mxu0 0.0
        %1003 = vmatprep.subr.mxu0 0.0
        %1004 = vmatpush1.msra.mxu0 0.0
        %1005 = vmatprep.subr.mxu0 0.0
        %1006 = vmatpush1.msra.mxu0 0.0
        %1007 = vmatprep.subr.mxu0 0.0
        %1008 = vmatpush1.msra.mxu0 0.0
        %1009 = vmatprep.subr.mxu0 0.0
        %1010 = vmatpush1.msra.mxu0 0.0
        %1011 = vmatprep.subr.mxu0 0.0
        %1012 = vmatpush1.msra.mxu0 0.0
        %1013 = vmatprep.subr.mxu0 0.0
        %1014 = vmatpush1.msra.mxu0 0.0
        %1015 = vmatprep.subr.mxu0 0.0
        %1016 = vmatpush1.msra.mxu0 0.0
        %1017 = vmatprep.subr.mxu0 0.0
        %1018 = vmatpush1.msra.mxu0 0.0
        %1019 = vmatprep.subr.mxu0 0.0
        %1020 = vmatpush1.msra.mxu0 0.0
        %1021 = vmatprep.subr.mxu0 0.0
        %1022 = vmatpush1.msra.mxu0 0.0
        %1023 = vmatprep.subr.mxu0 0.0
        %1024 = vmatpush1.msra.mxu0 0.0
        %1025 = vmatprep.subr.mxu0 0.0
        %1026 = vmatpush1.msra.mxu0 0.0
        %1027 = vmatprep.subr.mxu0 0.0
        %1028 = vmatpush1.msra.mxu0 0.0
        %1029 = vmatprep.subr.mxu0 0.0
        %1030 = vmatpush1.msra.mxu0 0.0
        %1031 = vmatprep.subr.mxu0 0.0
        %1032 = vmatpush1.msra.mxu0 0.0
        %1033 = vmatprep.subr.mxu0 0.0
        %1034 = vmatpush1.msra.mxu0 0.0
        %1035 = vmatprep.subr.mxu0 0.0
        %1036 = vmatpush1.msra.mxu0 0.0
        %1037 = vmatprep.subr.mxu0 0.0
        %1038 = vmatpush1.msra.mxu0 0.0
        %1039 = vmatprep.subr.mxu0 0.0
        %1040 = vmatpush1.msra.mxu0 0.0
        %1041 = vmatprep.mubr.f32.mxu0 0.0
        %1042 = vmatmul.mubr.f32.gmra.mrb[0].mxu0 %v975
        %v1043 = vpop.f32.mrb[0].mxu0
        %v1044 = vadd.f32 0.0, %v1043
        %v1045 = vpop.f32.mrb[0].mxu0
        %1046 = vdwg.mxu0
        %1047 = vmatprep.subr.mxu0 0.0
        %1048 = vmatpush1.msra.mxu0 %v1044
        %1049 = vmatprep.subr.mxu0 0.0
        %1050 = vmatpush1.msra.mxu0 0.0
        %1051 = vmatprep.subr.mxu0 0.0
        %1052 = vmatpush1.msra.mxu0 0.0
        %1053 = vmatprep.subr.mxu0 0.0
        %1054 = vmatpush1.msra.mxu0 0.0
        %1055 = vmatprep.subr.mxu0 0.0
        %1056 = vmatpush1.msra.mxu0 0.0
        %1057 = vmatprep.subr.mxu0 0.0
        %1058 = vmatpush1.msra.mxu0 0.0
        %1059 = vmatprep.subr.mxu0 0.0
        %1060 = vmatpush1.msra.mxu0 0.0
        %1061 = vmatprep.subr.mxu0 0.0
        %1062 = vmatpush1.msra.mxu0 0.0
        %1063 = vmatprep.subr.mxu0 0.0
        %1064 = vmatpush1.msra.mxu0 0.0
        %1065 = vmatprep.subr.mxu0 0.0
        %1066 = vmatpush1.msra.mxu0 0.0
        %1067 = vmatprep.subr.mxu0 0.0
        %1068 = vmatpush1.msra.mxu0 0.0
        %1069 = vmatprep.subr.mxu0 0.0
        %1070 = vmatpush1.msra.mxu0 0.0
        %1071 = vmatprep.subr.mxu0 0.0
        %1072 = vmatpush1.msra.mxu0 0.0
        %1073 = vmatprep.subr.mxu0 0.0
        %1074 = vmatpush1.msra.mxu0 0.0
        %1075 = vmatprep.subr.mxu0 0.0
        %1076 = vmatpush1.msra.mxu0 0.0
        %1077 = vmatprep.subr.mxu0 0.0
        %1078 = vmatpush1.msra.mxu0 0.0
        %1079 = vmatprep.subr.mxu0 0.0
        %1080 = vmatpush1.msra.mxu0 0.0
        %1081 = vmatprep.subr.mxu0 0.0
        %1082 = vmatpush1.msra.mxu0 0.0
        %1083 = vmatprep.subr.mxu0 0.0
        %1084 = vmatpush1.msra.mxu0 0.0
        %1085 = vmatprep.subr.mxu0 0.0
        %1086 = vmatpush1.msra.mxu0 0.0
        %1087 = vmatprep.subr.mxu0 0.0
        %1088 = vmatpush1.msra.mxu0 0.0
        %1089 = vmatprep.subr.mxu0 0.0
        %1090 = vmatpush1.msra.mxu0 0.0
        %1091 = vmatprep.subr.mxu0 0.0
        %1092 = vmatpush1.msra.mxu0 0.0
        %1093 = vmatprep.subr.mxu0 0.0
        %1094 = vmatpush1.msra.mxu0 0.0
        %1095 = vmatprep.subr.mxu0 0.0
        %1096 = vmatpush1.msra.mxu0 0.0
        %1097 = vmatprep.subr.mxu0 0.0
        %1098 = vmatpush1.msra.mxu0 0.0
        %1099 = vmatprep.subr.mxu0 0.0
        %1100 = vmatpush1.msra.mxu0 0.0
        %1101 = vmatprep.subr.mxu0 0.0
        %1102 = vmatpush1.msra.mxu0 0.0
        %1103 = vmatprep.subr.mxu0 0.0
        %1104 = vmatpush1.msra.mxu0 0.0
        %1105 = vmatprep.subr.mxu0 0.0
        %1106 = vmatpush1.msra.mxu0 0.0
        %1107 = vmatprep.subr.mxu0 0.0
        %1108 = vmatpush1.msra.mxu0 0.0
        %1109 = vmatprep.subr.mxu0 0.0
        %1110 = vmatpush1.msra.mxu0 0.0
        %1111 = vmatprep.mubr.f32.mxu0 0.0
        %1112 = vmatmul.mubr.f32.gmra.mrb[0].mxu0 %v326
        %v1113 = vpop.f32.mrb[0].mxu0
        %v1114 = vadd.f32 0.0, %v1113
        %v1115 = vpop.f32.mrb[0].mxu0
        %1116 = vmatprep.mubr.f32.mxu0 0.0
        %1117 = vmatmul.mubr.f32.gmra.mrb[0].mxu0 %v329
        %v1118 = vpop.f32.mrb[0].mxu0
        %v1119 = vadd.f32 0.0, %v1118
        %v1120 = vpop.f32.mrb[0].mxu0
        %1121 = vmatprep.mubr.f32.mxu0 0.0
        %1122 = vmatmul.mubr.f32.gmra.mrb[0].mxu0 %v332
        %v1123 = vpop.f32.mrb[0].mxu0
        %v1124 = vadd.f32 0.0, %v1123
        %v1125 = vpop.f32.mrb[0].mxu0
        %1126 = vdwg.mxu0
        %s1127 = sld [smem:[#allocation5 + $0x23]]
        %v1128 = vstv %s1127
        %v1129 = vmul.f32 %v1128, %v1114
        %v1130 = vmul.f32 %v1128, %v1119
        %v1131 = vmul.f32 %v1128, %v1124
        %v1132 = vadd.f32 %v921, %v1129
        %v1133 = vadd.f32 %v922, %v1130
        %v1134 = vadd.f32 %v923, %v1131
        %s1135 = sld [smem:[#allocation5 + $0x2c]]
        %v1136 = vstv %s1135
        %v1137 = vmul.f32 %v1136, %v1114
        %v1138 = vmul.f32 %v1136, %v1119
        %v1139 = vmul.f32 %v1136, %v1124
        %v1140 = vadd.f32 %v946, %v1137
        %v1141 = vadd.f32 %v947, %v1138
        %v1142 = vadd.f32 %v948, %v1139
        %s1143 = sld [smem:[#allocation5 + $0x35]]
        %v1144 = vstv %s1143
        %v1145 = vmul.f32 %v1144, %v1114
        %v1146 = vmul.f32 %v1144, %v1119
        %v1147 = vmul.f32 %v1144, %v1124
        %v1148 = vadd.f32 %v971, %v1145
        %v1149 = vadd.f32 %v972, %v1146
        %v1150 = vadd.f32 %v973, %v1147
        %s1151 = sld [smem:[#allocation5 + $0x22]]
        %v1152 = vstv %s1151
        %v1153 = vmul.f32 %v1152, %v1114
        %v1154 = vmul.f32 %v1152, %v1119
        %v1155 = vmul.f32 %v1152, %v1124
        %1159 = vrot.lane.b32.xlu0 %v1153, 127
        %v1160 = vpop.permute.xlu0 %1159
        %1161 = vrot.lane.b32.xlu0 %v1154, 127
        %v1162 = vpop.permute.xlu0 %1161
        %1163 = vrot.lane.b32.xlu0 %v1155, 127
        %v1164 = vpop.permute.xlu0 %1163
        %v1168 = vadd.f32 %v1132, %v1160
        %v1169 = vadd.f32 %v1133, %v1162
        %v1170 = vadd.f32 %v1134, %v1164
        %s1171 = sld [smem:[#allocation5 + $0x2b]]
        %v1172 = vstv %s1171
        %v1173 = vmul.f32 %v1172, %v1114
        %v1174 = vmul.f32 %v1172, %v1119
        %v1175 = vmul.f32 %v1172, %v1124
        %1179 = vrot.lane.b32.xlu0 %v1173, 127
        %v1180 = vpop.permute.xlu0 %1179
        %1181 = vrot.lane.b32.xlu0 %v1174, 127
        %v1182 = vpop.permute.xlu0 %1181
        %1183 = vrot.lane.b32.xlu0 %v1175, 127
        %v1184 = vpop.permute.xlu0 %1183
        %v1188 = vadd.f32 %v1140, %v1180
        %v1189 = vadd.f32 %v1141, %v1182
        %v1190 = vadd.f32 %v1142, %v1184
        %s1191 = sld [smem:[#allocation5 + $0x34]]
        %v1192 = vstv %s1191
        %v1193 = vmul.f32 %v1192, %v1114
        %v1194 = vmul.f32 %v1192, %v1119
        %v1195 = vmul.f32 %v1192, %v1124
        %1199 = vrot.lane.b32.xlu0 %v1193, 127
        %v1200 = vpop.permute.xlu0 %1199
        %1201 = vrot.lane.b32.xlu0 %v1194, 127
        %v1202 = vpop.permute.xlu0 %1201
        %1203 = vrot.lane.b32.xlu0 %v1195, 127
        %v1204 = vpop.permute.xlu0 %1203
        %v1208 = vadd.f32 %v1148, %v1200
        %v1209 = vadd.f32 %v1149, %v1202
        %v1210 = vadd.f32 %v1150, %v1204
        %s1211 = sld [smem:[#allocation5 + $0x21]]
        %v1212 = vstv %s1211
        %v1213 = vmul.f32 %v1212, %v1114
        %v1214 = vmul.f32 %v1212, %v1119
        %v1215 = vmul.f32 %v1212, %v1124
        %1219 = vrot.lane.b32.xlu0 %v1213, 126
        %v1220 = vpop.permute.xlu0 %1219
        %1221 = vrot.lane.b32.xlu0 %v1214, 126
        %v1222 = vpop.permute.xlu0 %1221
        %1223 = vrot.lane.b32.xlu0 %v1215, 126
        %v1224 = vpop.permute.xlu0 %1223
        %v1228 = vadd.f32 %v1168, %v1220
        %v1229 = vadd.f32 %v1169, %v1222
        %v1230 = vadd.f32 %v1170, %v1224
        %s1231 = sld [smem:[#allocation5 + $0x2a]]
        %v1232 = vstv %s1231
        %v1233 = vmul.f32 %v1232, %v1114
        %v1234 = vmul.f32 %v1232, %v1119
        %v1235 = vmul.f32 %v1232, %v1124
        %1239 = vrot.lane.b32.xlu0 %v1233, 126
        %v1240 = vpop.permute.xlu0 %1239
        %1241 = vrot.lane.b32.xlu0 %v1234, 126
        %v1242 = vpop.permute.xlu0 %1241
        %1243 = vrot.lane.b32.xlu0 %v1235, 126
        %v1244 = vpop.permute.xlu0 %1243
        %v1248 = vadd.f32 %v1188, %v1240
        %v1249 = vadd.f32 %v1189, %v1242
        %v1250 = vadd.f32 %v1190, %v1244
        %s1251 = sld [smem:[#allocation5 + $0x33]]
        %v1252 = vstv %s1251
        %v1253 = vmul.f32 %v1252, %v1114
        %v1254 = vmul.f32 %v1252, %v1119
        %v1255 = vmul.f32 %v1252, %v1124
        %1259 = vrot.lane.b32.xlu0 %v1253, 126
        %v1260 = vpop.permute.xlu0 %1259
        %1261 = vrot.lane.b32.xlu0 %v1254, 126
        %v1262 = vpop.permute.xlu0 %1261
        %1263 = vrot.lane.b32.xlu0 %v1255, 126
        %v1264 = vpop.permute.xlu0 %1263
        %v1268 = vadd.f32 %v1208, %v1260
        %v1269 = vadd.f32 %v1209, %v1262
        %v1270 = vadd.f32 %v1210, %v1264
        %s1271 = sld [smem:[#allocation5 + $0x20]]
        %v1272 = vstv %s1271
        %v1273 = vmul.f32 %v1272, %v1114
        %v1274 = vmul.f32 %v1272, %v1119
        %v1275 = vmul.f32 %v1272, %v1124
        %v1279 = vrot.slane %v1273, 1
        %v1280 = vrot.slane %v1274, 1
        %v1281 = vsel %vm566, %v1279, %v1280
        %v1282 = vrot.slane %v1275, 1
        %v1283 = vsel %vm566, %v1280, %v1282
        %v1287 = vadd.f32 %v1228, %v1281
        %v1288 = vadd.f32 %v1229, %v1283
        %v1289 = vadd.f32 %v1230, %v1282
        %s1290 = sld [smem:[#allocation5 + $0x29]]
        %v1291 = vstv %s1290
        %v1292 = vmul.f32 %v1291, %v1114
        %v1293 = vmul.f32 %v1291, %v1119
        %v1294 = vmul.f32 %v1291, %v1124
        %v1298 = vrot.slane %v1292, 1
        %v1299 = vrot.slane %v1293, 1
        %v1300 = vsel %vm566, %v1298, %v1299
        %v1301 = vrot.slane %v1294, 1
        %v1302 = vsel %vm566, %v1299, %v1301
        %v1306 = vadd.f32 %v1248, %v1300
        %v1307 = vadd.f32 %v1249, %v1302
        %v1308 = vadd.f32 %v1250, %v1301
        %s1309 = sld [smem:[#allocation5 + $0x32]]
        %v1310 = vstv %s1309
        %v1311 = vmul.f32 %v1310, %v1114
        %v1312 = vmul.f32 %v1310, %v1119
        %v1313 = vmul.f32 %v1310, %v1124
        %v1317 = vrot.slane %v1311, 1
        %v1318 = vrot.slane %v1312, 1
        %v1319 = vsel %vm566, %v1317, %v1318
        %v1320 = vrot.slane %v1313, 1
        %v1321 = vsel %vm566, %v1318, %v1320
        %v1325 = vadd.f32 %v1268, %v1319
        %v1326 = vadd.f32 %v1269, %v1321
        %v1327 = vadd.f32 %v1270, %v1320
        %s1328 = sld [smem:[#allocation5 + $0x1f]]
        %v1329 = vstv %s1328
        %v1330 = vmul.f32 %v1329, %v1114
        %v1331 = vmul.f32 %v1329, %v1119
        %v1332 = vmul.f32 %v1329, %v1124
        %v1336 = vrot.slane %v1330, 1
        %v1337 = vrot.slane %v1331, 1
        %v1338 = vsel %vm566, %v1336, %v1337
        %v1339 = vrot.slane %v1332, 1
        %v1340 = vsel %vm566, %v1337, %v1339
        %1341 = vrot.lane.b32.xlu0 %v1338, 127
        %v1342 = vpop.permute.xlu0 %1341
        %1343 = vrot.lane.b32.xlu0 %v1340, 127
        %v1344 = vpop.permute.xlu0 %1343
        %1345 = vrot.lane.b32.xlu0 %v1339, 127
        %v1346 = vpop.permute.xlu0 %1345
        %v1350 = vadd.f32 %v1287, %v1342
        %v1351 = vadd.f32 %v1288, %v1344
        %v1352 = vadd.f32 %v1289, %v1346
        %s1353 = sld [smem:[#allocation5 + $0x28]]
        %v1354 = vstv %s1353
        %v1355 = vmul.f32 %v1354, %v1114
        %v1356 = vmul.f32 %v1354, %v1119
        %v1357 = vmul.f32 %v1354, %v1124
        %v1361 = vrot.slane %v1355, 1
        %v1362 = vrot.slane %v1356, 1
        %v1363 = vsel %vm566, %v1361, %v1362
        %v1364 = vrot.slane %v1357, 1
        %v1365 = vsel %vm566, %v1362, %v1364
        %1366 = vrot.lane.b32.xlu0 %v1363, 127
        %v1367 = vpop.permute.xlu0 %1366
        %1368 = vrot.lane.b32.xlu0 %v1365, 127
        %v1369 = vpop.permute.xlu0 %1368
        %1370 = vrot.lane.b32.xlu0 %v1364, 127
        %v1371 = vpop.permute.xlu0 %1370
        %v1375 = vadd.f32 %v1306, %v1367
        %v1376 = vadd.f32 %v1307, %v1369
        %v1377 = vadd.f32 %v1308, %v1371
        %s1378 = sld [smem:[#allocation5 + $0x31]]
        %v1379 = vstv %s1378
        %v1380 = vmul.f32 %v1379, %v1114
        %v1381 = vmul.f32 %v1379, %v1119
        %v1382 = vmul.f32 %v1379, %v1124
        %v1386 = vrot.slane %v1380, 1
        %v1387 = vrot.slane %v1381, 1
        %v1388 = vsel %vm566, %v1386, %v1387
        %v1389 = vrot.slane %v1382, 1
        %v1390 = vsel %vm566, %v1387, %v1389
        %1391 = vrot.lane.b32.xlu0 %v1388, 127
        %v1392 = vpop.permute.xlu0 %1391
        %1393 = vrot.lane.b32.xlu0 %v1390, 127
        %v1394 = vpop.permute.xlu0 %1393
        %1395 = vrot.lane.b32.xlu0 %v1389, 127
        %v1396 = vpop.permute.xlu0 %1395
        %v1400 = vadd.f32 %v1325, %v1392
        %v1401 = vadd.f32 %v1326, %v1394
        %v1402 = vadd.f32 %v1327, %v1396
        %s1403 = sld [smem:[#allocation5 + $0x1e]]
        %v1404 = vstv %s1403
        %v1405 = vmul.f32 %v1404, %v1114
        %v1406 = vmul.f32 %v1404, %v1119
        %v1407 = vmul.f32 %v1404, %v1124
        %v1411 = vrot.slane %v1405, 1
        %v1412 = vrot.slane %v1406, 1
        %v1413 = vsel %vm566, %v1411, %v1412
        %v1414 = vrot.slane %v1407, 1
        %v1415 = vsel %vm566, %v1412, %v1414
        %1416 = vrot.lane.b32.xlu0 %v1413, 126
        %v1417 = vpop.permute.xlu0 %1416
        %1418 = vrot.lane.b32.xlu0 %v1415, 126
        %v1419 = vpop.permute.xlu0 %1418
        %1420 = vrot.lane.b32.xlu0 %v1414, 126
        %v1421 = vpop.permute.xlu0 %1420
        %v1425 = vadd.f32 %v1350, %v1417
        %v1426 = vadd.f32 %v1351, %v1419
        %v1427 = vadd.f32 %v1352, %v1421
        %s1428 = sld [smem:[#allocation5 + $0x27]]
        %v1429 = vstv %s1428
        %v1430 = vmul.f32 %v1429, %v1114
        %v1431 = vmul.f32 %v1429, %v1119
        %v1432 = vmul.f32 %v1429, %v1124
        %v1436 = vrot.slane %v1430, 1
        %v1437 = vrot.slane %v1431, 1
        %v1438 = vsel %vm566, %v1436, %v1437
        %v1439 = vrot.slane %v1432, 1
        %v1440 = vsel %vm566, %v1437, %v1439
        %1441 = vrot.lane.b32.xlu0 %v1438, 126
        %v1442 = vpop.permute.xlu0 %1441
        %1443 = vrot.lane.b32.xlu0 %v1440, 126
        %v1444 = vpop.permute.xlu0 %1443
        %1445 = vrot.lane.b32.xlu0 %v1439, 126
        %v1446 = vpop.permute.xlu0 %1445
        %v1450 = vadd.f32 %v1375, %v1442
        %v1451 = vadd.f32 %v1376, %v1444
        %v1452 = vadd.f32 %v1377, %v1446
        %s1453 = sld [smem:[#allocation5 + $0x30]]
        %v1454 = vstv %s1453
        %v1455 = vmul.f32 %v1454, %v1114
        %v1456 = vmul.f32 %v1454, %v1119
        %v1457 = vmul.f32 %v1454, %v1124
        %v1461 = vrot.slane %v1455, 1
        %v1462 = vrot.slane %v1456, 1
        %v1463 = vsel %vm566, %v1461, %v1462
        %v1464 = vrot.slane %v1457, 1
        %v1465 = vsel %vm566, %v1462, %v1464
        %1466 = vrot.lane.b32.xlu0 %v1463, 126
        %v1467 = vpop.permute.xlu0 %1466
        %1468 = vrot.lane.b32.xlu0 %v1465, 126
        %v1469 = vpop.permute.xlu0 %1468
        %1470 = vrot.lane.b32.xlu0 %v1464, 126
        %v1471 = vpop.permute.xlu0 %1470
        %v1475 = vadd.f32 %v1400, %v1467
        %v1476 = vadd.f32 %v1401, %v1469
        %v1477 = vadd.f32 %v1402, %v1471
        %s1478 = sld [smem:[#allocation5 + $0x1d]]
        %v1479 = vstv %s1478
        %v1480 = vmul.f32 %v1479, %v1114
        %v1481 = vmul.f32 %v1479, %v1119
        %v1482 = vmul.f32 %v1479, %v1124
        %v1486 = vrot.slane %v1480, 2
        %v1487 = vrot.slane %v1481, 2
        %v1488 = vsel %vm774, %v1486, %v1487
        %v1489 = vrot.slane %v1482, 2
        %v1490 = vsel %vm774, %v1487, %v1489
        %v1494 = vadd.f32 %v1425, %v1488
        %v1495 = vadd.f32 %v1426, %v1490
        %v1496 = vadd.f32 %v1427, %v1489
        %s1497 = sld [smem:[#allocation5 + $0x26]]
        %v1498 = vstv %s1497
        %v1499 = vmul.f32 %v1498, %v1114
        %v1500 = vmul.f32 %v1498, %v1119
        %v1501 = vmul.f32 %v1498, %v1124
        %v1505 = vrot.slane %v1499, 2
        %v1506 = vrot.slane %v1500, 2
        %v1507 = vsel %vm774, %v1505, %v1506
        %v1508 = vrot.slane %v1501, 2
        %v1509 = vsel %vm774, %v1506, %v1508
        %v1513 = vadd.f32 %v1450, %v1507
        %v1514 = vadd.f32 %v1451, %v1509
        %v1515 = vadd.f32 %v1452, %v1508
        %s1516 = sld [smem:[#allocation5 + $0x2f]]
        %v1517 = vstv %s1516
        %v1518 = vmul.f32 %v1517, %v1114
        %v1519 = vmul.f32 %v1517, %v1119
        %v1520 = vmul.f32 %v1517, %v1124
        %v1524 = vrot.slane %v1518, 2
        %v1525 = vrot.slane %v1519, 2
        %v1526 = vsel %vm774, %v1524, %v1525
        %v1527 = vrot.slane %v1520, 2
        %v1528 = vsel %vm774, %v1525, %v1527
        %v1532 = vadd.f32 %v1475, %v1526
        %v1533 = vadd.f32 %v1476, %v1528
        %v1534 = vadd.f32 %v1477, %v1527
        %s1535 = sld [smem:[#allocation5 + $0x1c]]
        %v1536 = vstv %s1535
        %v1537 = vmul.f32 %v1536, %v1114
        %v1538 = vmul.f32 %v1536, %v1119
        %v1539 = vmul.f32 %v1536, %v1124
        %v1543 = vrot.slane %v1537, 2
        %v1544 = vrot.slane %v1538, 2
        %v1545 = vsel %vm774, %v1543, %v1544
        %v1546 = vrot.slane %v1539, 2
        %v1547 = vsel %vm774, %v1544, %v1546
        %1548 = vrot.lane.b32.xlu0 %v1545, 127
        %v1549 = vpop.permute.xlu0 %1548
        %1550 = vrot.lane.b32.xlu0 %v1547, 127
        %v1551 = vpop.permute.xlu0 %1550
        %1552 = vrot.lane.b32.xlu0 %v1546, 127
        %v1553 = vpop.permute.xlu0 %1552
        %v1557 = vadd.f32 %v1494, %v1549
        %v1558 = vadd.f32 %v1495, %v1551
        %v1559 = vadd.f32 %v1496, %v1553
        %s1560 = sld [smem:[#allocation5 + $0x25]]
        %v1561 = vstv %s1560
        %v1562 = vmul.f32 %v1561, %v1114
        %v1563 = vmul.f32 %v1561, %v1119
        %v1564 = vmul.f32 %v1561, %v1124
        %v1568 = vrot.slane %v1562, 2
        %v1569 = vrot.slane %v1563, 2
        %v1570 = vsel %vm774, %v1568, %v1569
        %v1571 = vrot.slane %v1564, 2
        %v1572 = vsel %vm774, %v1569, %v1571
        %1573 = vrot.lane.b32.xlu0 %v1570, 127
        %v1574 = vpop.permute.xlu0 %1573
        %1575 = vrot.lane.b32.xlu0 %v1572, 127
        %v1576 = vpop.permute.xlu0 %1575
        %1577 = vrot.lane.b32.xlu0 %v1571, 127
        %v1578 = vpop.permute.xlu0 %1577
        %v1582 = vadd.f32 %v1513, %v1574
        %v1583 = vadd.f32 %v1514, %v1576
        %v1584 = vadd.f32 %v1515, %v1578
        %s1585 = sld [smem:[#allocation5 + $0x2e]]
        %v1586 = vstv %s1585
        %v1587 = vmul.f32 %v1586, %v1114
        %v1588 = vmul.f32 %v1586, %v1119
        %v1589 = vmul.f32 %v1586, %v1124
        %v1593 = vrot.slane %v1587, 2
        %v1594 = vrot.slane %v1588, 2
        %v1595 = vsel %vm774, %v1593, %v1594
        %v1596 = vrot.slane %v1589, 2
        %v1597 = vsel %vm774, %v1594, %v1596
        %1598 = vrot.lane.b32.xlu0 %v1595, 127
        %v1599 = vpop.permute.xlu0 %1598
        %1600 = vrot.lane.b32.xlu0 %v1597, 127
        %v1601 = vpop.permute.xlu0 %1600
        %1602 = vrot.lane.b32.xlu0 %v1596, 127
        %v1603 = vpop.permute.xlu0 %1602
        %v1607 = vadd.f32 %v1532, %v1599
        %v1608 = vadd.f32 %v1533, %v1601
        %v1609 = vadd.f32 %v1534, %v1603
        %s1610 = sld [smem:[#allocation5 + $0x1b]]
        %v1611 = vstv %s1610
        %v1612 = vmul.f32 %v1611, %v1114
        %v1613 = vmul.f32 %v1611, %v1119
        %v1614 = vmul.f32 %v1611, %v1124
        %v1618 = vrot.slane %v1612, 2
        %v1619 = vrot.slane %v1613, 2
        %v1620 = vsel %vm774, %v1618, %v1619
        %v1621 = vrot.slane %v1614, 2
        %v1622 = vsel %vm774, %v1619, %v1621
        %1623 = vrot.lane.b32.xlu0 %v1620, 126
        %v1624 = vpop.permute.xlu0 %1623
        %1625 = vrot.lane.b32.xlu0 %v1622, 126
        %v1626 = vpop.permute.xlu0 %1625
        %1627 = vrot.lane.b32.xlu0 %v1621, 126
        %v1628 = vpop.permute.xlu0 %1627
        %v1632 = vadd.f32 %v1557, %v1624
        %v1633 = vadd.f32 %v1558, %v1626
        %v1634 = vadd.f32 %v1559, %v1628
        %s1635 = sld [smem:[#allocation5 + $0x24]]
        %v1636 = vstv %s1635
        %v1637 = vmul.f32 %v1636, %v1114
        %v1638 = vmul.f32 %v1636, %v1119
        %v1639 = vmul.f32 %v1636, %v1124
        %v1643 = vrot.slane %v1637, 2
        %v1644 = vrot.slane %v1638, 2
        %v1645 = vsel %vm774, %v1643, %v1644
        %v1646 = vrot.slane %v1639, 2
        %v1647 = vsel %vm774, %v1644, %v1646
        %1648 = vrot.lane.b32.xlu0 %v1645, 126
        %v1649 = vpop.permute.xlu0 %1648
        %1650 = vrot.lane.b32.xlu0 %v1647, 126
        %v1651 = vpop.permute.xlu0 %1650
        %1652 = vrot.lane.b32.xlu0 %v1646, 126
        %v1653 = vpop.permute.xlu0 %1652
        %v1657 = vadd.f32 %v1582, %v1649
        %v1658 = vadd.f32 %v1583, %v1651
        %v1659 = vadd.f32 %v1584, %v1653
        %s1660 = sld [smem:[#allocation5 + $0x2d]]
        %v1661 = vstv %s1660
        %v1662 = vmul.f32 %v1661, %v1114
        %v1663 = vmul.f32 %v1661, %v1119
        %v1664 = vmul.f32 %v1661, %v1124
        %v1668 = vrot.slane %v1662, 2
        %v1669 = vrot.slane %v1663, 2
        %v1670 = vsel %vm774, %v1668, %v1669
        %v1671 = vrot.slane %v1664, 2
        %v1672 = vsel %vm774, %v1669, %v1671
        %1673 = vrot.lane.b32.xlu0 %v1670, 126
        %v1674 = vpop.permute.xlu0 %1673
        %1675 = vrot.lane.b32.xlu0 %v1672, 126
        %v1676 = vpop.permute.xlu0 %1675
        %1677 = vrot.lane.b32.xlu0 %v1671, 126
        %v1678 = vpop.permute.xlu0 %1677
        %v1682 = vadd.f32 %v1607, %v1674
        %v1683 = vadd.f32 %v1608, %v1676
        %v1684 = vadd.f32 %v1609, %v1678
        %v1686 = vsel %vm251, %v242, 0
        %1688 = vmatprep.subr.mxu0 0.0
        %1689 = vmatpush1.msra.mxu0 %v239
        %1690 = vmatprep.subr.mxu0 0.0
        %1691 = vmatpush1.msra.mxu0 0.0
        %1692 = vmatprep.subr.mxu0 0.0
        %1693 = vmatpush1.msra.mxu0 0.0
        %1694 = vmatprep.subr.mxu0 0.0
        %1695 = vmatpush1.msra.mxu0 0.0
        %1696 = vmatprep.subr.mxu0 0.0
        %1697 = vmatpush1.msra.mxu0 0.0
        %1698 = vmatprep.subr.mxu0 0.0
        %1699 = vmatpush1.msra.mxu0 0.0
        %1700 = vmatprep.subr.mxu0 0.0
        %1701 = vmatpush1.msra.mxu0 0.0
        %1702 = vmatprep.subr.mxu0 0.0
        %1703 = vmatpush1.msra.mxu0 0.0
        %1704 = vmatprep.subr.mxu0 0.0
        %1705 = vmatpush1.msra.mxu0 0.0
        %1706 = vmatprep.subr.mxu0 0.0
        %1707 = vmatpush1.msra.mxu0 0.0
        %1708 = vmatprep.subr.mxu0 0.0
        %1709 = vmatpush1.msra.mxu0 0.0
        %1710 = vmatprep.subr.mxu0 0.0
        %1711 = vmatpush1.msra.mxu0 0.0
        %1712 = vmatprep.subr.mxu0 0.0
        %1713 = vmatpush1.msra.mxu0 0.0
        %1714 = vmatprep.subr.mxu0 0.0
        %1715 = vmatpush1.msra.mxu0 0.0
        %1716 = vmatprep.subr.mxu0 0.0
        %1717 = vmatpush1.msra.mxu0 0.0
        %1718 = vmatprep.subr.mxu0 0.0
        %1719 = vmatpush1.msra.mxu0 0.0
        %1720 = vmatprep.subr.mxu0 0.0
        %1721 = vmatpush1.msra.mxu0 0.0
        %1722 = vmatprep.subr.mxu0 0.0
        %1723 = vmatpush1.msra.mxu0 0.0
        %1724 = vmatprep.subr.mxu0 0.0
        %1725 = vmatpush1.msra.mxu0 0.0
        %1726 = vmatprep.subr.mxu0 0.0
        %1727 = vmatpush1.msra.mxu0 0.0
        %1728 = vmatprep.subr.mxu0 0.0
        %1729 = vmatpush1.msra.mxu0 0.0
        %1730 = vmatprep.subr.mxu0 0.0
        %1731 = vmatpush1.msra.mxu0 0.0
        %1732 = vmatprep.subr.mxu0 0.0
        %1733 = vmatpush1.msra.mxu0 0.0
        %1734 = vmatprep.subr.mxu0 0.0
        %1735 = vmatpush1.msra.mxu0 0.0
        %1736 = vmatprep.subr.mxu0 0.0
        %1737 = vmatpush1.msra.mxu0 0.0
        %1738 = vmatprep.subr.mxu0 0.0
        %1739 = vmatpush1.msra.mxu0 0.0
        %1740 = vmatprep.subr.mxu0 0.0
        %1741 = vmatpush1.msra.mxu0 0.0
        %1742 = vmatprep.subr.mxu0 0.0
        %1743 = vmatpush1.msra.mxu0 0.0
        %1744 = vmatprep.subr.mxu0 0.0
        %1745 = vmatpush1.msra.mxu0 0.0
        %1746 = vmatprep.subr.mxu0 0.0
        %1747 = vmatpush1.msra.mxu0 0.0
        %1748 = vmatprep.subr.mxu0 0.0
        %1749 = vmatpush1.msra.mxu0 0.0
        %1750 = vmatprep.subr.mxu0 0.0
        %1751 = vmatpush1.msra.mxu0 0.0
        %1752 = vmatprep.mubr.f32.mxu0 0.0
        %1753 = vmatmul.mubr.f32.gmra.mrb[0].mxu0 %v1686
        %v1754 = vpop.f32.mrb[0].mxu0
        %v1755 = vadd.f32 0.0, %v1754
        %v1756 = vpop.f32.mrb[0].mxu0
        %1757 = vdwg.mxu0
        %1758 = vmatprep.subr.mxu0 0.0
        %1759 = vmatpush1.msra.mxu0 %v1755
        %1760 = vmatprep.subr.mxu0 0.0
        %1761 = vmatpush1.msra.mxu0 0.0
        %1762 = vmatprep.subr.mxu0 0.0
        %1763 = vmatpush1.msra.mxu0 0.0
        %1764 = vmatprep.subr.mxu0 0.0
        %1765 = vmatpush1.msra.mxu0 0.0
        %1766 = vmatprep.subr.mxu0 0.0
        %1767 = vmatpush1.msra.mxu0 0.0
        %1768 = vmatprep.subr.mxu0 0.0
        %1769 = vmatpush1.msra.mxu0 0.0
        %1770 = vmatprep.subr.mxu0 0.0
        %1771 = vmatpush1.msra.mxu0 0.0
        %1772 = vmatprep.subr.mxu0 0.0
        %1773 = vmatpush1.msra.mxu0 0.0
        %1774 = vmatprep.subr.mxu0 0.0
        %1775 = vmatpush1.msra.mxu0 0.0
        %1776 = vmatprep.subr.mxu0 0.0
        %1777 = vmatpush1.msra.mxu0 0.0
        %1778 = vmatprep.subr.mxu0 0.0
        %1779 = vmatpush1.msra.mxu0 0.0
        %1780 = vmatprep.subr.mxu0 0.0
        %1781 = vmatpush1.msra.mxu0 0.0
        %1782 = vmatprep.subr.mxu0 0.0
        %1783 = vmatpush1.msra.mxu0 0.0
        %1784 = vmatprep.subr.mxu0 0.0
        %1785 = vmatpush1.msra.mxu0 0.0
        %1786 = vmatprep.subr.mxu0 0.0
        %1787 = vmatpush1.msra.mxu0 0.0
        %1788 = vmatprep.subr.mxu0 0.0
        %1789 = vmatpush1.msra.mxu0 0.0
        %1790 = vmatprep.subr.mxu0 0.0
        %1791 = vmatpush1.msra.mxu0 0.0
        %1792 = vmatprep.subr.mxu0 0.0
        %1793 = vmatpush1.msra.mxu0 0.0
        %1794 = vmatprep.subr.mxu0 0.0
        %1795 = vmatpush1.msra.mxu0 0.0
        %1796 = vmatprep.subr.mxu0 0.0
        %1797 = vmatpush1.msra.mxu0 0.0
        %1798 = vmatprep.subr.mxu0 0.0
        %1799 = vmatpush1.msra.mxu0 0.0
        %1800 = vmatprep.subr.mxu0 0.0
        %1801 = vmatpush1.msra.mxu0 0.0
        %1802 = vmatprep.subr.mxu0 0.0
        %1803 = vmatpush1.msra.mxu0 0.0
        %1804 = vmatprep.subr.mxu0 0.0
        %1805 = vmatpush1.msra.mxu0 0.0
        %1806 = vmatprep.subr.mxu0 0.0
        %1807 = vmatpush1.msra.mxu0 0.0
        %1808 = vmatprep.subr.mxu0 0.0
        %1809 = vmatpush1.msra.mxu0 0.0
        %1810 = vmatprep.subr.mxu0 0.0
        %1811 = vmatpush1.msra.mxu0 0.0
        %1812 = vmatprep.subr.mxu0 0.0
        %1813 = vmatpush1.msra.mxu0 0.0
        %1814 = vmatprep.subr.mxu0 0.0
        %1815 = vmatpush1.msra.mxu0 0.0
        %1816 = vmatprep.subr.mxu0 0.0
        %1817 = vmatpush1.msra.mxu0 0.0
        %1818 = vmatprep.subr.mxu0 0.0
        %1819 = vmatpush1.msra.mxu0 0.0
        %1820 = vmatprep.subr.mxu0 0.0
        %1821 = vmatpush1.msra.mxu0 0.0
        %1822 = vmatprep.mubr.f32.mxu0 0.0
        %1823 = vmatmul.mubr.f32.gmra.mrb[0].mxu0 %v326
        %v1824 = vpop.f32.mrb[0].mxu0
        %v1825 = vadd.f32 0.0, %v1824
        %v1826 = vpop.f32.mrb[0].mxu0
        %1827 = vmatprep.mubr.f32.mxu0 0.0
        %1828 = vmatmul.mubr.f32.gmra.mrb[0].mxu0 %v329
        %v1829 = vpop.f32.mrb[0].mxu0
        %v1830 = vadd.f32 0.0, %v1829
        %v1831 = vpop.f32.mrb[0].mxu0
        %1832 = vmatprep.mubr.f32.mxu0 0.0
        %1833 = vmatmul.mubr.f32.gmra.mrb[0].mxu0 %v332
        %v1834 = vpop.f32.mrb[0].mxu0
        %v1835 = vadd.f32 0.0, %v1834
        %v1836 = vpop.f32.mrb[0].mxu0
        %1837 = vdwg.mxu0
        %s1838 = sld [smem:[#allocation5 + $0x3e]]
        %v1839 = vstv %s1838
        %v1840 = vmul.f32 %v1839, %v1825
        %v1841 = vmul.f32 %v1839, %v1830
        %v1842 = vmul.f32 %v1839, %v1835
        %v1843 = vadd.f32 %v1632, %v1840
        %v1844 = vadd.f32 %v1633, %v1841
        %v1845 = vadd.f32 %v1634, %v1842
        %s1846 = sld [smem:[#allocation5 + $0x47]]
        %v1847 = vstv %s1846
        %v1848 = vmul.f32 %v1847, %v1825
        %v1849 = vmul.f32 %v1847, %v1830
        %v1850 = vmul.f32 %v1847, %v1835
        %v1851 = vadd.f32 %v1657, %v1848
        %v1852 = vadd.f32 %v1658, %v1849
        %v1853 = vadd.f32 %v1659, %v1850
        %s1854 = sld [smem:[#allocation5 + $0x50]]
        %v1855 = vstv %s1854
        %v1856 = vmul.f32 %v1855, %v1825
        %v1857 = vmul.f32 %v1855, %v1830
        %v1858 = vmul.f32 %v1855, %v1835
        %v1859 = vadd.f32 %v1682, %v1856
        %v1860 = vadd.f32 %v1683, %v1857
        %v1861 = vadd.f32 %v1684, %v1858
        %s1862 = sld [smem:[#allocation5 + $0x3d]]
        %v1863 = vstv %s1862
        %v1864 = vmul.f32 %v1863, %v1825
        %v1865 = vmul.f32 %v1863, %v1830
        %v1866 = vmul.f32 %v1863, %v1835
        %1870 = vrot.lane.b32.xlu0 %v1864, 127
        %v1871 = vpop.permute.xlu0 %1870
        %1872 = vrot.lane.b32.xlu0 %v1865, 127
        %v1873 = vpop.permute.xlu0 %1872
        %1874 = vrot.lane.b32.xlu0 %v1866, 127
        %v1875 = vpop.permute.xlu0 %1874
        %v1879 = vadd.f32 %v1843, %v1871
        %v1880 = vadd.f32 %v1844, %v1873
        %v1881 = vadd.f32 %v1845, %v1875
        %s1882 = sld [smem:[#allocation5 + $0x46]]
        %v1883 = vstv %s1882
        %v1884 = vmul.f32 %v1883, %v1825
        %v1885 = vmul.f32 %v1883, %v1830
        %v1886 = vmul.f32 %v1883, %v1835
        %1890 = vrot.lane.b32.xlu0 %v1884, 127
        %v1891 = vpop.permute.xlu0 %1890
        %1892 = vrot.lane.b32.xlu0 %v1885, 127
        %v1893 = vpop.permute.xlu0 %1892
        %1894 = vrot.lane.b32.xlu0 %v1886, 127
        %v1895 = vpop.permute.xlu0 %1894
        %v1899 = vadd.f32 %v1851, %v1891
        %v1900 = vadd.f32 %v1852, %v1893
        %v1901 = vadd.f32 %v1853, %v1895
        %s1902 = sld [smem:[#allocation5 + $0x4f]]
        %v1903 = vstv %s1902
        %v1904 = vmul.f32 %v1903, %v1825
        %v1905 = vmul.f32 %v1903, %v1830
        %v1906 = vmul.f32 %v1903, %v1835
        %1910 = vrot.lane.b32.xlu0 %v1904, 127
        %v1911 = vpop.permute.xlu0 %1910
        %1912 = vrot.lane.b32.xlu0 %v1905, 127
        %v1913 = vpop.permute.xlu0 %1912
        %1914 = vrot.lane.b32.xlu0 %v1906, 127
        %v1915 = vpop.permute.xlu0 %1914
        %v1919 = vadd.f32 %v1859, %v1911
        %v1920 = vadd.f32 %v1860, %v1913
        %v1921 = vadd.f32 %v1861, %v1915
        %s1922 = sld [smem:[#allocation5 + $0x3c]]
        %v1923 = vstv %s1922
        %v1924 = vmul.f32 %v1923, %v1825
        %v1925 = vmul.f32 %v1923, %v1830
        %v1926 = vmul.f32 %v1923, %v1835
        %1930 = vrot.lane.b32.xlu0 %v1924, 126
        %v1931 = vpop.permute.xlu0 %1930
        %1932 = vrot.lane.b32.xlu0 %v1925, 126
        %v1933 = vpop.permute.xlu0 %1932
        %1934 = vrot.lane.b32.xlu0 %v1926, 126
        %v1935 = vpop.permute.xlu0 %1934
        %v1939 = vadd.f32 %v1879, %v1931
        %v1940 = vadd.f32 %v1880, %v1933
        %v1941 = vadd.f32 %v1881, %v1935
        %s1942 = sld [smem:[#allocation5 + $0x45]]
        %v1943 = vstv %s1942
        %v1944 = vmul.f32 %v1943, %v1825
        %v1945 = vmul.f32 %v1943, %v1830
        %v1946 = vmul.f32 %v1943, %v1835
        %1950 = vrot.lane.b32.xlu0 %v1944, 126
        %v1951 = vpop.permute.xlu0 %1950
        %1952 = vrot.lane.b32.xlu0 %v1945, 126
        %v1953 = vpop.permute.xlu0 %1952
        %1954 = vrot.lane.b32.xlu0 %v1946, 126
        %v1955 = vpop.permute.xlu0 %1954
        %v1959 = vadd.f32 %v1899, %v1951
        %v1960 = vadd.f32 %v1900, %v1953
        %v1961 = vadd.f32 %v1901, %v1955
        %s1962 = sld [smem:[#allocation5 + $0x4e]]
        %v1963 = vstv %s1962
        %v1964 = vmul.f32 %v1963, %v1825
        %v1965 = vmul.f32 %v1963, %v1830
        %v1966 = vmul.f32 %v1963, %v1835
        %1970 = vrot.lane.b32.xlu0 %v1964, 126
        %v1971 = vpop.permute.xlu0 %1970
        %1972 = vrot.lane.b32.xlu0 %v1965, 126
        %v1973 = vpop.permute.xlu0 %1972
        %1974 = vrot.lane.b32.xlu0 %v1966, 126
        %v1975 = vpop.permute.xlu0 %1974
        %v1979 = vadd.f32 %v1919, %v1971
        %v1980 = vadd.f32 %v1920, %v1973
        %v1981 = vadd.f32 %v1921, %v1975
        %s1982 = sld [smem:[#allocation5 + $0x3b]]
        %v1983 = vstv %s1982
        %v1984 = vmul.f32 %v1983, %v1825
        %v1985 = vmul.f32 %v1983, %v1830
        %v1986 = vmul.f32 %v1983, %v1835
        %v1990 = vrot.slane %v1984, 1
        %v1991 = vrot.slane %v1985, 1
        %v1992 = vsel %vm566, %v1990, %v1991
        %v1993 = vrot.slane %v1986, 1
        %v1994 = vsel %vm566, %v1991, %v1993
        %v1998 = vadd.f32 %v1939, %v1992
        %v1999 = vadd.f32 %v1940, %v1994
        %v2000 = vadd.f32 %v1941, %v1993
        %s2001 = sld [smem:[#allocation5 + $0x44]]
        %v2002 = vstv %s2001
        %v2003 = vmul.f32 %v2002, %v1825
        %v2004 = vmul.f32 %v2002, %v1830
        %v2005 = vmul.f32 %v2002, %v1835
        %v2009 = vrot.slane %v2003, 1
        %v2010 = vrot.slane %v2004, 1
        %v2011 = vsel %vm566, %v2009, %v2010
        %v2012 = vrot.slane %v2005, 1
        %v2013 = vsel %vm566, %v2010, %v2012
        %v2017 = vadd.f32 %v1959, %v2011
        %v2018 = vadd.f32 %v1960, %v2013
        %v2019 = vadd.f32 %v1961, %v2012
        %s2020 = sld [smem:[#allocation5 + $0x4d]]
        %v2021 = vstv %s2020
        %v2022 = vmul.f32 %v2021, %v1825
        %v2023 = vmul.f32 %v2021, %v1830
        %v2024 = vmul.f32 %v2021, %v1835
        %v2028 = vrot.slane %v2022, 1
        %v2029 = vrot.slane %v2023, 1
        %v2030 = vsel %vm566, %v2028, %v2029
        %v2031 = vrot.slane %v2024, 1
        %v2032 = vsel %vm566, %v2029, %v2031
        %v2036 = vadd.f32 %v1979, %v2030
        %v2037 = vadd.f32 %v1980, %v2032
        %v2038 = vadd.f32 %v1981, %v2031
        %s2039 = sld [smem:[#allocation5 + $0x3a]]
        %v2040 = vstv %s2039
        %v2041 = vmul.f32 %v2040, %v1825
        %v2042 = vmul.f32 %v2040, %v1830
        %v2043 = vmul.f32 %v2040, %v1835
        %v2047 = vrot.slane %v2041, 1
        %v2048 = vrot.slane %v2042, 1
        %v2049 = vsel %vm566, %v2047, %v2048
        %v2050 = vrot.slane %v2043, 1
        %v2051 = vsel %vm566, %v2048, %v2050
        %2052 = vrot.lane.b32.xlu0 %v2049, 127
        %v2053 = vpop.permute.xlu0 %2052
        %2054 = vrot.lane.b32.xlu0 %v2051, 127
        %v2055 = vpop.permute.xlu0 %2054
        %2056 = vrot.lane.b32.xlu0 %v2050, 127
        %v2057 = vpop.permute.xlu0 %2056
        %v2061 = vadd.f32 %v1998, %v2053
        %v2062 = vadd.f32 %v1999, %v2055
        %v2063 = vadd.f32 %v2000, %v2057
        %s2064 = sld [smem:[#allocation5 + $0x43]]
        %v2065 = vstv %s2064
        %v2066 = vmul.f32 %v2065, %v1825
        %v2067 = vmul.f32 %v2065, %v1830
        %v2068 = vmul.f32 %v2065, %v1835
        %v2072 = vrot.slane %v2066, 1
        %v2073 = vrot.slane %v2067, 1
        %v2074 = vsel %vm566, %v2072, %v2073
        %v2075 = vrot.slane %v2068, 1
        %v2076 = vsel %vm566, %v2073, %v2075
        %2077 = vrot.lane.b32.xlu0 %v2074, 127
        %v2078 = vpop.permute.xlu0 %2077
        %2079 = vrot.lane.b32.xlu0 %v2076, 127
        %v2080 = vpop.permute.xlu0 %2079
        %2081 = vrot.lane.b32.xlu0 %v2075, 127
        %v2082 = vpop.permute.xlu0 %2081
        %v2086 = vadd.f32 %v2017, %v2078
        %v2087 = vadd.f32 %v2018, %v2080
        %v2088 = vadd.f32 %v2019, %v2082
        %s2089 = sld [smem:[#allocation5 + $0x4c]]
        %v2090 = vstv %s2089
        %v2091 = vmul.f32 %v2090, %v1825
        %v2092 = vmul.f32 %v2090, %v1830
        %v2093 = vmul.f32 %v2090, %v1835
        %v2097 = vrot.slane %v2091, 1
        %v2098 = vrot.slane %v2092, 1
        %v2099 = vsel %vm566, %v2097, %v2098
        %v2100 = vrot.slane %v2093, 1
        %v2101 = vsel %vm566, %v2098, %v2100
        %2102 = vrot.lane.b32.xlu0 %v2099, 127
        %v2103 = vpop.permute.xlu0 %2102
        %2104 = vrot.lane.b32.xlu0 %v2101, 127
        %v2105 = vpop.permute.xlu0 %2104
        %2106 = vrot.lane.b32.xlu0 %v2100, 127
        %v2107 = vpop.permute.xlu0 %2106
        %v2111 = vadd.f32 %v2036, %v2103
        %v2112 = vadd.f32 %v2037, %v2105
        %v2113 = vadd.f32 %v2038, %v2107
        %s2114 = sld [smem:[#allocation5 + $0x39]]
        %v2115 = vstv %s2114
        %v2116 = vmul.f32 %v2115, %v1825
        %v2117 = vmul.f32 %v2115, %v1830
        %v2118 = vmul.f32 %v2115, %v1835
        %v2122 = vrot.slane %v2116, 1
        %v2123 = vrot.slane %v2117, 1
        %v2124 = vsel %vm566, %v2122, %v2123
        %v2125 = vrot.slane %v2118, 1
        %v2126 = vsel %vm566, %v2123, %v2125
        %2127 = vrot.lane.b32.xlu0 %v2124, 126
        %v2128 = vpop.permute.xlu0 %2127
        %2129 = vrot.lane.b32.xlu0 %v2126, 126
        %v2130 = vpop.permute.xlu0 %2129
        %2131 = vrot.lane.b32.xlu0 %v2125, 126
        %v2132 = vpop.permute.xlu0 %2131
        %v2136 = vadd.f32 %v2061, %v2128
        %v2137 = vadd.f32 %v2062, %v2130
        %v2138 = vadd.f32 %v2063, %v2132
        %s2139 = sld [smem:[#allocation5 + $0x42]]
        %v2140 = vstv %s2139
        %v2141 = vmul.f32 %v2140, %v1825
        %v2142 = vmul.f32 %v2140, %v1830
        %v2143 = vmul.f32 %v2140, %v1835
        %v2147 = vrot.slane %v2141, 1
        %v2148 = vrot.slane %v2142, 1
        %v2149 = vsel %vm566, %v2147, %v2148
        %v2150 = vrot.slane %v2143, 1
        %v2151 = vsel %vm566, %v2148, %v2150
        %2152 = vrot.lane.b32.xlu0 %v2149, 126
        %v2153 = vpop.permute.xlu0 %2152
        %2154 = vrot.lane.b32.xlu0 %v2151, 126
        %v2155 = vpop.permute.xlu0 %2154
        %2156 = vrot.lane.b32.xlu0 %v2150, 126
        %v2157 = vpop.permute.xlu0 %2156
        %v2161 = vadd.f32 %v2086, %v2153
        %v2162 = vadd.f32 %v2087, %v2155
        %v2163 = vadd.f32 %v2088, %v2157
        %s2164 = sld [smem:[#allocation5 + $0x4b]]
        %v2165 = vstv %s2164
        %v2166 = vmul.f32 %v2165, %v1825
        %v2167 = vmul.f32 %v2165, %v1830
        %v2168 = vmul.f32 %v2165, %v1835
        %v2172 = vrot.slane %v2166, 1
        %v2173 = vrot.slane %v2167, 1
        %v2174 = vsel %vm566, %v2172, %v2173
        %v2175 = vrot.slane %v2168, 1
        %v2176 = vsel %vm566, %v2173, %v2175
        %2177 = vrot.lane.b32.xlu0 %v2174, 126
        %v2178 = vpop.permute.xlu0 %2177
        %2179 = vrot.lane.b32.xlu0 %v2176, 126
        %v2180 = vpop.permute.xlu0 %2179
        %2181 = vrot.lane.b32.xlu0 %v2175, 126
        %v2182 = vpop.permute.xlu0 %2181
        %v2186 = vadd.f32 %v2111, %v2178
        %v2187 = vadd.f32 %v2112, %v2180
        %v2188 = vadd.f32 %v2113, %v2182
        %s2189 = sld [smem:[#allocation5 + $0x38]]
        %v2190 = vstv %s2189
        %v2191 = vmul.f32 %v2190, %v1825
        %v2192 = vmul.f32 %v2190, %v1830
        %v2193 = vmul.f32 %v2190, %v1835
        %v2197 = vrot.slane %v2191, 2
        %v2198 = vrot.slane %v2192, 2
        %v2199 = vsel %vm774, %v2197, %v2198
        %v2200 = vrot.slane %v2193, 2
        %v2201 = vsel %vm774, %v2198, %v2200
        %v2205 = vadd.f32 %v2136, %v2199
        %v2206 = vadd.f32 %v2137, %v2201
        %v2207 = vadd.f32 %v2138, %v2200
        %s2208 = sld [smem:[#allocation5 + $0x41]]
        %v2209 = vstv %s2208
        %v2210 = vmul.f32 %v2209, %v1825
        %v2211 = vmul.f32 %v2209, %v1830
        %v2212 = vmul.f32 %v2209, %v1835
        %v2216 = vrot.slane %v2210, 2
        %v2217 = vrot.slane %v2211, 2
        %v2218 = vsel %vm774, %v2216, %v2217
        %v2219 = vrot.slane %v2212, 2
        %v2220 = vsel %vm774, %v2217, %v2219
        %v2224 = vadd.f32 %v2161, %v2218
        %v2225 = vadd.f32 %v2162, %v2220
        %v2226 = vadd.f32 %v2163, %v2219
        %s2227 = sld [smem:[#allocation5 + $0x4a]]
        %v2228 = vstv %s2227
        %v2229 = vmul.f32 %v2228, %v1825
        %v2230 = vmul.f32 %v2228, %v1830
        %v2231 = vmul.f32 %v2228, %v1835
        %v2235 = vrot.slane %v2229, 2
        %v2236 = vrot.slane %v2230, 2
        %v2237 = vsel %vm774, %v2235, %v2236
        %v2238 = vrot.slane %v2231, 2
        %v2239 = vsel %vm774, %v2236, %v2238
        %v2243 = vadd.f32 %v2186, %v2237
        %v2244 = vadd.f32 %v2187, %v2239
        %v2245 = vadd.f32 %v2188, %v2238
        %s2246 = sld [smem:[#allocation5 + $0x37]]
        %v2247 = vstv %s2246
        %v2248 = vmul.f32 %v2247, %v1825
        %v2249 = vmul.f32 %v2247, %v1830
        %v2250 = vmul.f32 %v2247, %v1835
        %v2254 = vrot.slane %v2248, 2
        %v2255 = vrot.slane %v2249, 2
        %v2256 = vsel %vm774, %v2254, %v2255
        %v2257 = vrot.slane %v2250, 2
        %v2258 = vsel %vm774, %v2255, %v2257
        %2259 = vrot.lane.b32.xlu0 %v2256, 127
        %v2260 = vpop.permute.xlu0 %2259
        %2261 = vrot.lane.b32.xlu0 %v2258, 127
        %v2262 = vpop.permute.xlu0 %2261
        %2263 = vrot.lane.b32.xlu0 %v2257, 127
        %v2264 = vpop.permute.xlu0 %2263
        %v2268 = vadd.f32 %v2205, %v2260
        %v2269 = vadd.f32 %v2206, %v2262
        %v2270 = vadd.f32 %v2207, %v2264
        %s2271 = sld [smem:[#allocation5 + $0x40]]
        %v2272 = vstv %s2271
        %v2273 = vmul.f32 %v2272, %v1825
        %v2274 = vmul.f32 %v2272, %v1830
        %v2275 = vmul.f32 %v2272, %v1835
        %v2279 = vrot.slane %v2273, 2
        %v2280 = vrot.slane %v2274, 2
        %v2281 = vsel %vm774, %v2279, %v2280
        %v2282 = vrot.slane %v2275, 2
        %v2283 = vsel %vm774, %v2280, %v2282
        %2284 = vrot.lane.b32.xlu0 %v2281, 127
        %v2285 = vpop.permute.xlu0 %2284
        %2286 = vrot.lane.b32.xlu0 %v2283, 127
        %v2287 = vpop.permute.xlu0 %2286
        %2288 = vrot.lane.b32.xlu0 %v2282, 127
        %v2289 = vpop.permute.xlu0 %2288
        %v2293 = vadd.f32 %v2224, %v2285
        %v2294 = vadd.f32 %v2225, %v2287
        %v2295 = vadd.f32 %v2226, %v2289
        %s2296 = sld [smem:[#allocation5 + $0x49]]
        %v2297 = vstv %s2296
        %v2298 = vmul.f32 %v2297, %v1825
        %v2299 = vmul.f32 %v2297, %v1830
        %v2300 = vmul.f32 %v2297, %v1835
        %v2304 = vrot.slane %v2298, 2
        %v2305 = vrot.slane %v2299, 2
        %v2306 = vsel %vm774, %v2304, %v2305
        %v2307 = vrot.slane %v2300, 2
        %v2308 = vsel %vm774, %v2305, %v2307
        %2309 = vrot.lane.b32.xlu0 %v2306, 127
        %v2310 = vpop.permute.xlu0 %2309
        %2311 = vrot.lane.b32.xlu0 %v2308, 127
        %v2312 = vpop.permute.xlu0 %2311
        %2313 = vrot.lane.b32.xlu0 %v2307, 127
        %v2314 = vpop.permute.xlu0 %2313
        %v2318 = vadd.f32 %v2243, %v2310
        %v2319 = vadd.f32 %v2244, %v2312
        %v2320 = vadd.f32 %v2245, %v2314
        %s2321 = sld [smem:[#allocation5 + $0x36]]
        %v2322 = vstv %s2321
        %v2323 = vmul.f32 %v2322, %v1825
        %v2324 = vmul.f32 %v2322, %v1830
        %v2325 = vmul.f32 %v2322, %v1835
        %v2329 = vrot.slane %v2323, 2
        %v2330 = vrot.slane %v2324, 2
        %v2331 = vsel %vm774, %v2329, %v2330
        %v2332 = vrot.slane %v2325, 2
        %v2333 = vsel %vm774, %v2330, %v2332
        %2334 = vrot.lane.b32.xlu0 %v2331, 126
        %v2335 = vpop.permute.xlu0 %2334
        %2336 = vrot.lane.b32.xlu0 %v2333, 126
        %v2337 = vpop.permute.xlu0 %2336
        %2338 = vrot.lane.b32.xlu0 %v2332, 126
        %v2339 = vpop.permute.xlu0 %2338
        %v2343 = vadd.f32 %v2268, %v2335
        %v2344 = vadd.f32 %v2269, %v2337
        %v2345 = vadd.f32 %v2270, %v2339
        %s2346 = sld [smem:[#allocation5 + $0x3f]]
        %v2347 = vstv %s2346
        %v2348 = vmul.f32 %v2347, %v1825
        %v2349 = vmul.f32 %v2347, %v1830
        %v2350 = vmul.f32 %v2347, %v1835
        %v2354 = vrot.slane %v2348, 2
        %v2355 = vrot.slane %v2349, 2
        %v2356 = vsel %vm774, %v2354, %v2355
        %v2357 = vrot.slane %v2350, 2
        %v2358 = vsel %vm774, %v2355, %v2357
        %2359 = vrot.lane.b32.xlu0 %v2356, 126
        %v2360 = vpop.permute.xlu0 %2359
        %2361 = vrot.lane.b32.xlu0 %v2358, 126
        %v2362 = vpop.permute.xlu0 %2361
        %2363 = vrot.lane.b32.xlu0 %v2357, 126
        %v2364 = vpop.permute.xlu0 %2363
        %v2368 = vadd.f32 %v2293, %v2360
        %v2369 = vadd.f32 %v2294, %v2362
        %v2370 = vadd.f32 %v2295, %v2364
        %s2371 = sld [smem:[#allocation5 + $0x48]]
        %v2372 = vstv %s2371
        %v2373 = vmul.f32 %v2372, %v1825
        %v2374 = vmul.f32 %v2372, %v1830
        %v2375 = vmul.f32 %v2372, %v1835
        %v2379 = vrot.slane %v2373, 2
        %v2380 = vrot.slane %v2374, 2
        %v2381 = vsel %vm774, %v2379, %v2380
        %v2382 = vrot.slane %v2375, 2
        %v2383 = vsel %vm774, %v2380, %v2382
        %2384 = vrot.lane.b32.xlu0 %v2381, 126
        %v2385 = vpop.permute.xlu0 %2384
        %2386 = vrot.lane.b32.xlu0 %v2383, 126
        %v2387 = vpop.permute.xlu0 %2386
        %2388 = vrot.lane.b32.xlu0 %v2382, 126
        %v2389 = vpop.permute.xlu0 %2388
        %v2393 = vadd.f32 %v2318, %v2385
        %v2394 = vadd.f32 %v2319, %v2387
        %v2395 = vadd.f32 %v2320, %v2389
        %v2397 = vsel %vm251, %v243, 0
        %2399 = vmatprep.subr.mxu0 0.0
        %2400 = vmatpush1.msra.mxu0 %v239
        %2401 = vmatprep.subr.mxu0 0.0
        %2402 = vmatpush1.msra.mxu0 0.0
        %2403 = vmatprep.subr.mxu0 0.0
        %2404 = vmatpush1.msra.mxu0 0.0
        %2405 = vmatprep.subr.mxu0 0.0
        %2406 = vmatpush1.msra.mxu0 0.0
        %2407 = vmatprep.subr.mxu0 0.0
        %2408 = vmatpush1.msra.mxu0 0.0
        %2409 = vmatprep.subr.mxu0 0.0
        %2410 = vmatpush1.msra.mxu0 0.0
        %2411 = vmatprep.subr.mxu0 0.0
        %2412 = vmatpush1.msra.mxu0 0.0
        %2413 = vmatprep.subr.mxu0 0.0
        %2414 = vmatpush1.msra.mxu0 0.0
        %2415 = vmatprep.subr.mxu0 0.0
        %2416 = vmatpush1.msra.mxu0 0.0
        %2417 = vmatprep.subr.mxu0 0.0
        %2418 = vmatpush1.msra.mxu0 0.0
        %2419 = vmatprep.subr.mxu0 0.0
        %2420 = vmatpush1.msra.mxu0 0.0
        %2421 = vmatprep.subr.mxu0 0.0
        %2422 = vmatpush1.msra.mxu0 0.0
        %2423 = vmatprep.subr.mxu0 0.0
        %2424 = vmatpush1.msra.mxu0 0.0
        %2425 = vmatprep.subr.mxu0 0.0
        %2426 = vmatpush1.msra.mxu0 0.0
        %2427 = vmatprep.subr.mxu0 0.0
        %2428 = vmatpush1.msra.mxu0 0.0
        %2429 = vmatprep.subr.mxu0 0.0
        %2430 = vmatpush1.msra.mxu0 0.0
        %2431 = vmatprep.subr.mxu0 0.0
        %2432 = vmatpush1.msra.mxu0 0.0
        %2433 = vmatprep.subr.mxu0 0.0
        %2434 = vmatpush1.msra.mxu0 0.0
        %2435 = vmatprep.subr.mxu0 0.0
        %2436 = vmatpush1.msra.mxu0 0.0
        %2437 = vmatprep.subr.mxu0 0.0
        %2438 = vmatpush1.msra.mxu0 0.0
        %2439 = vmatprep.subr.mxu0 0.0
        %2440 = vmatpush1.msra.mxu0 0.0
        %2441 = vmatprep.subr.mxu0 0.0
        %2442 = vmatpush1.msra.mxu0 0.0
        %2443 = vmatprep.subr.mxu0 0.0
        %2444 = vmatpush1.msra.mxu0 0.0
        %2445 = vmatprep.subr.mxu0 0.0
        %2446 = vmatpush1.msra.mxu0 0.0
        %2447 = vmatprep.subr.mxu0 0.0
        %2448 = vmatpush1.msra.mxu0 0.0
        %2449 = vmatprep.subr.mxu0 0.0
        %2450 = vmatpush1.msra.mxu0 0.0
        %2451 = vmatprep.subr.mxu0 0.0
        %2452 = vmatpush1.msra.mxu0 0.0
        %2453 = vmatprep.subr.mxu0 0.0
        %2454 = vmatpush1.msra.mxu0 0.0
        %2455 = vmatprep.subr.mxu0 0.0
        %2456 = vmatpush1.msra.mxu0 0.0
        %2457 = vmatprep.subr.mxu0 0.0
        %2458 = vmatpush1.msra.mxu0 0.0
        %2459 = vmatprep.subr.mxu0 0.0
        %2460 = vmatpush1.msra.mxu0 0.0
        %2461 = vmatprep.subr.mxu0 0.0
        %2462 = vmatpush1.msra.mxu0 0.0
        %2463 = vmatprep.mubr.f32.mxu0 0.0
        %2464 = vmatmul.mubr.f32.gmra.mrb[0].mxu0 %v2397
        %v2465 = vpop.f32.mrb[0].mxu0
        %v2466 = vadd.f32 0.0, %v2465
        %v2467 = vpop.f32.mrb[0].mxu0
        %2468 = vdwg.mxu0
        %2469 = vmatprep.subr.mxu0 0.0
        %2470 = vmatpush1.msra.mxu0 %v2466
        %2471 = vmatprep.subr.mxu0 0.0
        %2472 = vmatpush1.msra.mxu0 0.0
        %2473 = vmatprep.subr.mxu0 0.0
        %2474 = vmatpush1.msra.mxu0 0.0
        %2475 = vmatprep.subr.mxu0 0.0
        %2476 = vmatpush1.msra.mxu0 0.0
        %2477 = vmatprep.subr.mxu0 0.0
        %2478 = vmatpush1.msra.mxu0 0.0
        %2479 = vmatprep.subr.mxu0 0.0
        %2480 = vmatpush1.msra.mxu0 0.0
        %2481 = vmatprep.subr.mxu0 0.0
        %2482 = vmatpush1.msra.mxu0 0.0
        %2483 = vmatprep.subr.mxu0 0.0
        %2484 = vmatpush1.msra.mxu0 0.0
        %2485 = vmatprep.subr.mxu0 0.0
        %2486 = vmatpush1.msra.mxu0 0.0
        %2487 = vmatprep.subr.mxu0 0.0
        %2488 = vmatpush1.msra.mxu0 0.0
        %2489 = vmatprep.subr.mxu0 0.0
        %2490 = vmatpush1.msra.mxu0 0.0
        %2491 = vmatprep.subr.mxu0 0.0
        %2492 = vmatpush1.msra.mxu0 0.0
        %2493 = vmatprep.subr.mxu0 0.0
        %2494 = vmatpush1.msra.mxu0 0.0
        %2495 = vmatprep.subr.mxu0 0.0
        %2496 = vmatpush1.msra.mxu0 0.0
        %2497 = vmatprep.subr.mxu0 0.0
        %2498 = vmatpush1.msra.mxu0 0.0
        %2499 = vmatprep.subr.mxu0 0.0
        %2500 = vmatpush1.msra.mxu0 0.0
        %2501 = vmatprep.subr.mxu0 0.0
        %2502 = vmatpush1.msra.mxu0 0.0
        %2503 = vmatprep.subr.mxu0 0.0
        %2504 = vmatpush1.msra.mxu0 0.0
        %2505 = vmatprep.subr.mxu0 0.0
        %2506 = vmatpush1.msra.mxu0 0.0
        %2507 = vmatprep.subr.mxu0 0.0
        %2508 = vmatpush1.msra.mxu0 0.0
        %2509 = vmatprep.subr.mxu0 0.0
        %2510 = vmatpush1.msra.mxu0 0.0
        %2511 = vmatprep.subr.mxu0 0.0
        %2512 = vmatpush1.msra.mxu0 0.0
        %2513 = vmatprep.subr.mxu0 0.0
        %2514 = vmatpush1.msra.mxu0 0.0
        %2515 = vmatprep.subr.mxu0 0.0
        %2516 = vmatpush1.msra.mxu0 0.0
        %2517 = vmatprep.subr.mxu0 0.0
        %2518 = vmatpush1.msra.mxu0 0.0
        %2519 = vmatprep.subr.mxu0 0.0
        %2520 = vmatpush1.msra.mxu0 0.0
        %2521 = vmatprep.subr.mxu0 0.0
        %2522 = vmatpush1.msra.mxu0 0.0
        %2523 = vmatprep.subr.mxu0 0.0
        %2524 = vmatpush1.msra.mxu0 0.0
        %2525 = vmatprep.subr.mxu0 0.0
        %2526 = vmatpush1.msra.mxu0 0.0
        %2527 = vmatprep.subr.mxu0 0.0
        %2528 = vmatpush1.msra.mxu0 0.0
        %2529 = vmatprep.subr.mxu0 0.0
        %2530 = vmatpush1.msra.mxu0 0.0
        %2531 = vmatprep.subr.mxu0 0.0
        %2532 = vmatpush1.msra.mxu0 0.0
        %2533 = vmatprep.mubr.f32.mxu0 0.0
        %2534 = vmatmul.mubr.f32.gmra.mrb[0].mxu0 %v326
        %v2535 = vpop.f32.mrb[0].mxu0
        %v2536 = vadd.f32 0.0, %v2535
        %v2537 = vpop.f32.mrb[0].mxu0
        %2538 = vmatprep.mubr.f32.mxu0 0.0
        %2539 = vmatmul.mubr.f32.gmra.mrb[0].mxu0 %v329
        %v2540 = vpop.f32.mrb[0].mxu0
        %v2541 = vadd.f32 0.0, %v2540
        %v2542 = vpop.f32.mrb[0].mxu0
        %2543 = vmatprep.mubr.f32.mxu0 0.0
        %2544 = vmatmul.mubr.f32.gmra.mrb[0].mxu0 %v332
        %v2545 = vpop.f32.mrb[0].mxu0
        %v2546 = vadd.f32 0.0, %v2545
        %v2547 = vpop.f32.mrb[0].mxu0
        %2548 = vdwg.mxu0
        %s2549 = sld [smem:[#allocation5 + $0x59]]
        %v2550 = vstv %s2549
        %v2551 = vmul.f32 %v2550, %v2536
        %v2552 = vmul.f32 %v2550, %v2541
        %v2553 = vmul.f32 %v2550, %v2546
        %v2554 = vadd.f32 %v2343, %v2551
        %v2555 = vadd.f32 %v2344, %v2552
        %v2556 = vadd.f32 %v2345, %v2553
        %s2557 = sld [smem:[#allocation5 + $0x62]]
        %v2558 = vstv %s2557
        %v2559 = vmul.f32 %v2558, %v2536
        %v2560 = vmul.f32 %v2558, %v2541
        %v2561 = vmul.f32 %v2558, %v2546
        %v2562 = vadd.f32 %v2368, %v2559
        %v2563 = vadd.f32 %v2369, %v2560
        %v2564 = vadd.f32 %v2370, %v2561
        %s2565 = sld [smem:[#allocation5 + $0x6b]]
        %v2566 = vstv %s2565
        %v2567 = vmul.f32 %v2566, %v2536
        %v2568 = vmul.f32 %v2566, %v2541
        %v2569 = vmul.f32 %v2566, %v2546
        %v2570 = vadd.f32 %v2393, %v2567
        %v2571 = vadd.f32 %v2394, %v2568
        %v2572 = vadd.f32 %v2395, %v2569
        %s2573 = sld [smem:[#allocation5 + $0x58]]
        %v2574 = vstv %s2573
        %v2575 = vmul.f32 %v2574, %v2536
        %v2576 = vmul.f32 %v2574, %v2541
        %v2577 = vmul.f32 %v2574, %v2546
        %2581 = vrot.lane.b32.xlu0 %v2575, 127
        %v2582 = vpop.permute.xlu0 %2581
        %2583 = vrot.lane.b32.xlu0 %v2576, 127
        %v2584 = vpop.permute.xlu0 %2583
        %2585 = vrot.lane.b32.xlu0 %v2577, 127
        %v2586 = vpop.permute.xlu0 %2585
        %v2590 = vadd.f32 %v2554, %v2582
        %v2591 = vadd.f32 %v2555, %v2584
        %v2592 = vadd.f32 %v2556, %v2586
        %s2593 = sld [smem:[#allocation5 + $0x61]]
        %v2594 = vstv %s2593
        %v2595 = vmul.f32 %v2594, %v2536
        %v2596 = vmul.f32 %v2594, %v2541
        %v2597 = vmul.f32 %v2594, %v2546
        %2601 = vrot.lane.b32.xlu0 %v2595, 127
        %v2602 = vpop.permute.xlu0 %2601
        %2603 = vrot.lane.b32.xlu0 %v2596, 127
        %v2604 = vpop.permute.xlu0 %2603
        %2605 = vrot.lane.b32.xlu0 %v2597, 127
        %v2606 = vpop.permute.xlu0 %2605
        %v2610 = vadd.f32 %v2562, %v2602
        %v2611 = vadd.f32 %v2563, %v2604
        %v2612 = vadd.f32 %v2564, %v2606
        %s2613 = sld [smem:[#allocation5 + $0x6a]]
        %v2614 = vstv %s2613
        %v2615 = vmul.f32 %v2614, %v2536
        %v2616 = vmul.f32 %v2614, %v2541
        %v2617 = vmul.f32 %v2614, %v2546
        %2621 = vrot.lane.b32.xlu0 %v2615, 127
        %v2622 = vpop.permute.xlu0 %2621
        %2623 = vrot.lane.b32.xlu0 %v2616, 127
        %v2624 = vpop.permute.xlu0 %2623
        %2625 = vrot.lane.b32.xlu0 %v2617, 127
        %v2626 = vpop.permute.xlu0 %2625
        %v2630 = vadd.f32 %v2570, %v2622
        %v2631 = vadd.f32 %v2571, %v2624
        %v2632 = vadd.f32 %v2572, %v2626
        %s2633 = sld [smem:[#allocation5 + $0x57]]
        %v2634 = vstv %s2633
        %v2635 = vmul.f32 %v2634, %v2536
        %v2636 = vmul.f32 %v2634, %v2541
        %v2637 = vmul.f32 %v2634, %v2546
        %2641 = vrot.lane.b32.xlu0 %v2635, 126
        %v2642 = vpop.permute.xlu0 %2641
        %2643 = vrot.lane.b32.xlu0 %v2636, 126
        %v2644 = vpop.permute.xlu0 %2643
        %2645 = vrot.lane.b32.xlu0 %v2637, 126
        %v2646 = vpop.permute.xlu0 %2645
        %v2650 = vadd.f32 %v2590, %v2642
        %v2651 = vadd.f32 %v2591, %v2644
        %v2652 = vadd.f32 %v2592, %v2646
        %s2653 = sld [smem:[#allocation5 + $0x60]]
        %v2654 = vstv %s2653
        %v2655 = vmul.f32 %v2654, %v2536
        %v2656 = vmul.f32 %v2654, %v2541
        %v2657 = vmul.f32 %v2654, %v2546
        %2661 = vrot.lane.b32.xlu0 %v2655, 126
        %v2662 = vpop.permute.xlu0 %2661
        %2663 = vrot.lane.b32.xlu0 %v2656, 126
        %v2664 = vpop.permute.xlu0 %2663
        %2665 = vrot.lane.b32.xlu0 %v2657, 126
        %v2666 = vpop.permute.xlu0 %2665
        %v2670 = vadd.f32 %v2610, %v2662
        %v2671 = vadd.f32 %v2611, %v2664
        %v2672 = vadd.f32 %v2612, %v2666
        %s2673 = sld [smem:[#allocation5 + $0x69]]
        %v2674 = vstv %s2673
        %v2675 = vmul.f32 %v2674, %v2536
        %v2676 = vmul.f32 %v2674, %v2541
        %v2677 = vmul.f32 %v2674, %v2546
        %2681 = vrot.lane.b32.xlu0 %v2675, 126
        %v2682 = vpop.permute.xlu0 %2681
        %2683 = vrot.lane.b32.xlu0 %v2676, 126
        %v2684 = vpop.permute.xlu0 %2683
        %2685 = vrot.lane.b32.xlu0 %v2677, 126
        %v2686 = vpop.permute.xlu0 %2685
        %v2690 = vadd.f32 %v2630, %v2682
        %v2691 = vadd.f32 %v2631, %v2684
        %v2692 = vadd.f32 %v2632, %v2686
        %s2693 = sld [smem:[#allocation5 + $0x56]]
        %v2694 = vstv %s2693
        %v2695 = vmul.f32 %v2694, %v2536
        %v2696 = vmul.f32 %v2694, %v2541
        %v2697 = vmul.f32 %v2694, %v2546
        %v2701 = vrot.slane %v2695, 1
        %v2702 = vrot.slane %v2696, 1
        %v2703 = vsel %vm566, %v2701, %v2702
        %v2704 = vrot.slane %v2697, 1
        %v2705 = vsel %vm566, %v2702, %v2704
        %v2709 = vadd.f32 %v2650, %v2703
        %v2710 = vadd.f32 %v2651, %v2705
        %v2711 = vadd.f32 %v2652, %v2704
        %s2712 = sld [smem:[#allocation5 + $0x5f]]
        %v2713 = vstv %s2712
        %v2714 = vmul.f32 %v2713, %v2536
        %v2715 = vmul.f32 %v2713, %v2541
        %v2716 = vmul.f32 %v2713, %v2546
        %v2720 = vrot.slane %v2714, 1
        %v2721 = vrot.slane %v2715, 1
        %v2722 = vsel %vm566, %v2720, %v2721
        %v2723 = vrot.slane %v2716, 1
        %v2724 = vsel %vm566, %v2721, %v2723
        %v2728 = vadd.f32 %v2670, %v2722
        %v2729 = vadd.f32 %v2671, %v2724
        %v2730 = vadd.f32 %v2672, %v2723
        %s2731 = sld [smem:[#allocation5 + $0x68]]
        %v2732 = vstv %s2731
        %v2733 = vmul.f32 %v2732, %v2536
        %v2734 = vmul.f32 %v2732, %v2541
        %v2735 = vmul.f32 %v2732, %v2546
        %v2739 = vrot.slane %v2733, 1
        %v2740 = vrot.slane %v2734, 1
        %v2741 = vsel %vm566, %v2739, %v2740
        %v2742 = vrot.slane %v2735, 1
        %v2743 = vsel %vm566, %v2740, %v2742
        %v2747 = vadd.f32 %v2690, %v2741
        %v2748 = vadd.f32 %v2691, %v2743
        %v2749 = vadd.f32 %v2692, %v2742
        %s2750 = sld [smem:[#allocation5 + $0x55]]
        %v2751 = vstv %s2750
        %v2752 = vmul.f32 %v2751, %v2536
        %v2753 = vmul.f32 %v2751, %v2541
        %v2754 = vmul.f32 %v2751, %v2546
        %v2758 = vrot.slane %v2752, 1
        %v2759 = vrot.slane %v2753, 1
        %v2760 = vsel %vm566, %v2758, %v2759
        %v2761 = vrot.slane %v2754, 1
        %v2762 = vsel %vm566, %v2759, %v2761
        %2763 = vrot.lane.b32.xlu0 %v2760, 127
        %v2764 = vpop.permute.xlu0 %2763
        %2765 = vrot.lane.b32.xlu0 %v2762, 127
        %v2766 = vpop.permute.xlu0 %2765
        %2767 = vrot.lane.b32.xlu0 %v2761, 127
        %v2768 = vpop.permute.xlu0 %2767
        %v2772 = vadd.f32 %v2709, %v2764
        %v2773 = vadd.f32 %v2710, %v2766
        %v2774 = vadd.f32 %v2711, %v2768
        %s2775 = sld [smem:[#allocation5 + $0x5e]]
        %v2776 = vstv %s2775
        %v2777 = vmul.f32 %v2776, %v2536
        %v2778 = vmul.f32 %v2776, %v2541
        %v2779 = vmul.f32 %v2776, %v2546
        %v2783 = vrot.slane %v2777, 1
        %v2784 = vrot.slane %v2778, 1
        %v2785 = vsel %vm566, %v2783, %v2784
        %v2786 = vrot.slane %v2779, 1
        %v2787 = vsel %vm566, %v2784, %v2786
        %2788 = vrot.lane.b32.xlu0 %v2785, 127
        %v2789 = vpop.permute.xlu0 %2788
        %2790 = vrot.lane.b32.xlu0 %v2787, 127
        %v2791 = vpop.permute.xlu0 %2790
        %2792 = vrot.lane.b32.xlu0 %v2786, 127
        %v2793 = vpop.permute.xlu0 %2792
        %v2797 = vadd.f32 %v2728, %v2789
        %v2798 = vadd.f32 %v2729, %v2791
        %v2799 = vadd.f32 %v2730, %v2793
        %s2800 = sld [smem:[#allocation5 + $0x67]]
        %v2801 = vstv %s2800
        %v2802 = vmul.f32 %v2801, %v2536
        %v2803 = vmul.f32 %v2801, %v2541
        %v2804 = vmul.f32 %v2801, %v2546
        %v2808 = vrot.slane %v2802, 1
        %v2809 = vrot.slane %v2803, 1
        %v2810 = vsel %vm566, %v2808, %v2809
        %v2811 = vrot.slane %v2804, 1
        %v2812 = vsel %vm566, %v2809, %v2811
        %2813 = vrot.lane.b32.xlu0 %v2810, 127
        %v2814 = vpop.permute.xlu0 %2813
        %2815 = vrot.lane.b32.xlu0 %v2812, 127
        %v2816 = vpop.permute.xlu0 %2815
        %2817 = vrot.lane.b32.xlu0 %v2811, 127
        %v2818 = vpop.permute.xlu0 %2817
        %v2822 = vadd.f32 %v2747, %v2814
        %v2823 = vadd.f32 %v2748, %v2816
        %v2824 = vadd.f32 %v2749, %v2818
        %s2825 = sld [smem:[#allocation5 + $0x54]]
        %v2826 = vstv %s2825
        %v2827 = vmul.f32 %v2826, %v2536
        %v2828 = vmul.f32 %v2826, %v2541
        %v2829 = vmul.f32 %v2826, %v2546
        %v2833 = vrot.slane %v2827, 1
        %v2834 = vrot.slane %v2828, 1
        %v2835 = vsel %vm566, %v2833, %v2834
        %v2836 = vrot.slane %v2829, 1
        %v2837 = vsel %vm566, %v2834, %v2836
        %2838 = vrot.lane.b32.xlu0 %v2835, 126
        %v2839 = vpop.permute.xlu0 %2838
        %2840 = vrot.lane.b32.xlu0 %v2837, 126
        %v2841 = vpop.permute.xlu0 %2840
        %2842 = vrot.lane.b32.xlu0 %v2836, 126
        %v2843 = vpop.permute.xlu0 %2842
        %v2847 = vadd.f32 %v2772, %v2839
        %v2848 = vadd.f32 %v2773, %v2841
        %v2849 = vadd.f32 %v2774, %v2843
        %s2850 = sld [smem:[#allocation5 + $0x5d]]
        %v2851 = vstv %s2850
        %v2852 = vmul.f32 %v2851, %v2536
        %v2853 = vmul.f32 %v2851, %v2541
        %v2854 = vmul.f32 %v2851, %v2546
        %v2858 = vrot.slane %v2852, 1
        %v2859 = vrot.slane %v2853, 1
        %v2860 = vsel %vm566, %v2858, %v2859
        %v2861 = vrot.slane %v2854, 1
        %v2862 = vsel %vm566, %v2859, %v2861
        %2863 = vrot.lane.b32.xlu0 %v2860, 126
        %v2864 = vpop.permute.xlu0 %2863
        %2865 = vrot.lane.b32.xlu0 %v2862, 126
        %v2866 = vpop.permute.xlu0 %2865
        %2867 = vrot.lane.b32.xlu0 %v2861, 126
        %v2868 = vpop.permute.xlu0 %2867
        %v2872 = vadd.f32 %v2797, %v2864
        %v2873 = vadd.f32 %v2798, %v2866
        %v2874 = vadd.f32 %v2799, %v2868
        %s2875 = sld [smem:[#allocation5 + $0x66]]
        %v2876 = vstv %s2875
        %v2877 = vmul.f32 %v2876, %v2536
        %v2878 = vmul.f32 %v2876, %v2541
        %v2879 = vmul.f32 %v2876, %v2546
        %v2883 = vrot.slane %v2877, 1
        %v2884 = vrot.slane %v2878, 1
        %v2885 = vsel %vm566, %v2883, %v2884
        %v2886 = vrot.slane %v2879, 1
        %v2887 = vsel %vm566, %v2884, %v2886
        %2888 = vrot.lane.b32.xlu0 %v2885, 126
        %v2889 = vpop.permute.xlu0 %2888
        %2890 = vrot.lane.b32.xlu0 %v2887, 126
        %v2891 = vpop.permute.xlu0 %2890
        %2892 = vrot.lane.b32.xlu0 %v2886, 126
        %v2893 = vpop.permute.xlu0 %2892
        %v2897 = vadd.f32 %v2822, %v2889
        %v2898 = vadd.f32 %v2823, %v2891
        %v2899 = vadd.f32 %v2824, %v2893
        %s2900 = sld [smem:[#allocation5 + $0x53]]
        %v2901 = vstv %s2900
        %v2902 = vmul.f32 %v2901, %v2536
        %v2903 = vmul.f32 %v2901, %v2541
        %v2904 = vmul.f32 %v2901, %v2546
        %v2908 = vrot.slane %v2902, 2
        %v2909 = vrot.slane %v2903, 2
        %v2910 = vsel %vm774, %v2908, %v2909
        %v2911 = vrot.slane %v2904, 2
        %v2912 = vsel %vm774, %v2909, %v2911
        %v2916 = vadd.f32 %v2847, %v2910
        %v2917 = vadd.f32 %v2848, %v2912
        %v2918 = vadd.f32 %v2849, %v2911
        %s2919 = sld [smem:[#allocation5 + $0x5c]]
        %v2920 = vstv %s2919
        %v2921 = vmul.f32 %v2920, %v2536
        %v2922 = vmul.f32 %v2920, %v2541
        %v2923 = vmul.f32 %v2920, %v2546
        %v2927 = vrot.slane %v2921, 2
        %v2928 = vrot.slane %v2922, 2
        %v2929 = vsel %vm774, %v2927, %v2928
        %v2930 = vrot.slane %v2923, 2
        %v2931 = vsel %vm774, %v2928, %v2930
        %v2935 = vadd.f32 %v2872, %v2929
        %v2936 = vadd.f32 %v2873, %v2931
        %v2937 = vadd.f32 %v2874, %v2930
        %s2938 = sld [smem:[#allocation5 + $0x65]]
        %v2939 = vstv %s2938
        %v2940 = vmul.f32 %v2939, %v2536
        %v2941 = vmul.f32 %v2939, %v2541
        %v2942 = vmul.f32 %v2939, %v2546
        %v2946 = vrot.slane %v2940, 2
        %v2947 = vrot.slane %v2941, 2
        %v2948 = vsel %vm774, %v2946, %v2947
        %v2949 = vrot.slane %v2942, 2
        %v2950 = vsel %vm774, %v2947, %v2949
        %v2954 = vadd.f32 %v2897, %v2948
        %v2955 = vadd.f32 %v2898, %v2950
        %v2956 = vadd.f32 %v2899, %v2949
        %s2957 = sld [smem:[#allocation5 + $0x52]]
        %v2958 = vstv %s2957
        %v2959 = vmul.f32 %v2958, %v2536
        %v2960 = vmul.f32 %v2958, %v2541
        %v2961 = vmul.f32 %v2958, %v2546
        %v2965 = vrot.slane %v2959, 2
        %v2966 = vrot.slane %v2960, 2
        %v2967 = vsel %vm774, %v2965, %v2966
        %v2968 = vrot.slane %v2961, 2
        %v2969 = vsel %vm774, %v2966, %v2968
        %2970 = vrot.lane.b32.xlu0 %v2967, 127
        %v2971 = vpop.permute.xlu0 %2970
        %2972 = vrot.lane.b32.xlu0 %v2969, 127
        %v2973 = vpop.permute.xlu0 %2972
        %2974 = vrot.lane.b32.xlu0 %v2968, 127
        %v2975 = vpop.permute.xlu0 %2974
        %v2979 = vadd.f32 %v2916, %v2971
        %v2980 = vadd.f32 %v2917, %v2973
        %v2981 = vadd.f32 %v2918, %v2975
        %s2982 = sld [smem:[#allocation5 + $0x5b]]
        %v2983 = vstv %s2982
        %v2984 = vmul.f32 %v2983, %v2536
        %v2985 = vmul.f32 %v2983, %v2541
        %v2986 = vmul.f32 %v2983, %v2546
        %v2990 = vrot.slane %v2984, 2
        %v2991 = vrot.slane %v2985, 2
        %v2992 = vsel %vm774, %v2990, %v2991
        %v2993 = vrot.slane %v2986, 2
        %v2994 = vsel %vm774, %v2991, %v2993
        %2995 = vrot.lane.b32.xlu0 %v2992, 127
        %v2996 = vpop.permute.xlu0 %2995
        %2997 = vrot.lane.b32.xlu0 %v2994, 127
        %v2998 = vpop.permute.xlu0 %2997
        %2999 = vrot.lane.b32.xlu0 %v2993, 127
        %v3000 = vpop.permute.xlu0 %2999
        %v3004 = vadd.f32 %v2935, %v2996
        %v3005 = vadd.f32 %v2936, %v2998
        %v3006 = vadd.f32 %v2937, %v3000
        %s3007 = sld [smem:[#allocation5 + $0x64]]
        %v3008 = vstv %s3007
        %v3009 = vmul.f32 %v3008, %v2536
        %v3010 = vmul.f32 %v3008, %v2541
        %v3011 = vmul.f32 %v3008, %v2546
        %v3015 = vrot.slane %v3009, 2
        %v3016 = vrot.slane %v3010, 2
        %v3017 = vsel %vm774, %v3015, %v3016
        %v3018 = vrot.slane %v3011, 2
        %v3019 = vsel %vm774, %v3016, %v3018
        %3020 = vrot.lane.b32.xlu0 %v3017, 127
        %v3021 = vpop.permute.xlu0 %3020
        %3022 = vrot.lane.b32.xlu0 %v3019, 127
        %v3023 = vpop.permute.xlu0 %3022
        %3024 = vrot.lane.b32.xlu0 %v3018, 127
        %v3025 = vpop.permute.xlu0 %3024
        %v3029 = vadd.f32 %v2954, %v3021
        %v3030 = vadd.f32 %v2955, %v3023
        %v3031 = vadd.f32 %v2956, %v3025
        %s3032 = sld [smem:[#allocation5 + $0x51]]
        %v3033 = vstv %s3032
        %v3034 = vmul.f32 %v3033, %v2536
        %v3035 = vmul.f32 %v3033, %v2541
        %v3036 = vmul.f32 %v3033, %v2546
        %v3040 = vrot.slane %v3034, 2
        %v3041 = vrot.slane %v3035, 2
        %v3042 = vsel %vm774, %v3040, %v3041
        %v3043 = vrot.slane %v3036, 2
        %v3044 = vsel %vm774, %v3041, %v3043
        %3045 = vrot.lane.b32.xlu0 %v3042, 126
        %v3046 = vpop.permute.xlu0 %3045
        %3047 = vrot.lane.b32.xlu0 %v3044, 126
        %v3048 = vpop.permute.xlu0 %3047
        %3049 = vrot.lane.b32.xlu0 %v3043, 126
        %v3050 = vpop.permute.xlu0 %3049
        %v3054 = vadd.f32 %v2979, %v3046
        %v3055 = vadd.f32 %v2980, %v3048
        %v3056 = vadd.f32 %v2981, %v3050
        %s3057 = sld [smem:[#allocation5 + $0x5a]]
        %v3058 = vstv %s3057
        %v3059 = vmul.f32 %v3058, %v2536
        %v3060 = vmul.f32 %v3058, %v2541
        %v3061 = vmul.f32 %v3058, %v2546
        %v3065 = vrot.slane %v3059, 2
        %v3066 = vrot.slane %v3060, 2
        %v3067 = vsel %vm774, %v3065, %v3066
        %v3068 = vrot.slane %v3061, 2
        %v3069 = vsel %vm774, %v3066, %v3068
        %3070 = vrot.lane.b32.xlu0 %v3067, 126
        %v3071 = vpop.permute.xlu0 %3070
        %3072 = vrot.lane.b32.xlu0 %v3069, 126
        %v3073 = vpop.permute.xlu0 %3072
        %3074 = vrot.lane.b32.xlu0 %v3068, 126
        %v3075 = vpop.permute.xlu0 %3074
        %v3079 = vadd.f32 %v3004, %v3071
        %v3080 = vadd.f32 %v3005, %v3073
        %v3081 = vadd.f32 %v3006, %v3075
        %s3082 = sld [smem:[#allocation5 + $0x63]]
        %v3083 = vstv %s3082
        %v3084 = vmul.f32 %v3083, %v2536
        %v3085 = vmul.f32 %v3083, %v2541
        %v3086 = vmul.f32 %v3083, %v2546
        %v3090 = vrot.slane %v3084, 2
        %v3091 = vrot.slane %v3085, 2
        %v3092 = vsel %vm774, %v3090, %v3091
        %v3093 = vrot.slane %v3086, 2
        %v3094 = vsel %vm774, %v3091, %v3093
        %3095 = vrot.lane.b32.xlu0 %v3092, 126
        %v3096 = vpop.permute.xlu0 %3095
        %3097 = vrot.lane.b32.xlu0 %v3094, 126
        %v3098 = vpop.permute.xlu0 %3097
        %3099 = vrot.lane.b32.xlu0 %v3093, 126
        %v3100 = vpop.permute.xlu0 %3099
        %v3104 = vadd.f32 %v3029, %v3096
        %v3105 = vadd.f32 %v3030, %v3098
        %v3106 = vadd.f32 %v3031, %v3100
        %v3108 = vsel %vm251, %v244, 0
        %3110 = vmatprep.subr.mxu0 0.0
        %3111 = vmatpush1.msra.mxu0 %v239
        %3112 = vmatprep.subr.mxu0 0.0
        %3113 = vmatpush1.msra.mxu0 0.0
        %3114 = vmatprep.subr.mxu0 0.0
        %3115 = vmatpush1.msra.mxu0 0.0
        %3116 = vmatprep.subr.mxu0 0.0
        %3117 = vmatpush1.msra.mxu0 0.0
        %3118 = vmatprep.subr.mxu0 0.0
        %3119 = vmatpush1.msra.mxu0 0.0
        %3120 = vmatprep.subr.mxu0 0.0
        %3121 = vmatpush1.msra.mxu0 0.0
        %3122 = vmatprep.subr.mxu0 0.0
        %3123 = vmatpush1.msra.mxu0 0.0
        %3124 = vmatprep.subr.mxu0 0.0
        %3125 = vmatpush1.msra.mxu0 0.0
        %3126 = vmatprep.subr.mxu0 0.0
        %3127 = vmatpush1.msra.mxu0 0.0
        %3128 = vmatprep.subr.mxu0 0.0
        %3129 = vmatpush1.msra.mxu0 0.0
        %3130 = vmatprep.subr.mxu0 0.0
        %3131 = vmatpush1.msra.mxu0 0.0
        %3132 = vmatprep.subr.mxu0 0.0
        %3133 = vmatpush1.msra.mxu0 0.0
        %3134 = vmatprep.subr.mxu0 0.0
        %3135 = vmatpush1.msra.mxu0 0.0
        %3136 = vmatprep.subr.mxu0 0.0
        %3137 = vmatpush1.msra.mxu0 0.0
        %3138 = vmatprep.subr.mxu0 0.0
        %3139 = vmatpush1.msra.mxu0 0.0
        %3140 = vmatprep.subr.mxu0 0.0
        %3141 = vmatpush1.msra.mxu0 0.0
        %3142 = vmatprep.subr.mxu0 0.0
        %3143 = vmatpush1.msra.mxu0 0.0
        %3144 = vmatprep.subr.mxu0 0.0
        %3145 = vmatpush1.msra.mxu0 0.0
        %3146 = vmatprep.subr.mxu0 0.0
        %3147 = vmatpush1.msra.mxu0 0.0
        %3148 = vmatprep.subr.mxu0 0.0
        %3149 = vmatpush1.msra.mxu0 0.0
        %3150 = vmatprep.subr.mxu0 0.0
        %3151 = vmatpush1.msra.mxu0 0.0
        %3152 = vmatprep.subr.mxu0 0.0
        %3153 = vmatpush1.msra.mxu0 0.0
        %3154 = vmatprep.subr.mxu0 0.0
        %3155 = vmatpush1.msra.mxu0 0.0
        %3156 = vmatprep.subr.mxu0 0.0
        %3157 = vmatpush1.msra.mxu0 0.0
        %3158 = vmatprep.subr.mxu0 0.0
        %3159 = vmatpush1.msra.mxu0 0.0
        %3160 = vmatprep.subr.mxu0 0.0
        %3161 = vmatpush1.msra.mxu0 0.0
        %3162 = vmatprep.subr.mxu0 0.0
        %3163 = vmatpush1.msra.mxu0 0.0
        %3164 = vmatprep.subr.mxu0 0.0
        %3165 = vmatpush1.msra.mxu0 0.0
        %3166 = vmatprep.subr.mxu0 0.0
        %3167 = vmatpush1.msra.mxu0 0.0
        %3168 = vmatprep.subr.mxu0 0.0
        %3169 = vmatpush1.msra.mxu0 0.0
        %3170 = vmatprep.subr.mxu0 0.0
        %3171 = vmatpush1.msra.mxu0 0.0
        %3172 = vmatprep.subr.mxu0 0.0
        %3173 = vmatpush1.msra.mxu0 0.0
        %3174 = vmatprep.mubr.f32.mxu0 0.0
        %3175 = vmatmul.mubr.f32.gmra.mrb[0].mxu0 %v3108
        %v3176 = vpop.f32.mrb[0].mxu0
        %v3177 = vadd.f32 0.0, %v3176
        %v3178 = vpop.f32.mrb[0].mxu0
        %3179 = vdwg.mxu0
        %3180 = vmatprep.subr.mxu0 0.0
        %3181 = vmatpush1.msra.mxu0 %v3177
        %3182 = vmatprep.subr.mxu0 0.0
        %3183 = vmatpush1.msra.mxu0 0.0
        %3184 = vmatprep.subr.mxu0 0.0
        %3185 = vmatpush1.msra.mxu0 0.0
        %3186 = vmatprep.subr.mxu0 0.0
        %3187 = vmatpush1.msra.mxu0 0.0
        %3188 = vmatprep.subr.mxu0 0.0
        %3189 = vmatpush1.msra.mxu0 0.0
        %3190 = vmatprep.subr.mxu0 0.0
        %3191 = vmatpush1.msra.mxu0 0.0
        %3192 = vmatprep.subr.mxu0 0.0
        %3193 = vmatpush1.msra.mxu0 0.0
        %3194 = vmatprep.subr.mxu0 0.0
        %3195 = vmatpush1.msra.mxu0 0.0
        %3196 = vmatprep.subr.mxu0 0.0
        %3197 = vmatpush1.msra.mxu0 0.0
        %3198 = vmatprep.subr.mxu0 0.0
        %3199 = vmatpush1.msra.mxu0 0.0
        %3200 = vmatprep.subr.mxu0 0.0
        %3201 = vmatpush1.msra.mxu0 0.0
        %3202 = vmatprep.subr.mxu0 0.0
        %3203 = vmatpush1.msra.mxu0 0.0
        %3204 = vmatprep.subr.mxu0 0.0
        %3205 = vmatpush1.msra.mxu0 0.0
        %3206 = vmatprep.subr.mxu0 0.0
        %3207 = vmatpush1.msra.mxu0 0.0
        %3208 = vmatprep.subr.mxu0 0.0
        %3209 = vmatpush1.msra.mxu0 0.0
        %3210 = vmatprep.subr.mxu0 0.0
        %3211 = vmatpush1.msra.mxu0 0.0
        %3212 = vmatprep.subr.mxu0 0.0
        %3213 = vmatpush1.msra.mxu0 0.0
        %3214 = vmatprep.subr.mxu0 0.0
        %3215 = vmatpush1.msra.mxu0 0.0
        %3216 = vmatprep.subr.mxu0 0.0
        %3217 = vmatpush1.msra.mxu0 0.0
        %3218 = vmatprep.subr.mxu0 0.0
        %3219 = vmatpush1.msra.mxu0 0.0
        %3220 = vmatprep.subr.mxu0 0.0
        %3221 = vmatpush1.msra.mxu0 0.0
        %3222 = vmatprep.subr.mxu0 0.0
        %3223 = vmatpush1.msra.mxu0 0.0
        %3224 = vmatprep.subr.mxu0 0.0
        %3225 = vmatpush1.msra.mxu0 0.0
        %3226 = vmatprep.subr.mxu0 0.0
        %3227 = vmatpush1.msra.mxu0 0.0
        %3228 = vmatprep.subr.mxu0 0.0
        %3229 = vmatpush1.msra.mxu0 0.0
        %3230 = vmatprep.subr.mxu0 0.0
        %3231 = vmatpush1.msra.mxu0 0.0
        %3232 = vmatprep.subr.mxu0 0.0
        %3233 = vmatpush1.msra.mxu0 0.0
        %3234 = vmatprep.subr.mxu0 0.0
        %3235 = vmatpush1.msra.mxu0 0.0
        %3236 = vmatprep.subr.mxu0 0.0
        %3237 = vmatpush1.msra.mxu0 0.0
        %3238 = vmatprep.subr.mxu0 0.0
        %3239 = vmatpush1.msra.mxu0 0.0
        %3240 = vmatprep.subr.mxu0 0.0
        %3241 = vmatpush1.msra.mxu0 0.0
        %3242 = vmatprep.subr.mxu0 0.0
        %3243 = vmatpush1.msra.mxu0 0.0
        %3244 = vmatprep.mubr.f32.mxu0 0.0
        %3245 = vmatmul.mubr.f32.gmra.mrb[0].mxu0 %v326
        %v3246 = vpop.f32.mrb[0].mxu0
        %v3247 = vadd.f32 0.0, %v3246
        %v3248 = vpop.f32.mrb[0].mxu0
        %3249 = vmatprep.mubr.f32.mxu0 0.0
        %3250 = vmatmul.mubr.f32.gmra.mrb[0].mxu0 %v329
        %v3251 = vpop.f32.mrb[0].mxu0
        %v3252 = vadd.f32 0.0, %v3251
        %v3253 = vpop.f32.mrb[0].mxu0
        %3254 = vmatprep.mubr.f32.mxu0 0.0
        %3255 = vmatmul.mubr.f32.gmra.mrb[0].mxu0 %v332
        %v3256 = vpop.f32.mrb[0].mxu0
        %v3257 = vadd.f32 0.0, %v3256
        %v3258 = vpop.f32.mrb[0].mxu0
        %3259 = vdwg.mxu0
        %s3260 = sld [smem:[#allocation5 + $0x74]]
        %v3261 = vstv %s3260
        %v3262 = vmul.f32 %v3261, %v3247
        %v3263 = vmul.f32 %v3261, %v3252
        %v3264 = vmul.f32 %v3261, %v3257
        %v3265 = vadd.f32 %v3054, %v3262
        %v3266 = vadd.f32 %v3055, %v3263
        %v3267 = vadd.f32 %v3056, %v3264
        %s3268 = sld [smem:[#allocation5 + $0x7d]]
        %v3269 = vstv %s3268
        %v3270 = vmul.f32 %v3269, %v3247
        %v3271 = vmul.f32 %v3269, %v3252
        %v3272 = vmul.f32 %v3269, %v3257
        %v3273 = vadd.f32 %v3079, %v3270
        %v3274 = vadd.f32 %v3080, %v3271
        %v3275 = vadd.f32 %v3081, %v3272
        %s3276 = sld [smem:[#allocation5 + $0x86]]
        %v3277 = vstv %s3276
        %v3278 = vmul.f32 %v3277, %v3247
        %v3279 = vmul.f32 %v3277, %v3252
        %v3280 = vmul.f32 %v3277, %v3257
        %v3281 = vadd.f32 %v3104, %v3278
        %v3282 = vadd.f32 %v3105, %v3279
        %v3283 = vadd.f32 %v3106, %v3280
        %s3284 = sld [smem:[#allocation5 + $0x73]]
        %v3285 = vstv %s3284
        %v3286 = vmul.f32 %v3285, %v3247
        %v3287 = vmul.f32 %v3285, %v3252
        %v3288 = vmul.f32 %v3285, %v3257
        %3292 = vrot.lane.b32.xlu0 %v3286, 127
        %v3293 = vpop.permute.xlu0 %3292
        %3294 = vrot.lane.b32.xlu0 %v3287, 127
        %v3295 = vpop.permute.xlu0 %3294
        %3296 = vrot.lane.b32.xlu0 %v3288, 127
        %v3297 = vpop.permute.xlu0 %3296
        %v3301 = vadd.f32 %v3265, %v3293
        %v3302 = vadd.f32 %v3266, %v3295
        %v3303 = vadd.f32 %v3267, %v3297
        %s3304 = sld [smem:[#allocation5 + $0x7c]]
        %v3305 = vstv %s3304
        %v3306 = vmul.f32 %v3305, %v3247
        %v3307 = vmul.f32 %v3305, %v3252
        %v3308 = vmul.f32 %v3305, %v3257
        %3312 = vrot.lane.b32.xlu0 %v3306, 127
        %v3313 = vpop.permute.xlu0 %3312
        %3314 = vrot.lane.b32.xlu0 %v3307, 127
        %v3315 = vpop.permute.xlu0 %3314
        %3316 = vrot.lane.b32.xlu0 %v3308, 127
        %v3317 = vpop.permute.xlu0 %3316
        %v3321 = vadd.f32 %v3273, %v3313
        %v3322 = vadd.f32 %v3274, %v3315
        %v3323 = vadd.f32 %v3275, %v3317
        %s3324 = sld [smem:[#allocation5 + $0x85]]
        %v3325 = vstv %s3324
        %v3326 = vmul.f32 %v3325, %v3247
        %v3327 = vmul.f32 %v3325, %v3252
        %v3328 = vmul.f32 %v3325, %v3257
        %3332 = vrot.lane.b32.xlu0 %v3326, 127
        %v3333 = vpop.permute.xlu0 %3332
        %3334 = vrot.lane.b32.xlu0 %v3327, 127
        %v3335 = vpop.permute.xlu0 %3334
        %3336 = vrot.lane.b32.xlu0 %v3328, 127
        %v3337 = vpop.permute.xlu0 %3336
        %v3341 = vadd.f32 %v3281, %v3333
        %v3342 = vadd.f32 %v3282, %v3335
        %v3343 = vadd.f32 %v3283, %v3337
        %s3344 = sld [smem:[#allocation5 + $0x72]]
        %v3345 = vstv %s3344
        %v3346 = vmul.f32 %v3345, %v3247
        %v3347 = vmul.f32 %v3345, %v3252
        %v3348 = vmul.f32 %v3345, %v3257
        %3352 = vrot.lane.b32.xlu0 %v3346, 126
        %v3353 = vpop.permute.xlu0 %3352
        %3354 = vrot.lane.b32.xlu0 %v3347, 126
        %v3355 = vpop.permute.xlu0 %3354
        %3356 = vrot.lane.b32.xlu0 %v3348, 126
        %v3357 = vpop.permute.xlu0 %3356
        %v3361 = vadd.f32 %v3301, %v3353
        %v3362 = vadd.f32 %v3302, %v3355
        %v3363 = vadd.f32 %v3303, %v3357
        %s3364 = sld [smem:[#allocation5 + $0x7b]]
        %v3365 = vstv %s3364
        %v3366 = vmul.f32 %v3365, %v3247
        %v3367 = vmul.f32 %v3365, %v3252
        %v3368 = vmul.f32 %v3365, %v3257
        %3372 = vrot.lane.b32.xlu0 %v3366, 126
        %v3373 = vpop.permute.xlu0 %3372
        %3374 = vrot.lane.b32.xlu0 %v3367, 126
        %v3375 = vpop.permute.xlu0 %3374
        %3376 = vrot.lane.b32.xlu0 %v3368, 126
        %v3377 = vpop.permute.xlu0 %3376
        %v3381 = vadd.f32 %v3321, %v3373
        %v3382 = vadd.f32 %v3322, %v3375
        %v3383 = vadd.f32 %v3323, %v3377
        %s3384 = sld [smem:[#allocation5 + $0x84]]
        %v3385 = vstv %s3384
        %v3386 = vmul.f32 %v3385, %v3247
        %v3387 = vmul.f32 %v3385, %v3252
        %v3388 = vmul.f32 %v3385, %v3257
        %3392 = vrot.lane.b32.xlu0 %v3386, 126
        %v3393 = vpop.permute.xlu0 %3392
        %3394 = vrot.lane.b32.xlu0 %v3387, 126
        %v3395 = vpop.permute.xlu0 %3394
        %3396 = vrot.lane.b32.xlu0 %v3388, 126
        %v3397 = vpop.permute.xlu0 %3396
        %v3401 = vadd.f32 %v3341, %v3393
        %v3402 = vadd.f32 %v3342, %v3395
        %v3403 = vadd.f32 %v3343, %v3397
        %s3404 = sld [smem:[#allocation5 + $0x71]]
        %v3405 = vstv %s3404
        %v3406 = vmul.f32 %v3405, %v3247
        %v3407 = vmul.f32 %v3405, %v3252
        %v3408 = vmul.f32 %v3405, %v3257
        %v3412 = vrot.slane %v3406, 1
        %v3413 = vrot.slane %v3407, 1
        %v3414 = vsel %vm566, %v3412, %v3413
        %v3415 = vrot.slane %v3408, 1
        %v3416 = vsel %vm566, %v3413, %v3415
        %v3420 = vadd.f32 %v3361, %v3414
        %v3421 = vadd.f32 %v3362, %v3416
        %v3422 = vadd.f32 %v3363, %v3415
        %s3423 = sld [smem:[#allocation5 + $0x7a]]
        %v3424 = vstv %s3423
        %v3425 = vmul.f32 %v3424, %v3247
        %v3426 = vmul.f32 %v3424, %v3252
        %v3427 = vmul.f32 %v3424, %v3257
        %v3431 = vrot.slane %v3425, 1
        %v3432 = vrot.slane %v3426, 1
        %v3433 = vsel %vm566, %v3431, %v3432
        %v3434 = vrot.slane %v3427, 1
        %v3435 = vsel %vm566, %v3432, %v3434
        %v3439 = vadd.f32 %v3381, %v3433
        %v3440 = vadd.f32 %v3382, %v3435
        %v3441 = vadd.f32 %v3383, %v3434
        %s3442 = sld [smem:[#allocation5 + $0x83]]
        %v3443 = vstv %s3442
        %v3444 = vmul.f32 %v3443, %v3247
        %v3445 = vmul.f32 %v3443, %v3252
        %v3446 = vmul.f32 %v3443, %v3257
        %v3450 = vrot.slane %v3444, 1
        %v3451 = vrot.slane %v3445, 1
        %v3452 = vsel %vm566, %v3450, %v3451
        %v3453 = vrot.slane %v3446, 1
        %v3454 = vsel %vm566, %v3451, %v3453
        %v3458 = vadd.f32 %v3401, %v3452
        %v3459 = vadd.f32 %v3402, %v3454
        %v3460 = vadd.f32 %v3403, %v3453
        %s3461 = sld [smem:[#allocation5 + $0x70]]
        %v3462 = vstv %s3461
        %v3463 = vmul.f32 %v3462, %v3247
        %v3464 = vmul.f32 %v3462, %v3252
        %v3465 = vmul.f32 %v3462, %v3257
        %v3469 = vrot.slane %v3463, 1
        %v3470 = vrot.slane %v3464, 1
        %v3471 = vsel %vm566, %v3469, %v3470
        %v3472 = vrot.slane %v3465, 1
        %v3473 = vsel %vm566, %v3470, %v3472
        %3474 = vrot.lane.b32.xlu0 %v3471, 127
        %v3475 = vpop.permute.xlu0 %3474
        %3476 = vrot.lane.b32.xlu0 %v3473, 127
        %v3477 = vpop.permute.xlu0 %3476
        %3478 = vrot.lane.b32.xlu0 %v3472, 127
        %v3479 = vpop.permute.xlu0 %3478
        %v3483 = vadd.f32 %v3420, %v3475
        %v3484 = vadd.f32 %v3421, %v3477
        %v3485 = vadd.f32 %v3422, %v3479
        %s3486 = sld [smem:[#allocation5 + $0x79]]
        %v3487 = vstv %s3486
        %v3488 = vmul.f32 %v3487, %v3247
        %v3489 = vmul.f32 %v3487, %v3252
        %v3490 = vmul.f32 %v3487, %v3257
        %v3494 = vrot.slane %v3488, 1
        %v3495 = vrot.slane %v3489, 1
        %v3496 = vsel %vm566, %v3494, %v3495
        %v3497 = vrot.slane %v3490, 1
        %v3498 = vsel %vm566, %v3495, %v3497
        %3499 = vrot.lane.b32.xlu0 %v3496, 127
        %v3500 = vpop.permute.xlu0 %3499
        %3501 = vrot.lane.b32.xlu0 %v3498, 127
        %v3502 = vpop.permute.xlu0 %3501
        %3503 = vrot.lane.b32.xlu0 %v3497, 127
        %v3504 = vpop.permute.xlu0 %3503
        %v3508 = vadd.f32 %v3439, %v3500
        %v3509 = vadd.f32 %v3440, %v3502
        %v3510 = vadd.f32 %v3441, %v3504
        %s3511 = sld [smem:[#allocation5 + $0x82]]
        %v3512 = vstv %s3511
        %v3513 = vmul.f32 %v3512, %v3247
        %v3514 = vmul.f32 %v3512, %v3252
        %v3515 = vmul.f32 %v3512, %v3257
        %v3519 = vrot.slane %v3513, 1
        %v3520 = vrot.slane %v3514, 1
        %v3521 = vsel %vm566, %v3519, %v3520
        %v3522 = vrot.slane %v3515, 1
        %v3523 = vsel %vm566, %v3520, %v3522
        %3524 = vrot.lane.b32.xlu0 %v3521, 127
        %v3525 = vpop.permute.xlu0 %3524
        %3526 = vrot.lane.b32.xlu0 %v3523, 127
        %v3527 = vpop.permute.xlu0 %3526
        %3528 = vrot.lane.b32.xlu0 %v3522, 127
        %v3529 = vpop.permute.xlu0 %3528
        %v3533 = vadd.f32 %v3458, %v3525
        %v3534 = vadd.f32 %v3459, %v3527
        %v3535 = vadd.f32 %v3460, %v3529
        %s3536 = sld [smem:[#allocation5 + $0x6f]]
        %v3537 = vstv %s3536
        %v3538 = vmul.f32 %v3537, %v3247
        %v3539 = vmul.f32 %v3537, %v3252
        %v3540 = vmul.f32 %v3537, %v3257
        %v3544 = vrot.slane %v3538, 1
        %v3545 = vrot.slane %v3539, 1
        %v3546 = vsel %vm566, %v3544, %v3545
        %v3547 = vrot.slane %v3540, 1
        %v3548 = vsel %vm566, %v3545, %v3547
        %3549 = vrot.lane.b32.xlu0 %v3546, 126
        %v3550 = vpop.permute.xlu0 %3549
        %3551 = vrot.lane.b32.xlu0 %v3548, 126
        %v3552 = vpop.permute.xlu0 %3551
        %3553 = vrot.lane.b32.xlu0 %v3547, 126
        %v3554 = vpop.permute.xlu0 %3553
        %v3558 = vadd.f32 %v3483, %v3550
        %v3559 = vadd.f32 %v3484, %v3552
        %v3560 = vadd.f32 %v3485, %v3554
        %s3561 = sld [smem:[#allocation5 + $0x78]]
        %v3562 = vstv %s3561
        %v3563 = vmul.f32 %v3562, %v3247
        %v3564 = vmul.f32 %v3562, %v3252
        %v3565 = vmul.f32 %v3562, %v3257
        %v3569 = vrot.slane %v3563, 1
        %v3570 = vrot.slane %v3564, 1
        %v3571 = vsel %vm566, %v3569, %v3570
        %v3572 = vrot.slane %v3565, 1
        %v3573 = vsel %vm566, %v3570, %v3572
        %3574 = vrot.lane.b32.xlu0 %v3571, 126
        %v3575 = vpop.permute.xlu0 %3574
        %3576 = vrot.lane.b32.xlu0 %v3573, 126
        %v3577 = vpop.permute.xlu0 %3576
        %3578 = vrot.lane.b32.xlu0 %v3572, 126
        %v3579 = vpop.permute.xlu0 %3578
        %v3583 = vadd.f32 %v3508, %v3575
        %v3584 = vadd.f32 %v3509, %v3577
        %v3585 = vadd.f32 %v3510, %v3579
        %s3586 = sld [smem:[#allocation5 + $0x81]]
        %v3587 = vstv %s3586
        %v3588 = vmul.f32 %v3587, %v3247
        %v3589 = vmul.f32 %v3587, %v3252
        %v3590 = vmul.f32 %v3587, %v3257
        %v3594 = vrot.slane %v3588, 1
        %v3595 = vrot.slane %v3589, 1
        %v3596 = vsel %vm566, %v3594, %v3595
        %v3597 = vrot.slane %v3590, 1
        %v3598 = vsel %vm566, %v3595, %v3597
        %3599 = vrot.lane.b32.xlu0 %v3596, 126
        %v3600 = vpop.permute.xlu0 %3599
        %3601 = vrot.lane.b32.xlu0 %v3598, 126
        %v3602 = vpop.permute.xlu0 %3601
        %3603 = vrot.lane.b32.xlu0 %v3597, 126
        %v3604 = vpop.permute.xlu0 %3603
        %v3608 = vadd.f32 %v3533, %v3600
        %v3609 = vadd.f32 %v3534, %v3602
        %v3610 = vadd.f32 %v3535, %v3604
        %s3611 = sld [smem:[#allocation5 + $0x6e]]
        %v3612 = vstv %s3611
        %v3613 = vmul.f32 %v3612, %v3247
        %v3614 = vmul.f32 %v3612, %v3252
        %v3615 = vmul.f32 %v3612, %v3257
        %v3619 = vrot.slane %v3613, 2
        %v3620 = vrot.slane %v3614, 2
        %v3621 = vsel %vm774, %v3619, %v3620
        %v3622 = vrot.slane %v3615, 2
        %v3623 = vsel %vm774, %v3620, %v3622
        %v3627 = vadd.f32 %v3558, %v3621
        %v3628 = vadd.f32 %v3559, %v3623
        %v3629 = vadd.f32 %v3560, %v3622
        %s3630 = sld [smem:[#allocation5 + $0x77]]
        %v3631 = vstv %s3630
        %v3632 = vmul.f32 %v3631, %v3247
        %v3633 = vmul.f32 %v3631, %v3252
        %v3634 = vmul.f32 %v3631, %v3257
        %v3638 = vrot.slane %v3632, 2
        %v3639 = vrot.slane %v3633, 2
        %v3640 = vsel %vm774, %v3638, %v3639
        %v3641 = vrot.slane %v3634, 2
        %v3642 = vsel %vm774, %v3639, %v3641
        %v3646 = vadd.f32 %v3583, %v3640
        %v3647 = vadd.f32 %v3584, %v3642
        %v3648 = vadd.f32 %v3585, %v3641
        %s3649 = sld [smem:[#allocation5 + $0x80]]
        %v3650 = vstv %s3649
        %v3651 = vmul.f32 %v3650, %v3247
        %v3652 = vmul.f32 %v3650, %v3252
        %v3653 = vmul.f32 %v3650, %v3257
        %v3657 = vrot.slane %v3651, 2
        %v3658 = vrot.slane %v3652, 2
        %v3659 = vsel %vm774, %v3657, %v3658
        %v3660 = vrot.slane %v3653, 2
        %v3661 = vsel %vm774, %v3658, %v3660
        %v3665 = vadd.f32 %v3608, %v3659
        %v3666 = vadd.f32 %v3609, %v3661
        %v3667 = vadd.f32 %v3610, %v3660
        %s3668 = sld [smem:[#allocation5 + $0x6d]]
        %v3669 = vstv %s3668
        %v3670 = vmul.f32 %v3669, %v3247
        %v3671 = vmul.f32 %v3669, %v3252
        %v3672 = vmul.f32 %v3669, %v3257
        %v3676 = vrot.slane %v3670, 2
        %v3677 = vrot.slane %v3671, 2
        %v3678 = vsel %vm774, %v3676, %v3677
        %v3679 = vrot.slane %v3672, 2
        %v3680 = vsel %vm774, %v3677, %v3679
        %3681 = vrot.lane.b32.xlu0 %v3678, 127
        %v3682 = vpop.permute.xlu0 %3681
        %3683 = vrot.lane.b32.xlu0 %v3680, 127
        %v3684 = vpop.permute.xlu0 %3683
        %3685 = vrot.lane.b32.xlu0 %v3679, 127
        %v3686 = vpop.permute.xlu0 %3685
        %v3690 = vadd.f32 %v3627, %v3682
        %v3691 = vadd.f32 %v3628, %v3684
        %v3692 = vadd.f32 %v3629, %v3686
        %s3693 = sld [smem:[#allocation5 + $0x76]]
        %v3694 = vstv %s3693
        %v3695 = vmul.f32 %v3694, %v3247
        %v3696 = vmul.f32 %v3694, %v3252
        %v3697 = vmul.f32 %v3694, %v3257
        %v3701 = vrot.slane %v3695, 2
        %v3702 = vrot.slane %v3696, 2
        %v3703 = vsel %vm774, %v3701, %v3702
        %v3704 = vrot.slane %v3697, 2
        %v3705 = vsel %vm774, %v3702, %v3704
        %3706 = vrot.lane.b32.xlu0 %v3703, 127
        %v3707 = vpop.permute.xlu0 %3706
        %3708 = vrot.lane.b32.xlu0 %v3705, 127
        %v3709 = vpop.permute.xlu0 %3708
        %3710 = vrot.lane.b32.xlu0 %v3704, 127
        %v3711 = vpop.permute.xlu0 %3710
        %v3715 = vadd.f32 %v3646, %v3707
        %v3716 = vadd.f32 %v3647, %v3709
        %v3717 = vadd.f32 %v3648, %v3711
        %s3718 = sld [smem:[#allocation5 + $0x7f]]
        %v3719 = vstv %s3718
        %v3720 = vmul.f32 %v3719, %v3247
        %v3721 = vmul.f32 %v3719, %v3252
        %v3722 = vmul.f32 %v3719, %v3257
        %v3726 = vrot.slane %v3720, 2
        %v3727 = vrot.slane %v3721, 2
        %v3728 = vsel %vm774, %v3726, %v3727
        %v3729 = vrot.slane %v3722, 2
        %v3730 = vsel %vm774, %v3727, %v3729
        %3731 = vrot.lane.b32.xlu0 %v3728, 127
        %v3732 = vpop.permute.xlu0 %3731
        %3733 = vrot.lane.b32.xlu0 %v3730, 127
        %v3734 = vpop.permute.xlu0 %3733
        %3735 = vrot.lane.b32.xlu0 %v3729, 127
        %v3736 = vpop.permute.xlu0 %3735
        %v3740 = vadd.f32 %v3665, %v3732
        %v3741 = vadd.f32 %v3666, %v3734
        %v3742 = vadd.f32 %v3667, %v3736
        %s3743 = sld [smem:[#allocation5 + $0x6c]]
        %v3744 = vstv %s3743
        %v3745 = vmul.f32 %v3744, %v3247
        %v3746 = vmul.f32 %v3744, %v3252
        %v3747 = vmul.f32 %v3744, %v3257
        %v3751 = vrot.slane %v3745, 2
        %v3752 = vrot.slane %v3746, 2
        %v3753 = vsel %vm774, %v3751, %v3752
        %v3754 = vrot.slane %v3747, 2
        %v3755 = vsel %vm774, %v3752, %v3754
        %3756 = vrot.lane.b32.xlu0 %v3753, 126
        %v3757 = vpop.permute.xlu0 %3756
        %3758 = vrot.lane.b32.xlu0 %v3755, 126
        %v3759 = vpop.permute.xlu0 %3758
        %3760 = vrot.lane.b32.xlu0 %v3754, 126
        %v3761 = vpop.permute.xlu0 %3760
        %v3765 = vadd.f32 %v3690, %v3757
        %v3766 = vadd.f32 %v3691, %v3759
        %v3767 = vadd.f32 %v3692, %v3761
        %s3768 = sld [smem:[#allocation5 + $0x75]]
        %v3769 = vstv %s3768
        %v3770 = vmul.f32 %v3769, %v3247
        %v3771 = vmul.f32 %v3769, %v3252
        %v3772 = vmul.f32 %v3769, %v3257
        %v3776 = vrot.slane %v3770, 2
        %v3777 = vrot.slane %v3771, 2
        %v3778 = vsel %vm774, %v3776, %v3777
        %v3779 = vrot.slane %v3772, 2
        %v3780 = vsel %vm774, %v3777, %v3779
        %3781 = vrot.lane.b32.xlu0 %v3778, 126
        %v3782 = vpop.permute.xlu0 %3781
        %3783 = vrot.lane.b32.xlu0 %v3780, 126
        %v3784 = vpop.permute.xlu0 %3783
        %3785 = vrot.lane.b32.xlu0 %v3779, 126
        %v3786 = vpop.permute.xlu0 %3785
        %v3790 = vadd.f32 %v3715, %v3782
        %v3791 = vadd.f32 %v3716, %v3784
        %v3792 = vadd.f32 %v3717, %v3786
        %s3793 = sld [smem:[#allocation5 + $0x7e]]
        %v3794 = vstv %s3793
        %v3795 = vmul.f32 %v3794, %v3247
        %v3796 = vmul.f32 %v3794, %v3252
        %v3797 = vmul.f32 %v3794, %v3257
        %v3801 = vrot.slane %v3795, 2
        %v3802 = vrot.slane %v3796, 2
        %v3803 = vsel %vm774, %v3801, %v3802
        %v3804 = vrot.slane %v3797, 2
        %v3805 = vsel %vm774, %v3802, %v3804
        %3806 = vrot.lane.b32.xlu0 %v3803, 126
        %v3807 = vpop.permute.xlu0 %3806
        %3808 = vrot.lane.b32.xlu0 %v3805, 126
        %v3809 = vpop.permute.xlu0 %3808
        %3810 = vrot.lane.b32.xlu0 %v3804, 126
        %v3811 = vpop.permute.xlu0 %3810
        %v3815 = vadd.f32 %v3740, %v3807
        %v3816 = vadd.f32 %v3741, %v3809
        %v3817 = vadd.f32 %v3742, %v3811
        %v3818 = vmax.f32 %v3765, 0.0
        %v3819 = vmax.f32 %v3766, 0.0
        %v3820 = vmax.f32 %v3767, 0.0
        %v3821 = vmax.f32 %v3790, 0.0
        %v3822 = vmax.f32 %v3791, 0.0
        %v3823 = vmax.f32 %v3792, 0.0
        %v3824 = vmax.f32 %v3815, 0.0
        %v3825 = vmax.f32 %v3816, 0.0
        %v3826 = vmax.f32 %v3817, 0.0
        %3830 = vrot.lane.b32.xlu0 %v3821, 17
        %v3831 = vpop.permute.xlu0 %3830
        %3832 = vrot.lane.b32.xlu0 %v3822, 17
        %v3833 = vpop.permute.xlu0 %3832
        %3834 = vrot.lane.b32.xlu0 %v3823, 17
        %v3835 = vpop.permute.xlu0 %3834
        %3842 = vrot.lane.b32.xlu0 %v3824, 34
        %v3843 = vpop.permute.xlu0 %3842
        %3844 = vrot.lane.b32.xlu0 %v3825, 34
        %v3845 = vpop.permute.xlu0 %3844
        %3846 = vrot.lane.b32.xlu0 %v3826, 34
        %v3847 = vpop.permute.xlu0 %3846
        %vm3851 = vcmask 138240
        %v3852 = vsel %vm3851, %v3818, %v3831
        %v3853 = vsel %vm3851, %v3819, %v3833
        %v3854 = vsel %vm3851, %v3820, %v3835
        %vm3855 = vcmask 277504
        %v3856 = vsel %vm3855, %v3852, %v3843
        %v3857 = vsel %vm3855, %v3853, %v3845
        %v3858 = vsel %vm3855, %v3854, %v3847
        %vm3859 = vcmask 416768
        %3860 = vst.msk [vmem:[%s217] sm:$0xff] %vm3859, %v3856
        %3861 = vst.msk [vmem:[%s217 + $0x8] sm:$0xff] %vm3859, %v3857
        %vm3862 = vcmask 409600
        %3863 = vst.msk [vmem:[%s217 + $0x10] sm:$0x1] %vm3862, %v3858
        %p3864 = scmp.lt.s32.totalorder %s19, 1
        %s3865 = scalar_select %p3864, %s19, 1
        %s3866 = smul.addr %s3865, 3
        %s3867 = smul.addr %s3866, 8
        %s3868 = scalar_lea.vmem %s3, %s3867
        // Predicated region
        $region45: #{tpu_custom_call.1} parent=31 // pred_check
          %p3869 = pneg %p105
        $region46: #{tpu_custom_call.1} parent=31 // pred_check_branch
          %3871 = sbr.rel (%p3869) target = $region48
        $region47: #{tpu_custom_call.1} parent=31 // pred_region
          _
        $region48: #{tpu_custom_call.1} parent=31 // pred_fallthru
          _
      $region32: #{tpu_custom_call.1} parent=5 // pred_fallthru
        _
      %p3872 = scmp.le.s32.totalorder 2, %s14
      // Predicated region
      $region49: #{tpu_custom_call.1} parent=5 // pred_check
        %p3873 = pneg %p3872
      $region50: #{tpu_custom_call.1} parent=5 // pred_check_branch
        %3875 = sbr.rel (%p3873) target = $region52
      $region51: #{tpu_custom_call.1} parent=5 // pred_region
        %s3876 = ssub.s32 %s14, 2
        // Predicated region
        $region53: #{tpu_custom_call.1} parent=51 // pred_check
          %p3877 = pneg %p111
        $region54: #{tpu_custom_call.1} parent=51 // pred_check_branch
          %3879 = sbr.rel (%p3877) target = $region56
        $region55: #{tpu_custom_call.1} parent=51 // pred_region
          %p3880 = scmp.lt.s32.totalorder %s20, 1
          %s3881 = scalar_select %p3880, %s20, 1
          %s3882 = smul.addr %s3881, 3
          %s3883 = smul.addr %s3882, 8
          %s3884 = scalar_lea.vmem %s3, %s3883
        $region56: #{tpu_custom_call.1} parent=51 // pred_fallthru
          _
      $region52: #{tpu_custom_call.1} parent=5 // pred_fallthru
        _
    $region6: #{tpu_custom_call.1} parent=1 // loop_footer
      %s18 = sadd.s32 1, %s14
    $region7: #{tpu_custom_call.1} parent=1 // loop_footer_branch
      %13 = sbr.rel target = $region3
    $region8: #{tpu_custom_call.1} parent=1 // loop_exit
      _
    %3885 = vsyncpa [#allocation3], 1
    %s3886 = scalar_lea.sflag [#allocation3], 1
    %3887 = vsyncpa %s3886, 1
    %3888 = vsyncpa [#allocation4], 1
    %s3889 = scalar_lea.sflag [#allocation4], 1
    %3890 = vsyncpa %s3889, 1
    %3891 = vsyncpa [#allocation7], 1

</llo_original>
